<compile_context>
chip_gen: v7x
topology: tpu7x:2x2x1
jax: 0.10.0
libtpu: 0.0.40
codegen_flags: <defaults>
</compile_context>

<pallas_src>
import jax
import jax.numpy as jnp
from jax import lax
from jax.experimental import pallas as pl
from jax.experimental.pallas import tpu as pltpu


def _mixff_kernel(x_ref, halo_ref, ml_ref, mr_ref,
                  w1_ref, b1_ref, dw_ref, bdw_ref,
                  wpw_ref, bpw_ref, w2_ref, b2_ref,
                  o_ref, acc_ref):
    """One (batch n, row-tile i) grid step: produces TH output rows."""
    TH, W, C = x_ref.shape[1], x_ref.shape[2], x_ref.shape[3]
    HID = w1_ref.shape[1]
    TW = TH * W

    i = pl.program_id(1)
    nt = pl.num_programs(1)

    # Grid-invariant operands (constant index maps keep them VMEM-resident).
    w1 = w1_ref[...]                       # (C, HID)    bf16
    wpw = wpw_ref[...]                     # (HID, HID)  bf16
    w2 = w2_ref[...]                       # (HID, C)    bf16
    b1 = b1_ref[0]                         # (HID,) f32
    d = dw_ref[...]                        # (9, HID) f32, k = ky*3 + kx
    bdw = bdw_ref[0]
    bpw = bpw_ref[0]
    b2 = b2_ref[0]                         # (C,)  f32
    mask_l = ml_ref[...]                   # (TW, 1) f32, 0 where x == 0
    mask_r = mr_ref[...]                   # (TW, 1) f32, 0 where x == W-1

    # ---- 1x1 conv dim -> hid: main tile and 2-row halo slab, two MXU matmuls
    # (no in-kernel concat of a halo-extended block).
    xb = x_ref[0].reshape(TW, C).astype(jnp.bfloat16)
    h = jnp.dot(xb, w1, preferred_element_type=jnp.float32) + b1      # (TW, HID) f32

    hb = halo_ref[0, 0].reshape(2 * W, C).astype(jnp.bfloat16)
    hh = jnp.dot(hb, w1, preferred_element_type=jnp.float32)          # (2W, HID)
    # Out-of-image halo rows must act as the depthwise conv's zero padding.
    # The wrapper already feeds zero pixels there (so the matmul part is 0);
    # dropping the +b1 for those rows only (2*W rows, not the whole tile)
    # finishes the job.
    h_top = (hh[:W] + b1) * (i > 0).astype(jnp.float32)               # row above tile
    h_bot = (hh[W:] + b1) * (i + 1 < nt).astype(jnp.float32)          # row below tile

    # ---- horizontal neighbours: XLU rolls + precomputed edge masks.
    h_l = pltpu.roll(h, 1, axis=0) * mask_l        # value at (y, x-1)
    h_r = pltpu.roll(h, TW - 1, axis=0) * mask_r   # value at (y, x+1)
    mlw = mask_l[:W]
    mrw = mask_r[:W]
    h_top_l = pltpu.roll(h_top, 1, axis=0) * mlw
    h_top_r = pltpu.roll(h_top, W - 1, axis=0) * mrw
    h_bot_l = pltpu.roll(h_bot, 1, axis=0) * mlw
    h_bot_r = pltpu.roll(h_bot, W - 1, axis=0) * mrw

    # ---- depthwise 3x3 (padding = 1): accumulate into a VMEM scratch with
    # aligned row-band stores (W % 8 == 0 so every slice start is aligned).
    acc_ref[...] = h_l * d[3] + h * d[4] + h_r * d[5]                 # dy = 0
    if TH > 1:
        nb = TW - W
        # dy = -1: output rows 1..TH-1 take from h rows 0..TH-2
        acc_ref[pl.ds(W, nb), :] = (acc_ref[pl.ds(W, nb), :]
                                    + h_l[:nb] * d[0] + h[:nb] * d[1] + h_r[:nb] * d[2])
        # dy = +1: output rows 0..TH-2 take from h rows 1..TH-1
        acc_ref[pl.ds(0, nb), :] = (acc_ref[pl.ds(0, nb), :]
                                    + h_l[W:] * d[6] + h[W:] * d[7] + h_r[W:] * d[8])
    # dy = -1 for the first output row (top halo) and dy = +1 for the last
    # output row (bottom halo): only 2*W rows of extra work.
    acc_ref[pl.ds(0, W), :] = (acc_ref[pl.ds(0, W), :]
                               + h_top_l * d[0] + h_top * d[1] + h_top_r * d[2])
    acc_ref[pl.ds(TW - W, W), :] = (acc_ref[pl.ds(TW - W, W), :]
                                    + h_bot_l * d[6] + h_bot * d[7] + h_bot_r * d[8])
    a = acc_ref[...] + bdw

    # ---- 1x1 conv hid -> hid (MXU), exact-erf GELU, 1x1 conv hid -> dim (MXU).
    p = jnp.dot(a.astype(jnp.bfloat16), wpw,
                preferred_element_type=jnp.float32) + bpw
    g = 0.5 * p * (1.0 + lax.erf(p * 0.7071067811865476))             # exact GELU
    out = jnp.dot(g.astype(jnp.bfloat16), w2,
                  preferred_element_type=jnp.float32) + b2
    o_ref[0] = out.reshape(TH, W, C).astype(o_ref.dtype)


def _round_up(v, m):
    return ((v + m - 1) // m) * m


def _largest_divisor_leq(n, cap):
    cap = max(1, min(n, int(cap)))
    for dd in range(cap, 0, -1):
        if n % dd == 0:
            return dd
    return 1


def _vmem_limit_bytes():
    """~75% of this generation's VMEM (v7x: 48 MiB of 64; v5e/v6e: 96 of 128)."""
    cap = 64 * 1024 * 1024   # conservative default (v7x-sized) if query fails
    try:
        info = pltpu.get_tpu_info()
        for name in ("vmem_capacity_bytes", "vmem_bytes", "vmem_size_bytes"):
            v = getattr(info, name, None)
            if v:
                cap = int(v)
                break
    except Exception:
        pass
    return max(32 * 1024 * 1024, (cap * 3) // 4)


def _pick_tile_rows(H, W, C, HID, in_itemsize, out_itemsize, vmem_limit, n_batch):
    """Largest divisor of H whose per-step working set fits ~half the VMEM limit."""
    hid_p = _round_up(HID, 128)           # lane padding for narrow channels
    c_p = _round_up(C, 128)
    # per-row bytes: ~6 f32 (W, HID) intermediates (h, h_l, h_r, acc scratch,
    # post-matmul temporaries) + double-buffered input/output tiles.
    per_row = W * (6 * hid_p * 4 + 2 * c_p * (in_itemsize + out_itemsize))
    weights = 2 * 2 * (C * hid_p + hid_p * hid_p + hid_p * c_p) + 4 * 8 * hid_p
    budget = max(per_row, vmem_limit // 2 - weights)
    th = _largest_divisor_leq(H, budget // per_row)
    # keep at least 2 grid steps so both v7x TensorCores can be used
    if n_batch * (H // th) < 2 and H > 1:
        th = _largest_divisor_leq(H, max(1, H // 2))
    return th


def mix_feed_forward_nhwc(x_nhwc, params, *, tile_rows=None):
    """MixFeedForward on NHWC input. x_nhwc: (N, H, W, C) -> (N, H, W, C)."""
    N, H, W, C = x_nhwc.shape
    HID = params['w1'].shape[1]
    # TODO(synk): pad W (with b1-masked pad columns) to support W % 8 != 0.
    assert W % 8 == 0, "W must be a multiple of 8 (sublane alignment)"

    vmem_limit = _vmem_limit_bytes()
    if tile_rows is None:
        TH = _pick_tile_rows(H, W, C, HID, x_nhwc.dtype.itemsize,
                             x_nhwc.dtype.itemsize, vmem_limit, N)
    else:
        TH = tile_rows
    assert H % TH == 0, (H, TH)
    HT = H // TH
    TW = TH * W

    # Weights cast to bf16 once (parameters).  Activations stay native dtype.
    w1 = params['w1'].astype(jnp.bfloat16)
    wpw = params['wpw'].astype(jnp.bfloat16)
    w2 = params['w2'].astype(jnp.bfloat16)

    # Per-tile 1-row halos packed as one (N, HT, 2, W, C) array:
    # [..., 0, :, :] = row above the tile, [..., 1, :, :] = row below
    # (zero rows at the image border -> zero padding for the depthwise conv).
    zero_row = jnp.zeros((N, 1, W, C), x_nhwc.dtype)
    last_rows = x_nhwc[:, TH - 1::TH]                  # last row of each tile
    first_rows = x_nhwc[:, 0::TH]                      # first row of each tile
    tops = jnp.concatenate([zero_row, last_rows[:, :-1]], axis=1)
    bots = jnp.concatenate([first_rows[:, 1:], zero_row], axis=1)
    halo = jnp.stack([tops, bots], axis=2)             # (N, HT, 2, W, C)

    # Precomputed 0/1 horizontal edge masks (zero where x == 0 / x == W-1).
    xcol = jnp.arange(TW, dtype=jnp.int32) % W
    mask_l = (xcol >= 1).astype(jnp.float32).reshape(TW, 1)
    mask_r = (xcol <= W - 2).astype(jnp.float32).reshape(TW, 1)

    def _const(shape):
        nd = len(shape)
        return pl.BlockSpec(shape, lambda n, i, _nd=nd: (0,) * _nd)

    return pl.pallas_call(
        _mixff_kernel,
        out_shape=jax.ShapeDtypeStruct((N, H, W, C), x_nhwc.dtype),
        grid_spec=pltpu.PrefetchScalarGridSpec(
            num_scalar_prefetch=0,
            grid=(N, HT),
            in_specs=[
                pl.BlockSpec((1, TH, W, C), lambda n, i: (n, i, 0, 0)),       # x tile
                pl.BlockSpec((1, 1, 2, W, C), lambda n, i: (n, i, 0, 0, 0)),  # halo rows
                _const((TW, 1)),       # mask_l
                _const((TW, 1)),       # mask_r
                _const((C, HID)),      # w1
                _const((1, HID)),      # b1
                _const((9, HID)),      # dw (3x3 depthwise, k = ky*3 + kx)
                _const((1, HID)),      # bdw
                _const((HID, HID)),    # wpw
                _const((1, HID)),      # bpw
                _const((HID, C)),      # w2
                _const((1, C)),        # b2
            ],
            out_specs=pl.BlockSpec((1, TH, W, C), lambda n, i: (n, i, 0, 0)),
            scratch_shapes=[pltpu.VMEM((TW, HID), jnp.float32)],
        ),
        compiler_params=pltpu.CompilerParams(
            dimension_semantics=("parallel", "parallel"),
            vmem_limit_bytes=vmem_limit,
        ),
    )(x_nhwc, halo, mask_l, mask_r,
      w1, params['b1'], params['dw'], params['bdw'],
      wpw, params['bpw'], w2, params['b2'])


def mix_feed_forward(x_nchw, params, *, tile_rows=None):
    """PyTorch-layout wrapper (NCHW).  An NHWC model should call
    mix_feed_forward_nhwc directly so the transposes stay off the hot path."""
    x = jnp.transpose(x_nchw, (0, 2, 3, 1))
    y = mix_feed_forward_nhwc(x, params, tile_rows=tile_rows)
    return jnp.transpose(y, (0, 3, 1, 2))


def reference(x_nchw, params):
    """Pure-JAX f32 reference (lax conv) mirroring the PyTorch module."""
    x = jnp.transpose(x_nchw, (0, 2, 3, 1))
    dn = ('NHWC', 'HWIO', 'NHWC')
    C, HID = params['w1'].shape
    h = lax.conv_general_dilated(x, params['w1'].reshape(1, 1, C, HID),
                                 (1, 1), 'VALID', dimension_numbers=dn)
    h = h + params['b1'].reshape(1, 1, 1, HID)
    h = lax.conv_general_dilated(h, params['dw'].reshape(3, 3, 1, HID),
                                 (1, 1), ((1, 1), (1, 1)), dimension_numbers=dn,
                                 feature_group_count=HID)
    h = h + params['bdw'].reshape(1, 1, 1, HID)
    h = lax.conv_general_dilated(h, params['wpw'].reshape(1, 1, HID, HID),
                                 (1, 1), 'VALID', dimension_numbers=dn)
    h = h + params['bpw'].reshape(1, 1, 1, HID)
    h = jax.nn.gelu(h, approximate=False)
    h = lax.conv_general_dilated(h, params['w2'].reshape(1, 1, HID, C),
                                 (1, 1), 'VALID', dimension_numbers=dn)
    h = h + params['b2'].reshape(1, 1, 1, C)
    return jnp.transpose(h, (0, 3, 1, 2))


if __name__ == "__main__":
    key = jax.random.PRNGKey(0)
    N, DIM, H, W = 2, 4, 16, 16
    EXPANSION = 4
    HID = DIM * EXPANSION

    ks = jax.random.split(key, 9)
    params = {
        'w1':  jax.random.normal(ks[0], (DIM, HID), jnp.float32) * 0.1,
        'b1':  jax.random.normal(ks[1], (1, HID), jnp.float32) * 0.1,
        'dw':  jax.random.normal(ks[2], (9, HID), jnp.float32) * 0.1,
        'bdw': jax.random.normal(ks[3], (1, HID), jnp.float32) * 0.1,
        'wpw': jax.random.normal(ks[4], (HID, HID), jnp.float32) * 0.1,
        'bpw': jax.random.normal(ks[5], (1, HID), jnp.float32) * 0.1,
        'w2':  jax.random.normal(ks[6], (HID, DIM), jnp.float32) * 0.1,
        'b2':  jax.random.normal(ks[7], (1, DIM), jnp.float32) * 0.1,
    }
    x = jax.random.normal(ks[8], (N, DIM, H, W), jnp.float32)

    y = jax.jit(mix_feed_forward)(x, params)
    jax.block_until_ready(y)

    y_ref = reference(x, params)
    assert y.shape == (N, DIM, H, W)
    err = float(jnp.max(jnp.abs(y - y_ref)))
    # bf16 MXU inputs (f32 accumulation) -> slightly looser tolerance than pure f32.
    assert jnp.allclose(y, y_ref, atol=2e-2, rtol=2e-2), err
    print("KERNEL_OK")
</pallas_src>

<mosaic_0001>
module attributes {stable_mosaic.version = 11 : i64} {
  func.func @_mixff_kernel(%arg0: i32, %arg1: i32, %arg2: memref<1x16x16x4xf32, #tpu.memory_space<vmem>>, %arg3: memref<1x1x2x16x4xf32, #tpu.memory_space<vmem>>, %arg4: memref<256x1xf32, #tpu.memory_space<vmem>>, %arg5: memref<256x1xf32, #tpu.memory_space<vmem>>, %arg6: memref<4x16xbf16, #tpu.memory_space<vmem>>, %arg7: memref<1x16xf32, #tpu.memory_space<vmem>>, %arg8: memref<9x16xf32, #tpu.memory_space<vmem>>, %arg9: memref<1x16xf32, #tpu.memory_space<vmem>>, %arg10: memref<16x16xbf16, #tpu.memory_space<vmem>>, %arg11: memref<1x16xf32, #tpu.memory_space<vmem>>, %arg12: memref<16x4xbf16, #tpu.memory_space<vmem>>, %arg13: memref<1x4xf32, #tpu.memory_space<vmem>>, %arg14: memref<1x16x16x4xf32, #tpu.memory_space<vmem>>, %arg15: memref<256x16xf32, #tpu.memory_space<vmem>>) attributes {dimension_semantics = [#tpu.dimension_semantics<parallel>, #tpu.dimension_semantics<parallel>], iteration_bounds = array<i64: 2, 1>, scalar_prefetch = 0 : i64, scratch_operands = 1 : i64, tpu.core_type = #tpu.core_type<tc>, window_params = [{transform_indices = @transform_0, window_bounds = array<i64: 1, 16, 16, 4>}, {transform_indices = @transform_1, window_bounds = array<i64: 1, 1, 2, 16, 4>}, {pipeline_mode = #tpu.pipeline_mode<synchronous>, transform_indices = @transform_2, window_bounds = array<i64: 256, 1>}, {pipeline_mode = #tpu.pipeline_mode<synchronous>, transform_indices = @transform_3, window_bounds = array<i64: 256, 1>}, {pipeline_mode = #tpu.pipeline_mode<synchronous>, transform_indices = @transform_4, window_bounds = array<i64: 4, 16>}, {pipeline_mode = #tpu.pipeline_mode<synchronous>, transform_indices = @transform_5, window_bounds = array<i64: 1, 16>}, {pipeline_mode = #tpu.pipeline_mode<synchronous>, transform_indices = @transform_6, window_bounds = array<i64: 9, 16>}, {pipeline_mode = #tpu.pipeline_mode<synchronous>, transform_indices = @transform_7, window_bounds = array<i64: 1, 16>}, {pipeline_mode = #tpu.pipeline_mode<synchronous>, transform_indices = @transform_8, window_bounds = array<i64: 16, 16>}, {pipeline_mode = #tpu.pipeline_mode<synchronous>, transform_indices = @transform_9, window_bounds = array<i64: 1, 16>}, {pipeline_mode = #tpu.pipeline_mode<synchronous>, transform_indices = @transform_10, window_bounds = array<i64: 16, 4>}, {pipeline_mode = #tpu.pipeline_mode<synchronous>, transform_indices = @transform_11, window_bounds = array<i64: 1, 4>}, {transform_indices = @transform_12, window_bounds = array<i64: 1, 16, 16, 4>}]} {
    %c0 = arith.constant 0 : index
    %c0_0 = arith.constant 0 : index
    %0 = vector.load %arg6[%c0, %c0_0] : memref<4x16xbf16, #tpu.memory_space<vmem>>, vector<4x16xbf16>
    %c0_1 = arith.constant 0 : index
    %c0_2 = arith.constant 0 : index
    %1 = vector.load %arg10[%c0_1, %c0_2] : memref<16x16xbf16, #tpu.memory_space<vmem>>, vector<16x16xbf16>
    %c0_3 = arith.constant 0 : index
    %c0_4 = arith.constant 0 : index
    %2 = vector.load %arg12[%c0_3, %c0_4] : memref<16x4xbf16, #tpu.memory_space<vmem>>, vector<16x4xbf16>
    %c0_5 = arith.constant 0 : index
    %c0_6 = arith.constant 0 : index
    %3 = vector.load %arg7[%c0_5, %c0_6] : memref<1x16xf32, #tpu.memory_space<vmem>>, vector<1x16xf32>
    %4 = vector.shape_cast %3 : vector<1x16xf32> to vector<16xf32>
    %c0_7 = arith.constant 0 : index
    %c0_8 = arith.constant 0 : index
    %5 = vector.load %arg8[%c0_7, %c0_8] : memref<9x16xf32, #tpu.memory_space<vmem>>, vector<9x16xf32>
    %c0_9 = arith.constant 0 : index
    %c0_10 = arith.constant 0 : index
    %6 = vector.load %arg9[%c0_9, %c0_10] : memref<1x16xf32, #tpu.memory_space<vmem>>, vector<1x16xf32>
    %7 = vector.shape_cast %6 : vector<1x16xf32> to vector<16xf32>
    %c0_11 = arith.constant 0 : index
    %c0_12 = arith.constant 0 : index
    %8 = vector.load %arg11[%c0_11, %c0_12] : memref<1x16xf32, #tpu.memory_space<vmem>>, vector<1x16xf32>
    %9 = vector.shape_cast %8 : vector<1x16xf32> to vector<16xf32>
    %c0_13 = arith.constant 0 : index
    %c0_14 = arith.constant 0 : index
    %10 = vector.load %arg13[%c0_13, %c0_14] : memref<1x4xf32, #tpu.memory_space<vmem>>, vector<1x4xf32>
    %11 = vector.shape_cast %10 : vector<1x4xf32> to vector<4xf32>
    %c0_15 = arith.constant 0 : index
    %c0_16 = arith.constant 0 : index
    %12 = vector.load %arg4[%c0_15, %c0_16] : memref<256x1xf32, #tpu.memory_space<vmem>>, vector<256x1xf32>
    %c0_17 = arith.constant 0 : index
    %c0_18 = arith.constant 0 : index
    %13 = vector.load %arg5[%c0_17, %c0_18] : memref<256x1xf32, #tpu.memory_space<vmem>>, vector<256x1xf32>
    %c0_19 = arith.constant 0 : index
    %c0_20 = arith.constant 0 : index
    %c0_21 = arith.constant 0 : index
    %c0_22 = arith.constant 0 : index
    %14 = vector.load %arg2[%c0_19, %c0_20, %c0_21, %c0_22] : memref<1x16x16x4xf32, #tpu.memory_space<vmem>>, vector<1x16x16x4xf32>
    %15 = vector.shape_cast %14 : vector<1x16x16x4xf32> to vector<16x16x4xf32>
    %16 = vector.shape_cast %15 : vector<16x16x4xf32> to vector<256x4xf32>
    %17 = arith.truncf %16 : vector<256x4xf32> to vector<256x4xbf16>
    %cst = arith.constant dense<0.000000e+00> : vector<256x16xf32>
    %18 = tpu.matmul %17, %0, %cst {dimension_numbers = #tpu.dot_dimension_numbers<[1], [0], [0], [1], [0, 0, 1, 1], [], []>} : vector<256x4xbf16>, vector<4x16xbf16>, vector<256x16xf32> -> vector<256x16xf32>
    %19 = vector.shape_cast %4 : vector<16xf32> to vector<1x16xf32>
    %20 = vector.broadcast %19 : vector<1x16xf32> to vector<256x16xf32>
    %21 = arith.addf %18, %20 : vector<256x16xf32>
    %c0_23 = arith.constant 0 : index
    %c0_24 = arith.constant 0 : index
    %c0_25 = arith.constant 0 : index
    %c0_26 = arith.constant 0 : index
    %c0_27 = arith.constant 0 : index
    %22 = vector.load %arg3[%c0_23, %c0_24, %c0_25, %c0_26, %c0_27] : memref<1x1x2x16x4xf32, #tpu.memory_space<vmem>>, vector<1x1x2x16x4xf32>
    %23 = vector.shape_cast %22 : vector<1x1x2x16x4xf32> to vector<2x16x4xf32>
    %24 = vector.shape_cast %23 : vector<2x16x4xf32> to vector<32x4xf32>
    %25 = arith.truncf %24 : vector<32x4xf32> to vector<32x4xbf16>
    %cst_28 = arith.constant dense<0.000000e+00> : vector<32x16xf32>
    %26 = tpu.matmul %25, %0, %cst_28 {dimension_numbers = #tpu.dot_dimension_numbers<[1], [0], [0], [1], [0, 0, 1, 1], [], []>} : vector<32x4xbf16>, vector<4x16xbf16>, vector<32x16xf32> -> vector<32x16xf32>
    %27 = vector.extract_strided_slice %26 {offsets = [0, 0], sizes = [16, 16], strides = [1, 1]} : vector<32x16xf32> to vector<16x16xf32>
    %28 = vector.shape_cast %4 : vector<16xf32> to vector<1x16xf32>
    %29 = vector.broadcast %28 : vector<1x16xf32> to vector<16x16xf32>
    %30 = arith.addf %27, %29 : vector<16x16xf32>
    %c0_i32 = arith.constant 0 : i32
    %31 = arith.cmpi sgt, %arg1, %c0_i32 : i32
    %32 = arith.extui %31 : i1 to i32
    %33 = arith.sitofp %32 : i32 to f32
    %34 = vector.broadcast %33 : f32 to vector<16x16xf32>
    %35 = arith.mulf %30, %34 : vector<16x16xf32>
    %36 = vector.extract_strided_slice %26 {offsets = [16, 0], sizes = [16, 16], strides = [1, 1]} : vector<32x16xf32> to vector<16x16xf32>
    %37 = vector.shape_cast %4 : vector<16xf32> to vector<1x16xf32>
    %38 = vector.broadcast %37 : vector<1x16xf32> to vector<16x16xf32>
    %39 = arith.addf %36, %38 : vector<16x16xf32>
    %c1_i32 = arith.constant 1 : i32
    %40 = arith.addi %arg1, %c1_i32 : i32
    %c1_i32_29 = arith.constant 1 : i32
    %41 = arith.cmpi slt, %40, %c1_i32_29 : i32
    %42 = arith.extui %41 : i1 to i32
    %43 = arith.sitofp %42 : i32 to f32
    %44 = vector.broadcast %43 : f32 to vector<16x16xf32>
    %45 = arith.mulf %39, %44 : vector<16x16xf32>
    %c1_i32_30 = arith.constant 1 : i32
    %46 = tpu.dynamic_rotate %21 by %c1_i32_30 dim 0 : vector<256x16xf32>, i32 -> vector<256x16xf32>
    %47 = vector.broadcast %12 : vector<256x1xf32> to vector<256x16xf32>
    %48 = arith.mulf %46, %47 : vector<256x16xf32>
    %c255_i32 = arith.constant 255 : i32
    %49 = tpu.dynamic_rotate %21 by %c255_i32 dim 0 : vector<256x16xf32>, i32 -> vector<256x16xf32>
    %50 = vector.broadcast %13 : vector<256x1xf32> to vector<256x16xf32>
    %51 = arith.mulf %49, %50 : vector<256x16xf32>
    %52 = vector.extract_strided_slice %12 {offsets = [0, 0], sizes = [16, 1], strides = [1, 1]} : vector<256x1xf32> to vector<16x1xf32>
    %53 = vector.extract_strided_slice %13 {offsets = [0, 0], sizes = [16, 1], strides = [1, 1]} : vector<256x1xf32> to vector<16x1xf32>
    %c1_i32_31 = arith.constant 1 : i32
    %54 = tpu.dynamic_rotate %35 by %c1_i32_31 dim 0 : vector<16x16xf32>, i32 -> vector<16x16xf32>
    %55 = vector.broadcast %52 : vector<16x1xf32> to vector<16x16xf32>
    %56 = arith.mulf %54, %55 : vector<16x16xf32>
    %c15_i32 = arith.constant 15 : i32
    %57 = tpu.dynamic_rotate %35 by %c15_i32 dim 0 : vector<16x16xf32>, i32 -> vector<16x16xf32>
    %58 = vector.broadcast %53 : vector<16x1xf32> to vector<16x16xf32>
    %59 = arith.mulf %57, %58 : vector<16x16xf32>
    %c1_i32_32 = arith.constant 1 : i32
    %60 = tpu.dynamic_rotate %45 by %c1_i32_32 dim 0 : vector<16x16xf32>, i32 -> vector<16x16xf32>
    %61 = vector.broadcast %52 : vector<16x1xf32> to vector<16x16xf32>
    %62 = arith.mulf %60, %61 : vector<16x16xf32>
    %c15_i32_33 = arith.constant 15 : i32
    %63 = tpu.dynamic_rotate %45 by %c15_i32_33 dim 0 : vector<16x16xf32>, i32 -> vector<16x16xf32>
    %64 = vector.broadcast %53 : vector<16x1xf32> to vector<16x16xf32>
    %65 = arith.mulf %63, %64 : vector<16x16xf32>
    %66 = vector.extract_strided_slice %5 {offsets = [3, 0], sizes = [1, 16], strides = [1, 1]} : vector<9x16xf32> to vector<1x16xf32>
    %67 = vector.shape_cast %66 : vector<1x16xf32> to vector<16xf32>
    %68 = vector.shape_cast %67 : vector<16xf32> to vector<1x16xf32>
    %69 = vector.broadcast %68 : vector<1x16xf32> to vector<256x16xf32>
    %70 = arith.mulf %48, %69 : vector<256x16xf32>
    %71 = vector.extract_strided_slice %5 {offsets = [4, 0], sizes = [1, 16], strides = [1, 1]} : vector<9x16xf32> to vector<1x16xf32>
    %72 = vector.shape_cast %71 : vector<1x16xf32> to vector<16xf32>
    %73 = vector.shape_cast %72 : vector<16xf32> to vector<1x16xf32>
    %74 = vector.broadcast %73 : vector<1x16xf32> to vector<256x16xf32>
    %75 = arith.mulf %21, %74 : vector<256x16xf32>
    %76 = arith.addf %70, %75 : vector<256x16xf32>
    %77 = vector.extract_strided_slice %5 {offsets = [5, 0], sizes = [1, 16], strides = [1, 1]} : vector<9x16xf32> to vector<1x16xf32>
    %78 = vector.shape_cast %77 : vector<1x16xf32> to vector<16xf32>
    %79 = vector.shape_cast %78 : vector<16xf32> to vector<1x16xf32>
    %80 = vector.broadcast %79 : vector<1x16xf32> to vector<256x16xf32>
    %81 = arith.mulf %51, %80 : vector<256x16xf32>
    %82 = arith.addf %76, %81 : vector<256x16xf32>
    %c0_34 = arith.constant 0 : index
    %c0_35 = arith.constant 0 : index
    %83 = vector.load %arg15[%c0_34, %c0_35] : memref<256x16xf32, #tpu.memory_space<vmem>>, vector<256x16xf32>
    tpu.vector_store %arg15[%c0_34, %c0_35], %82 {strides = array<i32>} : memref<256x16xf32, #tpu.memory_space<vmem>>, vector<256x16xf32>,
    %c16 = arith.constant 16 : index
    %c0_36 = arith.constant 0 : index
    %84 = vector.load %arg15[%c16, %c0_36] : memref<256x16xf32, #tpu.memory_space<vmem>>, vector<240x16xf32>
    %85 = vector.extract_strided_slice %48 {offsets = [0, 0], sizes = [240, 16], strides = [1, 1]} : vector<256x16xf32> to vector<240x16xf32>
    %86 = vector.extract_strided_slice %5 {offsets = [0, 0], sizes = [1, 16], strides = [1, 1]} : vector<9x16xf32> to vector<1x16xf32>
    %87 = vector.shape_cast %86 : vector<1x16xf32> to vector<16xf32>
    %88 = vector.shape_cast %87 : vector<16xf32> to vector<1x16xf32>
    %89 = vector.broadcast %88 : vector<1x16xf32> to vector<240x16xf32>
    %90 = arith.mulf %85, %89 : vector<240x16xf32>
    %91 = arith.addf %84, %90 : vector<240x16xf32>
    %92 = vector.extract_strided_slice %21 {offsets = [0, 0], sizes = [240, 16], strides = [1, 1]} : vector<256x16xf32> to vector<240x16xf32>
    %93 = vector.extract_strided_slice %5 {offsets = [1, 0], sizes = [1, 16], strides = [1, 1]} : vector<9x16xf32> to vector<1x16xf32>
    %94 = vector.shape_cast %93 : vector<1x16xf32> to vector<16xf32>
    %95 = vector.shape_cast %94 : vector<16xf32> to vector<1x16xf32>
    %96 = vector.broadcast %95 : vector<1x16xf32> to vector<240x16xf32>
    %97 = arith.mulf %92, %96 : vector<240x16xf32>
    %98 = arith.addf %91, %97 : vector<240x16xf32>
    %99 = vector.extract_strided_slice %51 {offsets = [0, 0], sizes = [240, 16], strides = [1, 1]} : vector<256x16xf32> to vector<240x16xf32>
    %100 = vector.extract_strided_slice %5 {offsets = [2, 0], sizes = [1, 16], strides = [1, 1]} : vector<9x16xf32> to vector<1x16xf32>
    %101 = vector.shape_cast %100 : vector<1x16xf32> to vector<16xf32>
    %102 = vector.shape_cast %101 : vector<16xf32> to vector<1x16xf32>
    %103 = vector.broadcast %102 : vector<1x16xf32> to vector<240x16xf32>
    %104 = arith.mulf %99, %103 : vector<240x16xf32>
    %105 = arith.addf %98, %104 : vector<240x16xf32>
    %c16_37 = arith.constant 16 : index
    %c0_38 = arith.constant 0 : index
    %106 = vector.load %arg15[%c16_37, %c0_38] : memref<256x16xf32, #tpu.memory_space<vmem>>, vector<240x16xf32>
    tpu.vector_store %arg15[%c16_37, %c0_38], %105 {strides = array<i32>} : memref<256x16xf32, #tpu.memory_space<vmem>>, vector<240x16xf32>,
    %c0_39 = arith.constant 0 : index
    %c0_40 = arith.constant 0 : index
    %107 = vector.load %arg15[%c0_39, %c0_40] : memref<256x16xf32, #tpu.memory_space<vmem>>, vector<240x16xf32>
    %108 = vector.extract_strided_slice %48 {offsets = [16, 0], sizes = [240, 16], strides = [1, 1]} : vector<256x16xf32> to vector<240x16xf32>
    %109 = vector.extract_strided_slice %5 {offsets = [6, 0], sizes = [1, 16], strides = [1, 1]} : vector<9x16xf32> to vector<1x16xf32>
    %110 = vector.shape_cast %109 : vector<1x16xf32> to vector<16xf32>
    %111 = vector.shape_cast %110 : vector<16xf32> to vector<1x16xf32>
    %112 = vector.broadcast %111 : vector<1x16xf32> to vector<240x16xf32>
    %113 = arith.mulf %108, %112 : vector<240x16xf32>
    %114 = arith.addf %107, %113 : vector<240x16xf32>
    %115 = vector.extract_strided_slice %21 {offsets = [16, 0], sizes = [240, 16], strides = [1, 1]} : vector<256x16xf32> to vector<240x16xf32>
    %116 = vector.extract_strided_slice %5 {offsets = [7, 0], sizes = [1, 16], strides = [1, 1]} : vector<9x16xf32> to vector<1x16xf32>
    %117 = vector.shape_cast %116 : vector<1x16xf32> to vector<16xf32>
    %118 = vector.shape_cast %117 : vector<16xf32> to vector<1x16xf32>
    %119 = vector.broadcast %118 : vector<1x16xf32> to vector<240x16xf32>
    %120 = arith.mulf %115, %119 : vector<240x16xf32>
    %121 = arith.addf %114, %120 : vector<240x16xf32>
    %122 = vector.extract_strided_slice %51 {offsets = [16, 0], sizes = [240, 16], strides = [1, 1]} : vector<256x16xf32> to vector<240x16xf32>
    %123 = vector.extract_strided_slice %5 {offsets = [8, 0], sizes = [1, 16], strides = [1, 1]} : vector<9x16xf32> to vector<1x16xf32>
    %124 = vector.shape_cast %123 : vector<1x16xf32> to vector<16xf32>
    %125 = vector.shape_cast %124 : vector<16xf32> to vector<1x16xf32>
    %126 = vector.broadcast %125 : vector<1x16xf32> to vector<240x16xf32>
    %127 = arith.mulf %122, %126 : vector<240x16xf32>
    %128 = arith.addf %121, %127 : vector<240x16xf32>
    %c0_41 = arith.constant 0 : index
    %c0_42 = arith.constant 0 : index
    %129 = vector.load %arg15[%c0_41, %c0_42] : memref<256x16xf32, #tpu.memory_space<vmem>>, vector<240x16xf32>
    tpu.vector_store %arg15[%c0_41, %c0_42], %128 {strides = array<i32>} : memref<256x16xf32, #tpu.memory_space<vmem>>, vector<240x16xf32>,
    %c0_43 = arith.constant 0 : index
    %c0_44 = arith.constant 0 : index
    %130 = vector.load %arg15[%c0_43, %c0_44] : memref<256x16xf32, #tpu.memory_space<vmem>>, vector<16x16xf32>
    %131 = vector.extract_strided_slice %5 {offsets = [0, 0], sizes = [1, 16], strides = [1, 1]} : vector<9x16xf32> to vector<1x16xf32>
    %132 = vector.shape_cast %131 : vector<1x16xf32> to vector<16xf32>
    %133 = vector.shape_cast %132 : vector<16xf32> to vector<1x16xf32>
    %134 = vector.broadcast %133 : vector<1x16xf32> to vector<16x16xf32>
    %135 = arith.mulf %56, %134 : vector<16x16xf32>
    %136 = arith.addf %130, %135 : vector<16x16xf32>
    %137 = vector.extract_strided_slice %5 {offsets = [1, 0], sizes = [1, 16], strides = [1, 1]} : vector<9x16xf32> to vector<1x16xf32>
    %138 = vector.shape_cast %137 : vector<1x16xf32> to vector<16xf32>
    %139 = vector.shape_cast %138 : vector<16xf32> to vector<1x16xf32>
    %140 = vector.broadcast %139 : vector<1x16xf32> to vector<16x16xf32>
    %141 = arith.mulf %35, %140 : vector<16x16xf32>
    %142 = arith.addf %136, %141 : vector<16x16xf32>
    %143 = vector.extract_strided_slice %5 {offsets = [2, 0], sizes = [1, 16], strides = [1, 1]} : vector<9x16xf32> to vector<1x16xf32>
    %144 = vector.shape_cast %143 : vector<1x16xf32> to vector<16xf32>
    %145 = vector.shape_cast %144 : vector<16xf32> to vector<1x16xf32>
    %146 = vector.broadcast %145 : vector<1x16xf32> to vector<16x16xf32>
    %147 = arith.mulf %59, %146 : vector<16x16xf32>
    %148 = arith.addf %142, %147 : vector<16x16xf32>
    %c0_45 = arith.constant 0 : index
    %c0_46 = arith.constant 0 : index
    %149 = vector.load %arg15[%c0_45, %c0_46] : memref<256x16xf32, #tpu.memory_space<vmem>>, vector<16x16xf32>
    tpu.vector_store %arg15[%c0_45, %c0_46], %148 {strides = array<i32>} : memref<256x16xf32, #tpu.memory_space<vmem>>, vector<16x16xf32>,
    %c240 = arith.constant 240 : index
    %c0_47 = arith.constant 0 : index
    %150 = vector.load %arg15[%c240, %c0_47] : memref<256x16xf32, #tpu.memory_space<vmem>>, vector<16x16xf32>
    %151 = vector.extract_strided_slice %5 {offsets = [6, 0], sizes = [1, 16], strides = [1, 1]} : vector<9x16xf32> to vector<1x16xf32>
    %152 = vector.shape_cast %151 : vector<1x16xf32> to vector<16xf32>
    %153 = vector.shape_cast %152 : vector<16xf32> to vector<1x16xf32>
    %154 = vector.broadcast %153 : vector<1x16xf32> to vector<16x16xf32>
    %155 = arith.mulf %62, %154 : vector<16x16xf32>
    %156 = arith.addf %150, %155 : vector<16x16xf32>
    %157 = vector.extract_strided_slice %5 {offsets = [7, 0], sizes = [1, 16], strides = [1, 1]} : vector<9x16xf32> to vector<1x16xf32>
    %158 = vector.shape_cast %157 : vector<1x16xf32> to vector<16xf32>
    %159 = vector.shape_cast %158 : vector<16xf32> to vector<1x16xf32>
    %160 = vector.broadcast %159 : vector<1x16xf32> to vector<16x16xf32>
    %161 = arith.mulf %45, %160 : vector<16x16xf32>
    %162 = arith.addf %156, %161 : vector<16x16xf32>
    %163 = vector.extract_strided_slice %5 {offsets = [8, 0], sizes = [1, 16], strides = [1, 1]} : vector<9x16xf32> to vector<1x16xf32>
    %164 = vector.shape_cast %163 : vector<1x16xf32> to vector<16xf32>
    %165 = vector.shape_cast %164 : vector<16xf32> to vector<1x16xf32>
    %166 = vector.broadcast %165 : vector<1x16xf32> to vector<16x16xf32>
    %167 = arith.mulf %65, %166 : vector<16x16xf32>
    %168 = arith.addf %162, %167 : vector<16x16xf32>
    %c240_48 = arith.constant 240 : index
    %c0_49 = arith.constant 0 : index
    %169 = vector.load %arg15[%c240_48, %c0_49] : memref<256x16xf32, #tpu.memory_space<vmem>>, vector<16x16xf32>
    tpu.vector_store %arg15[%c240_48, %c0_49], %168 {strides = array<i32>} : memref<256x16xf32, #tpu.memory_space<vmem>>, vector<16x16xf32>,
    %c0_50 = arith.constant 0 : index
    %c0_51 = arith.constant 0 : index
    %170 = vector.load %arg15[%c0_50, %c0_51] : memref<256x16xf32, #tpu.memory_space<vmem>>, vector<256x16xf32>
    %171 = vector.shape_cast %7 : vector<16xf32> to vector<1x16xf32>
    %172 = vector.broadcast %171 : vector<1x16xf32> to vector<256x16xf32>
    %173 = arith.addf %170, %172 : vector<256x16xf32>
    %174 = arith.truncf %173 : vector<256x16xf32> to vector<256x16xbf16>
    %cst_52 = arith.constant dense<0.000000e+00> : vector<256x16xf32>
    %175 = tpu.matmul %174, %1, %cst_52 {dimension_numbers = #tpu.dot_dimension_numbers<[1], [0], [0], [1], [0, 0, 1, 1], [], []>} : vector<256x16xbf16>, vector<16x16xbf16>, vector<256x16xf32> -> vector<256x16xf32>
    %176 = vector.shape_cast %9 : vector<16xf32> to vector<1x16xf32>
    %177 = vector.broadcast %176 : vector<1x16xf32> to vector<256x16xf32>
    %178 = arith.addf %175, %177 : vector<256x16xf32>
    %cst_53 = arith.constant 5.000000e-01 : f32
    %179 = vector.broadcast %cst_53 : f32 to vector<256x16xf32>
    %180 = arith.mulf %179, %178 : vector<256x16xf32>
    %cst_54 = arith.constant 0.707106769 : f32
    %181 = vector.broadcast %cst_54 : f32 to vector<256x16xf32>
    %182 = arith.mulf %178, %181 : vector<256x16xf32>
    %183 = math.erf %182 : vector<256x16xf32>
    %cst_55 = arith.constant 1.000000e+00 : f32
    %184 = vector.broadcast %cst_55 : f32 to vector<256x16xf32>
    %185 = arith.addf %184, %183 : vector<256x16xf32>
    %186 = arith.mulf %180, %185 : vector<256x16xf32>
    %187 = arith.truncf %186 : vector<256x16xf32> to vector<256x16xbf16>
    %cst_56 = arith.constant dense<0.000000e+00> : vector<256x4xf32>
    %188 = tpu.matmul %187, %2, %cst_56 {dimension_numbers = #tpu.dot_dimension_numbers<[1], [0], [0], [1], [0, 0, 1, 1], [], []>} : vector<256x16xbf16>, vector<16x4xbf16>, vector<256x4xf32> -> vector<256x4xf32>
    %189 = vector.shape_cast %11 : vector<4xf32> to vector<1x4xf32>
    %190 = vector.broadcast %189 : vector<1x4xf32> to vector<256x4xf32>
    %191 = arith.addf %188, %190 : vector<256x4xf32>
    %192 = vector.shape_cast %191 : vector<256x4xf32> to vector<16x16x4xf32>
    %c0_57 = arith.constant 0 : index
    %c0_58 = arith.constant 0 : index
    %c0_59 = arith.constant 0 : index
    %c0_60 = arith.constant 0 : index
    %193 = vector.load %arg14[%c0_57, %c0_58, %c0_59, %c0_60] : memref<1x16x16x4xf32, #tpu.memory_space<vmem>>, vector<1x16x16x4xf32>
    %194 = vector.shape_cast %193 : vector<1x16x16x4xf32> to vector<16x16x4xf32>
    %195 = vector.shape_cast %192 : vector<16x16x4xf32> to vector<1x16x16x4xf32>
    tpu.vector_store %arg14[%c0_57, %c0_58, %c0_59, %c0_60], %195 {strides = array<i32>} : memref<1x16x16x4xf32, #tpu.memory_space<vmem>>, vector<1x16x16x4xf32>,
    return
  }
  func.func @transform_0(%arg0: i32, %arg1: i32) -> (i32, i32, i32, i32) {
    %c0_i32 = arith.constant 0 : i32
    %c0_i32_0 = arith.constant 0 : i32
    %c0_i32_1 = arith.constant 0 : i32
    return %arg0, %arg1, %c0_i32, %c0_i32_0 : i32, i32, i32, i32
  }
  func.func @transform_1(%arg0: i32, %arg1: i32) -> (i32, i32, i32, i32, i32) {
    %c0_i32 = arith.constant 0 : i32
    %c0_i32_0 = arith.constant 0 : i32
    %c0_i32_1 = arith.constant 0 : i32
    %c0_i32_2 = arith.constant 0 : i32
    return %arg0, %arg1, %c0_i32, %c0_i32_0, %c0_i32_1 : i32, i32, i32, i32, i32
  }
  func.func @transform_2(%arg0: i32, %arg1: i32) -> (i32, i32) {
    %c0_i32 = arith.constant 0 : i32
    %c0_i32_0 = arith.constant 0 : i32
    %c0_i32_1 = arith.constant 0 : i32
    return %c0_i32, %c0_i32_0 : i32, i32
  }
  func.func @transform_3(%arg0: i32, %arg1: i32) -> (i32, i32) {
    %c0_i32 = arith.constant 0 : i32
    %c0_i32_0 = arith.constant 0 : i32
    %c0_i32_1 = arith.constant 0 : i32
    return %c0_i32, %c0_i32_0 : i32, i32
  }
  func.func @transform_4(%arg0: i32, %arg1: i32) -> (i32, i32) {
    %c0_i32 = arith.constant 0 : i32
    %c0_i32_0 = arith.constant 0 : i32
    %c0_i32_1 = arith.constant 0 : i32
    return %c0_i32, %c0_i32_0 : i32, i32
  }
  func.func @transform_5(%arg0: i32, %arg1: i32) -> (i32, i32) {
    %c0_i32 = arith.constant 0 : i32
    %c0_i32_0 = arith.constant 0 : i32
    %c0_i32_1 = arith.constant 0 : i32
    return %c0_i32, %c0_i32_0 : i32, i32
  }
  func.func @transform_6(%arg0: i32, %arg1: i32) -> (i32, i32) {
    %c0_i32 = arith.constant 0 : i32
    %c0_i32_0 = arith.constant 0 : i32
    %c0_i32_1 = arith.constant 0 : i32
    return %c0_i32, %c0_i32_0 : i32, i32
  }
  func.func @transform_7(%arg0: i32, %arg1: i32) -> (i32, i32) {
    %c0_i32 = arith.constant 0 : i32
    %c0_i32_0 = arith.constant 0 : i32
    %c0_i32_1 = arith.constant 0 : i32
    return %c0_i32, %c0_i32_0 : i32, i32
  }
  func.func @transform_8(%arg0: i32, %arg1: i32) -> (i32, i32) {
    %c0_i32 = arith.constant 0 : i32
    %c0_i32_0 = arith.constant 0 : i32
    %c0_i32_1 = arith.constant 0 : i32
    return %c0_i32, %c0_i32_0 : i32, i32
  }
  func.func @transform_9(%arg0: i32, %arg1: i32) -> (i32, i32) {
    %c0_i32 = arith.constant 0 : i32
    %c0_i32_0 = arith.constant 0 : i32
    %c0_i32_1 = arith.constant 0 : i32
    return %c0_i32, %c0_i32_0 : i32, i32
  }
  func.func @transform_10(%arg0: i32, %arg1: i32) -> (i32, i32) {
    %c0_i32 = arith.constant 0 : i32
    %c0_i32_0 = arith.constant 0 : i32
    %c0_i32_1 = arith.constant 0 : i32
    return %c0_i32, %c0_i32_0 : i32, i32
  }
  func.func @transform_11(%arg0: i32, %arg1: i32) -> (i32, i32) {
    %c0_i32 = arith.constant 0 : i32
    %c0_i32_0 = arith.constant 0 : i32
    %c0_i32_1 = arith.constant 0 : i32
    return %c0_i32, %c0_i32_0 : i32, i32
  }
  func.func @transform_12(%arg0: i32, %arg1: i32) -> (i32, i32, i32, i32) {
    %c0_i32 = arith.constant 0 : i32
    %c0_i32_0 = arith.constant 0 : i32
    %c0_i32_1 = arith.constant 0 : i32
    return %arg0, %arg1, %c0_i32, %c0_i32_0 : i32, i32, i32, i32
  }
}

</mosaic_0001>

<llo_original>
// kernel: mix_feed_forward.1
$region0: #{mix_feed_forward.1}
  #allocation0 [shape = 'u32[]', space=smem, size = 0x4, offset = 0x4, fixed_abs, tag = 'smem constant byte address 0x4 - core index']
  #allocation1 [shape = 'u32[144,128]{1,0:T(1,128)}', space=vmem, size = 0x12000, scoped, tag = 'internal scratch']
  #allocation2 [shape = 'f32[256,16]{1,0:T(8,128)}', space=vmem, size = 0x20000, scoped, tag = 'scratch operand']
  %s0 = inlined_call_operand.vmem [shape: f32[2,16,16,4], index: 0, kind: input, shape index: {}]
  %s1 = inlined_call_operand.vmem [shape: f32[2,1,2,16,4], index: 1, kind: input, shape index: {}]
  %s2 = inlined_call_operand.vmem [shape: f32[256,1], index: 2, kind: input, shape index: {}]
  %s3 = inlined_call_operand.vmem [shape: f32[256,1], index: 3, kind: input, shape index: {}]
  %s4 = inlined_call_operand.vmem [shape: bf16[4,16], index: 4, kind: input, shape index: {}]
  %s5 = inlined_call_operand.vmem [shape: f32[1,16], index: 5, kind: input, shape index: {}]
  %s6 = inlined_call_operand.vmem [shape: f32[9,16], index: 6, kind: input, shape index: {}]
  %s7 = inlined_call_operand.vmem [shape: f32[1,16], index: 7, kind: input, shape index: {}]
  %s8 = inlined_call_operand.vmem [shape: bf16[16,16], index: 8, kind: input, shape index: {}]
  %s9 = inlined_call_operand.vmem [shape: f32[1,16], index: 9, kind: input, shape index: {}]
  %s10 = inlined_call_operand.vmem [shape: bf16[16,4], index: 10, kind: input, shape index: {}]
  %s11 = inlined_call_operand.vmem [shape: f32[1,4], index: 11, kind: input, shape index: {}]
  %s12 = inlined_call_operand.vmem [shape: f32[2,16,16,4], index: 12, kind: output, shape index: {}]
  %s13 = sld [smem:[#allocation0]]
  $region81: #{mix_feed_forward.1} parent=0
    _
  %s15 = ssub.s32 1, %s13
  %s16 = scalar_select 0, %s15, %s13
  loop: start=0, step=1, limit=4
  $region2: #{mix_feed_forward.1} parent=0 // loop_pre_header
    _
  $region3: #{mix_feed_forward.1} parent=0 // loop_header
    %s18 = sphi 0, %s22
    %p19 = scmp.ge.s32.totalorder %s18, 4
    %s25 = sphi 0, %s37
    %s26 = sphi 0, %s33
    %s27 = sphi 0, %s25
    %s28 = sphi 0, %s26
    %s29 = sphi 0, %s27
    %s30 = sphi 0, %s28
    %s42 = sphi 0, %s44
    %s45 = sphi 0, %s42
    %s46 = sphi 0, %s45
    %s62 = sphi 0, %s46
    %s70 = sphi 0, %s72
    %s73 = sphi 0, %s70
    %s74 = sphi 0, %s73
    %s90 = sphi 0, %s74
    %s94 = sphi 0, %s94
    %s96 = sphi 0, %s94
    %s97 = sphi 0, %s96
    %s111 = sphi 0, %s97
    %s115 = sphi 0, %s115
    %s117 = sphi 0, %s115
    %s118 = sphi 0, %s117
    %s132 = sphi 0, %s118
    %s136 = sphi 0, %s136
    %s138 = sphi 0, %s136
    %s139 = sphi 0, %s138
    %s153 = sphi 0, %s139
    %s157 = sphi 0, %s157
    %s159 = sphi 0, %s157
    %s160 = sphi 0, %s159
    %s174 = sphi 0, %s160
    %s178 = sphi 0, %s178
    %s180 = sphi 0, %s178
    %s181 = sphi 0, %s180
    %s195 = sphi 0, %s181
    %s199 = sphi 0, %s199
    %s201 = sphi 0, %s199
    %s202 = sphi 0, %s201
    %s216 = sphi 0, %s202
    %s220 = sphi 0, %s220
    %s222 = sphi 0, %s220
    %s223 = sphi 0, %s222
    %s237 = sphi 0, %s223
    %s241 = sphi 0, %s241
    %s243 = sphi 0, %s241
    %s244 = sphi 0, %s243
    %s258 = sphi 0, %s244
    %s262 = sphi 0, %s262
    %s264 = sphi 0, %s262
    %s265 = sphi 0, %s264
    %s279 = sphi 0, %s265
    %s283 = sphi 0, %s283
    %s285 = sphi 0, %s283
    %s286 = sphi 0, %s285
    %s300 = sphi 0, %s286
    %s308 = sphi 0, %s310
    %s311 = sphi 0, %s308
    %s312 = sphi 0, %s311
    %s328 = sphi 0, %s312
  $region4: #{mix_feed_forward.1} parent=0 // loop_header_branch
    %21 = sbr.rel (%p19) target = $region8
  $region5: #{mix_feed_forward.1} parent=0 // loop_body
    %s23 = ssub.s32 %s18, 1
    %s24 = ssub.s32 %s18, 2
    %s31 = sadd.s32 1, %s26
    %p32 = scmp.ge.s32.totalorder %s31, 1
    %s33 = scalar_select %p32, 0, %s31
    %s34 = sadd.s32 1, %s25
    %s35 = scalar_select %p32, %s34, %s25
    %p36 = scmp.ge.s32.totalorder %s35, 2
    %s37 = scalar_select %p36, 0, %s35
    %s38 = ssub.s32 %s25, %s37
    %s39 = ssub.s32 %s26, %s33
    %s40 = sor.u32 %s38, %s39
    %p41 = scmp.eq.s32.totalorder %s40, 0
    %s43 = sadd.s32 %s42, 1
    %s44 = scalar_select %p41, %s42, %s43
    %p47 = pneg %p41
    %p48 = scmp.eq.s32.totalorder %s18, 1
    %p49 = por %p47, %p48
    %p50 = scmp.ne.s32.totalorder %s42, %s45
    %p51 = scmp.eq.s32.totalorder %s18, 0
    %p52 = por %p50, %p51
    %p53 = scmp.ne.s32.totalorder %s42, %s45
    %p54 = scmp.eq.s32.totalorder %s23, 1
    %p55 = por %p53, %p54
    %p56 = scmp.ne.s32.totalorder %s45, %s46
    %p57 = scmp.eq.s32.totalorder %s23, 0
    %p58 = por %p56, %p57
    %p59 = scmp.ne.s32.totalorder %s45, %s46
    %p60 = scmp.eq.s32.totalorder %s24, 1
    %p61 = por %p59, %p60
    %p63 = scmp.ne.s32.totalorder %s46, %s62
    %p64 = scmp.eq.s32.totalorder %s24, 0
    %p65 = por %p63, %p64
    %s66 = ssub.s32 %s25, %s37
    %s67 = ssub.s32 %s26, %s33
    %s68 = sor.u32 %s66, %s67
    %p69 = scmp.eq.s32.totalorder %s68, 0
    %s71 = sadd.s32 %s70, 1
    %s72 = scalar_select %p69, %s70, %s71
    %p75 = pneg %p69
    %p76 = scmp.eq.s32.totalorder %s18, 1
    %p77 = por %p75, %p76
    %p78 = scmp.ne.s32.totalorder %s70, %s73
    %p79 = scmp.eq.s32.totalorder %s18, 0
    %p80 = por %p78, %p79
    %p81 = scmp.ne.s32.totalorder %s70, %s73
    %p82 = scmp.eq.s32.totalorder %s23, 1
    %p83 = por %p81, %p82
    %p84 = scmp.ne.s32.totalorder %s73, %s74
    %p85 = scmp.eq.s32.totalorder %s23, 0
    %p86 = por %p84, %p85
    %p87 = scmp.ne.s32.totalorder %s73, %s74
    %p88 = scmp.eq.s32.totalorder %s24, 1
    %p89 = por %p87, %p88
    %p91 = scmp.ne.s32.totalorder %s74, %s90
    %p92 = scmp.eq.s32.totalorder %s24, 0
    %p93 = por %p91, %p92
    %s95 = sadd.s32 %s94, 1
    %p98 = scmp.eq.s32.totalorder %s18, 1
    %p99 = scmp.ne.s32.totalorder %s94, %s96
    %p100 = scmp.eq.s32.totalorder %s18, 0
    %p101 = por %p99, %p100
    %p102 = scmp.ne.s32.totalorder %s94, %s96
    %p103 = scmp.eq.s32.totalorder %s23, 1
    %p104 = por %p102, %p103
    %p105 = scmp.ne.s32.totalorder %s96, %s97
    %p106 = scmp.eq.s32.totalorder %s23, 0
    %p107 = por %p105, %p106
    %p108 = scmp.ne.s32.totalorder %s96, %s97
    %p109 = scmp.eq.s32.totalorder %s24, 1
    %p110 = por %p108, %p109
    %p112 = scmp.ne.s32.totalorder %s97, %s111
    %p113 = scmp.eq.s32.totalorder %s24, 0
    %p114 = por %p112, %p113
    %s116 = sadd.s32 %s115, 1
    %p119 = scmp.eq.s32.totalorder %s18, 1
    %p120 = scmp.ne.s32.totalorder %s115, %s117
    %p121 = scmp.eq.s32.totalorder %s18, 0
    %p122 = por %p120, %p121
    %p123 = scmp.ne.s32.totalorder %s115, %s117
    %p124 = scmp.eq.s32.totalorder %s23, 1
    %p125 = por %p123, %p124
    %p126 = scmp.ne.s32.totalorder %s117, %s118
    %p127 = scmp.eq.s32.totalorder %s23, 0
    %p128 = por %p126, %p127
    %p129 = scmp.ne.s32.totalorder %s117, %s118
    %p130 = scmp.eq.s32.totalorder %s24, 1
    %p131 = por %p129, %p130
    %p133 = scmp.ne.s32.totalorder %s118, %s132
    %p134 = scmp.eq.s32.totalorder %s24, 0
    %p135 = por %p133, %p134
    %s137 = sadd.s32 %s136, 1
    %p140 = scmp.eq.s32.totalorder %s18, 1
    %p141 = scmp.ne.s32.totalorder %s136, %s138
    %p142 = scmp.eq.s32.totalorder %s18, 0
    %p143 = por %p141, %p142
    %p144 = scmp.ne.s32.totalorder %s136, %s138
    %p145 = scmp.eq.s32.totalorder %s23, 1
    %p146 = por %p144, %p145
    %p147 = scmp.ne.s32.totalorder %s138, %s139
    %p148 = scmp.eq.s32.totalorder %s23, 0
    %p149 = por %p147, %p148
    %p150 = scmp.ne.s32.totalorder %s138, %s139
    %p151 = scmp.eq.s32.totalorder %s24, 1
    %p152 = por %p150, %p151
    %p154 = scmp.ne.s32.totalorder %s139, %s153
    %p155 = scmp.eq.s32.totalorder %s24, 0
    %p156 = por %p154, %p155
    %s158 = sadd.s32 %s157, 1
    %p161 = scmp.eq.s32.totalorder %s18, 1
    %p162 = scmp.ne.s32.totalorder %s157, %s159
    %p163 = scmp.eq.s32.totalorder %s18, 0
    %p164 = por %p162, %p163
    %p165 = scmp.ne.s32.totalorder %s157, %s159
    %p166 = scmp.eq.s32.totalorder %s23, 1
    %p167 = por %p165, %p166
    %p168 = scmp.ne.s32.totalorder %s159, %s160
    %p169 = scmp.eq.s32.totalorder %s23, 0
    %p170 = por %p168, %p169
    %p171 = scmp.ne.s32.totalorder %s159, %s160
    %p172 = scmp.eq.s32.totalorder %s24, 1
    %p173 = por %p171, %p172
    %p175 = scmp.ne.s32.totalorder %s160, %s174
    %p176 = scmp.eq.s32.totalorder %s24, 0
    %p177 = por %p175, %p176
    %s179 = sadd.s32 %s178, 1
    %p182 = scmp.eq.s32.totalorder %s18, 1
    %p183 = scmp.ne.s32.totalorder %s178, %s180
    %p184 = scmp.eq.s32.totalorder %s18, 0
    %p185 = por %p183, %p184
    %p186 = scmp.ne.s32.totalorder %s178, %s180
    %p187 = scmp.eq.s32.totalorder %s23, 1
    %p188 = por %p186, %p187
    %p189 = scmp.ne.s32.totalorder %s180, %s181
    %p190 = scmp.eq.s32.totalorder %s23, 0
    %p191 = por %p189, %p190
    %p192 = scmp.ne.s32.totalorder %s180, %s181
    %p193 = scmp.eq.s32.totalorder %s24, 1
    %p194 = por %p192, %p193
    %p196 = scmp.ne.s32.totalorder %s181, %s195
    %p197 = scmp.eq.s32.totalorder %s24, 0
    %p198 = por %p196, %p197
    %s200 = sadd.s32 %s199, 1
    %p203 = scmp.eq.s32.totalorder %s18, 1
    %p204 = scmp.ne.s32.totalorder %s199, %s201
    %p205 = scmp.eq.s32.totalorder %s18, 0
    %p206 = por %p204, %p205
    %p207 = scmp.ne.s32.totalorder %s199, %s201
    %p208 = scmp.eq.s32.totalorder %s23, 1
    %p209 = por %p207, %p208
    %p210 = scmp.ne.s32.totalorder %s201, %s202
    %p211 = scmp.eq.s32.totalorder %s23, 0
    %p212 = por %p210, %p211
    %p213 = scmp.ne.s32.totalorder %s201, %s202
    %p214 = scmp.eq.s32.totalorder %s24, 1
    %p215 = por %p213, %p214
    %p217 = scmp.ne.s32.totalorder %s202, %s216
    %p218 = scmp.eq.s32.totalorder %s24, 0
    %p219 = por %p217, %p218
    %s221 = sadd.s32 %s220, 1
    %p224 = scmp.eq.s32.totalorder %s18, 1
    %p225 = scmp.ne.s32.totalorder %s220, %s222
    %p226 = scmp.eq.s32.totalorder %s18, 0
    %p227 = por %p225, %p226
    %p228 = scmp.ne.s32.totalorder %s220, %s222
    %p229 = scmp.eq.s32.totalorder %s23, 1
    %p230 = por %p228, %p229
    %p231 = scmp.ne.s32.totalorder %s222, %s223
    %p232 = scmp.eq.s32.totalorder %s23, 0
    %p233 = por %p231, %p232
    %p234 = scmp.ne.s32.totalorder %s222, %s223
    %p235 = scmp.eq.s32.totalorder %s24, 1
    %p236 = por %p234, %p235
    %p238 = scmp.ne.s32.totalorder %s223, %s237
    %p239 = scmp.eq.s32.totalorder %s24, 0
    %p240 = por %p238, %p239
    %s242 = sadd.s32 %s241, 1
    %p245 = scmp.eq.s32.totalorder %s18, 1
    %p246 = scmp.ne.s32.totalorder %s241, %s243
    %p247 = scmp.eq.s32.totalorder %s18, 0
    %p248 = por %p246, %p247
    %p249 = scmp.ne.s32.totalorder %s241, %s243
    %p250 = scmp.eq.s32.totalorder %s23, 1
    %p251 = por %p249, %p250
    %p252 = scmp.ne.s32.totalorder %s243, %s244
    %p253 = scmp.eq.s32.totalorder %s23, 0
    %p254 = por %p252, %p253
    %p255 = scmp.ne.s32.totalorder %s243, %s244
    %p256 = scmp.eq.s32.totalorder %s24, 1
    %p257 = por %p255, %p256
    %p259 = scmp.ne.s32.totalorder %s244, %s258
    %p260 = scmp.eq.s32.totalorder %s24, 0
    %p261 = por %p259, %p260
    %s263 = sadd.s32 %s262, 1
    %p266 = scmp.eq.s32.totalorder %s18, 1
    %p267 = scmp.ne.s32.totalorder %s262, %s264
    %p268 = scmp.eq.s32.totalorder %s18, 0
    %p269 = por %p267, %p268
    %p270 = scmp.ne.s32.totalorder %s262, %s264
    %p271 = scmp.eq.s32.totalorder %s23, 1
    %p272 = por %p270, %p271
    %p273 = scmp.ne.s32.totalorder %s264, %s265
    %p274 = scmp.eq.s32.totalorder %s23, 0
    %p275 = por %p273, %p274
    %p276 = scmp.ne.s32.totalorder %s264, %s265
    %p277 = scmp.eq.s32.totalorder %s24, 1
    %p278 = por %p276, %p277
    %p280 = scmp.ne.s32.totalorder %s265, %s279
    %p281 = scmp.eq.s32.totalorder %s24, 0
    %p282 = por %p280, %p281
    %s284 = sadd.s32 %s283, 1
    %p287 = scmp.eq.s32.totalorder %s18, 1
    %p288 = scmp.ne.s32.totalorder %s283, %s285
    %p289 = scmp.eq.s32.totalorder %s18, 0
    %p290 = por %p288, %p289
    %p291 = scmp.ne.s32.totalorder %s283, %s285
    %p292 = scmp.eq.s32.totalorder %s23, 1
    %p293 = por %p291, %p292
    %p294 = scmp.ne.s32.totalorder %s285, %s286
    %p295 = scmp.eq.s32.totalorder %s23, 0
    %p296 = por %p294, %p295
    %p297 = scmp.ne.s32.totalorder %s285, %s286
    %p298 = scmp.eq.s32.totalorder %s24, 1
    %p299 = por %p297, %p298
    %p301 = scmp.ne.s32.totalorder %s286, %s300
    %p302 = scmp.eq.s32.totalorder %s24, 0
    %p303 = por %p301, %p302
    %s304 = ssub.s32 %s25, %s37
    %s305 = ssub.s32 %s26, %s33
    %s306 = sor.u32 %s304, %s305
    %p307 = scmp.eq.s32.totalorder %s306, 0
    %s309 = sadd.s32 %s308, 1
    %s310 = scalar_select %p307, %s308, %s309
    %p313 = pneg %p307
    %p314 = scmp.eq.s32.totalorder %s18, 1
    %p315 = por %p313, %p314
    %p316 = scmp.ne.s32.totalorder %s308, %s311
    %p317 = scmp.eq.s32.totalorder %s18, 0
    %p318 = por %p316, %p317
    %p319 = scmp.ne.s32.totalorder %s308, %s311
    %p320 = scmp.eq.s32.totalorder %s23, 1
    %p321 = por %p319, %p320
    %p322 = scmp.ne.s32.totalorder %s311, %s312
    %p323 = scmp.eq.s32.totalorder %s23, 0
    %p324 = por %p322, %p323
    %p325 = scmp.ne.s32.totalorder %s311, %s312
    %p326 = scmp.eq.s32.totalorder %s24, 1
    %p327 = por %p325, %p326
    %p329 = scmp.ne.s32.totalorder %s312, %s328
    %p330 = scmp.eq.s32.totalorder %s24, 0
    %p331 = por %p329, %p330
    %p332 = scmp.le.s32.totalorder 1, %s18
    %p333 = scmp.lt.s32.totalorder %s18, 3
    %p334 = pnand %p332, %p333
    %p335 = pneg %p334
    // Predicated region
    $region9: #{mix_feed_forward.1} parent=5 // pred_check
      _
    $region10: #{mix_feed_forward.1} parent=5 // pred_check_branch
      %337 = sbr.rel (%p334) target = $region12
    $region11: #{mix_feed_forward.1} parent=5 // pred_region
      %s338 = ssub.s32 %s18, 1
      // Predicated region
      $region13: #{mix_feed_forward.1} parent=11 // pred_check
        %p339 = pneg %p107
      $region14: #{mix_feed_forward.1} parent=11 // pred_check_branch
        %341 = sbr.rel (%p339) target = $region16
      $region15: #{mix_feed_forward.1} parent=11 // pred_region
        _
      $region16: #{mix_feed_forward.1} parent=11 // pred_fallthru
        _
      // Predicated region
      $region17: #{mix_feed_forward.1} parent=11 // pred_check
        %p342 = pneg %p128
      $region18: #{mix_feed_forward.1} parent=11 // pred_check_branch
        %344 = sbr.rel (%p342) target = $region20
      $region19: #{mix_feed_forward.1} parent=11 // pred_region
        _
      $region20: #{mix_feed_forward.1} parent=11 // pred_fallthru
        _
      // Predicated region
      $region21: #{mix_feed_forward.1} parent=11 // pred_check
        %p345 = pneg %p149
      $region22: #{mix_feed_forward.1} parent=11 // pred_check_branch
        %347 = sbr.rel (%p345) target = $region24
      $region23: #{mix_feed_forward.1} parent=11 // pred_region
        _
      $region24: #{mix_feed_forward.1} parent=11 // pred_fallthru
        _
      // Predicated region
      $region25: #{mix_feed_forward.1} parent=11 // pred_check
        %p348 = pneg %p170
      $region26: #{mix_feed_forward.1} parent=11 // pred_check_branch
        %350 = sbr.rel (%p348) target = $region28
      $region27: #{mix_feed_forward.1} parent=11 // pred_region
        _
      $region28: #{mix_feed_forward.1} parent=11 // pred_fallthru
        _
      // Predicated region
      $region29: #{mix_feed_forward.1} parent=11 // pred_check
        %p351 = pneg %p191
      $region30: #{mix_feed_forward.1} parent=11 // pred_check_branch
        %353 = sbr.rel (%p351) target = $region32
      $region31: #{mix_feed_forward.1} parent=11 // pred_region
        _
      $region32: #{mix_feed_forward.1} parent=11 // pred_fallthru
        _
      // Predicated region
      $region33: #{mix_feed_forward.1} parent=11 // pred_check
        %p354 = pneg %p212
      $region34: #{mix_feed_forward.1} parent=11 // pred_check_branch
        %356 = sbr.rel (%p354) target = $region36
      $region35: #{mix_feed_forward.1} parent=11 // pred_region
        _
      $region36: #{mix_feed_forward.1} parent=11 // pred_fallthru
        _
      // Predicated region
      $region37: #{mix_feed_forward.1} parent=11 // pred_check
        %p357 = pneg %p233
      $region38: #{mix_feed_forward.1} parent=11 // pred_check_branch
        %359 = sbr.rel (%p357) target = $region40
      $region39: #{mix_feed_forward.1} parent=11 // pred_region
        _
      $region40: #{mix_feed_forward.1} parent=11 // pred_fallthru
        _
      // Predicated region
      $region41: #{mix_feed_forward.1} parent=11 // pred_check
        %p360 = pneg %p254
      $region42: #{mix_feed_forward.1} parent=11 // pred_check_branch
        %362 = sbr.rel (%p360) target = $region44
      $region43: #{mix_feed_forward.1} parent=11 // pred_region
        _
      $region44: #{mix_feed_forward.1} parent=11 // pred_fallthru
        _
      // Predicated region
      $region45: #{mix_feed_forward.1} parent=11 // pred_check
        %p363 = pneg %p275
      $region46: #{mix_feed_forward.1} parent=11 // pred_check_branch
        %365 = sbr.rel (%p363) target = $region48
      $region47: #{mix_feed_forward.1} parent=11 // pred_region
        _
      $region48: #{mix_feed_forward.1} parent=11 // pred_fallthru
        _
      // Predicated region
      $region49: #{mix_feed_forward.1} parent=11 // pred_check
        %p366 = pneg %p296
      $region50: #{mix_feed_forward.1} parent=11 // pred_check_branch
        %368 = sbr.rel (%p366) target = $region52
      $region51: #{mix_feed_forward.1} parent=11 // pred_region
        _
      $region52: #{mix_feed_forward.1} parent=11 // pred_fallthru
        _
    $region12: #{mix_feed_forward.1} parent=5 // pred_fallthru
      _
    %p369 = scmp.lt.s32.totalorder %s18, 2
    // Predicated region
    $region53: #{mix_feed_forward.1} parent=5 // pred_check
      %p370 = pneg %p369
    $region54: #{mix_feed_forward.1} parent=5 // pred_check_branch
      %372 = sbr.rel (%p370) target = $region56
    $region55: #{mix_feed_forward.1} parent=5 // pred_region
      // Predicated region
      $region57: #{mix_feed_forward.1} parent=55 // pred_check
        %p373 = pneg %p52
      $region58: #{mix_feed_forward.1} parent=55 // pred_check_branch
        %375 = sbr.rel (%p373) target = $region60
      $region59: #{mix_feed_forward.1} parent=55 // pred_region
        %s376 = smul.u32 16, %s26
        %p377 = scmp.lt.s32.totalorder %s25, 1
        %s378 = scalar_select %p377, %s25, 1
        %p379 = scmp.lt.s32.totalorder %s376, 15
        %s380 = scalar_select %p379, %s376, 15
        %s381 = smul.addr %s380, 2
        %s382 = smul.addr %s378, 32
        %s383 = sadd.s32 %s381, %s382
        %s384 = smul.addr %s383, 8
        %s385 = scalar_lea.vmem %s0, %s384
        %s386 = smul.u32 16, %s26
      $region60: #{mix_feed_forward.1} parent=55 // pred_fallthru
        _
      // Predicated region
      $region61: #{mix_feed_forward.1} parent=55 // pred_check
        %p387 = pneg %p80
      $region62: #{mix_feed_forward.1} parent=55 // pred_check_branch
        %389 = sbr.rel (%p387) target = $region64
      $region63: #{mix_feed_forward.1} parent=55 // pred_region
        %p390 = scmp.lt.s32.totalorder %s25, 1
        %s391 = scalar_select %p390, %s25, 1
        %p392 = scmp.lt.s32.totalorder %s26, 0
        %s393 = scalar_select %p392, %s26, 0
        %s394 = smul.addr %s393, 4
        %s395 = smul.addr %s391, 4
        %s396 = sadd.s32 %s394, %s395
        %s397 = smul.addr %s396, 8
        %s398 = scalar_lea.vmem %s1, %s397
      $region64: #{mix_feed_forward.1} parent=55 // pred_fallthru
        _
    $region56: #{mix_feed_forward.1} parent=5 // pred_fallthru
      _
    %p399 = scmp.le.s32.totalorder 1, %s18
    %p400 = scmp.lt.s32.totalorder %s18, 3
    %p401 = pnand %p399, %p400
    %p402 = pneg %p401
    // Predicated region
    $region65: #{mix_feed_forward.1} parent=5 // pred_check
      _
    $region66: #{mix_feed_forward.1} parent=5 // pred_check_branch
      %404 = sbr.rel (%p401) target = $region68
    $region67: #{mix_feed_forward.1} parent=5 // pred_region
      %s405 = ssub.s32 %s18, 1
      %s406 = smul.u32 16, %s28
      %p407 = scmp.lt.s32.totalorder %s27, 1
      %s408 = scalar_select %p407, %s27, 1
      %p409 = scmp.lt.s32.totalorder %s406, 15
      %s410 = scalar_select %p409, %s406, 15
      %s411 = smul.addr %s410, 2
      %s412 = smul.addr %s408, 32
      %s413 = sadd.s32 %s411, %s412
      %s414 = smul.addr %s413, 8
      %s415 = scalar_lea.vmem %s0, %s414
      %p416 = pneg %p58
      %p417 = pneg %p55
      %p418 = scmp.lt.s32.totalorder %s27, 1
      %s419 = scalar_select %p418, %s27, 1
      %p420 = scmp.lt.s32.totalorder %s28, 0
      %s421 = scalar_select %p420, %s28, 0
      %s422 = smul.addr %s421, 4
      %s423 = smul.addr %s419, 4
      %s424 = sadd.s32 %s422, %s423
      %s425 = smul.addr %s424, 8
      %s426 = scalar_lea.vmem %s1, %s425
      %p427 = pneg %p86
      %p428 = pneg %p83
      %p429 = pneg %p107
      %p430 = pneg %p104
      %p431 = pneg %p128
      %p432 = pneg %p125
      %p433 = pneg %p149
      %p434 = pneg %p146
      %p435 = pneg %p170
      %p436 = pneg %p167
      %p437 = pneg %p191
      %p438 = pneg %p188
      %p439 = pneg %p212
      %p440 = pneg %p209
      %p441 = pneg %p233
      %p442 = pneg %p230
      %p443 = pneg %p254
      %p444 = pneg %p251
      %p445 = pneg %p275
      %p446 = pneg %p272
      %p447 = pneg %p296
      %p448 = pneg %p293
      %p449 = pneg %p324
      %p450 = pneg %p321
      %s451 = smul.u32 16, %s28
      %p452 = scmp.lt.s32.totalorder %s27, 1
      %s453 = scalar_select %p452, %s27, 1
      %p454 = scmp.lt.s32.totalorder %s451, 15
      %s455 = scalar_select %p454, %s451, 15
      %s456 = smul.addr %s455, 2
      %s457 = smul.addr %s453, 32
      %s458 = sadd.s32 %s456, %s457
      %s459 = smul.addr %s458, 8
      %s460 = scalar_lea.vmem %s12, %s459
      %s461 = smul.u32 16, %s28
      %p462 = scmp.lt.s32.totalorder %s27, 1
      %s463 = scalar_select %p462, %s27, 1
      %p464 = scmp.lt.s32.totalorder %s461, 15
      %s465 = scalar_select %p464, %s461, 15
      %s466 = smul.addr %s465, 2
      %s467 = smul.addr %s463, 32
      %s468 = sadd.s32 %s466, %s467
      %s469 = smul.addr %s468, 8
      %s470 = scalar_lea.vmem %s0, %s469
      %s471 = smul.u32 16, %s28
      %p472 = scmp.lt.s32.totalorder %s27, 1
      %s473 = scalar_select %p472, %s27, 1
      %p474 = scmp.lt.s32.totalorder %s28, 0
      %s475 = scalar_select %p474, %s28, 0
      %s476 = smul.addr %s475, 4
      %s477 = smul.addr %s473, 4
      %s478 = sadd.s32 %s476, %s477
      %s479 = smul.addr %s478, 8
      %s480 = scalar_lea.vmem %s1, %s479
      %s481 = smul.u32 16, %s28
      %p482 = scmp.lt.s32.totalorder %s27, 1
      %s483 = scalar_select %p482, %s27, 1
      %p484 = scmp.lt.s32.totalorder %s481, 15
      %s485 = scalar_select %p484, %s481, 15
      %s486 = smul.addr %s485, 2
      %s487 = smul.addr %s483, 32
      %s488 = sadd.s32 %s486, %s487
      %s489 = smul.addr %s488, 8
      %s490 = scalar_lea.vmem %s12, %s489
      %s491 = smul.u32 16, %s28
      %v493 = vld [vmem:[%s4] sm:$0x3]
      %v494 = vld [vmem:[%s8] sm:$0xf]
      %v495 = vld [vmem:[%s8 + $0x4] sm:$0xf]
      %v496 = vld [vmem:[%s10] sm:$0xf]
      %v497 = vld [vmem:[%s10 + $0x4] sm:$0xf]
      %v498 = vld [vmem:[%s5] sm:$0x1]
      %v499 = vld [vmem:[%s6] sm:$0xff]
      %v500 = vld [vmem:[%s6 + $0x8] sm:$0x1]
      %v501 = vld [vmem:[%s7] sm:$0x1]
      %v502 = vld [vmem:[%s9] sm:$0x1]
      %v503 = vld [vmem:[%s11] sm:$0x1]
      %v504 = vld [vmem:[%s2] sm:$0xff]
      %v505 = vld [vmem:[%s2 + $0x8] sm:$0xff]
      %v506 = vld [vmem:[%s2 + $0x10] sm:$0xff]
      %v507 = vld [vmem:[%s2 + $0x18] sm:$0xff]
      %v508 = vld [vmem:[%s2 + $0x20] sm:$0xff]
      %v509 = vld [vmem:[%s2 + $0x28] sm:$0xff]
      %v510 = vld [vmem:[%s2 + $0x30] sm:$0xff]
      %v511 = vld [vmem:[%s2 + $0x38] sm:$0xff]
      %v512 = vld [vmem:[%s2 + $0x40] sm:$0xff]
      %v513 = vld [vmem:[%s2 + $0x48] sm:$0xff]
      %v514 = vld [vmem:[%s2 + $0x50] sm:$0xff]
      %v515 = vld [vmem:[%s2 + $0x58] sm:$0xff]
      %v516 = vld [vmem:[%s2 + $0x60] sm:$0xff]
      %v517 = vld [vmem:[%s2 + $0x68] sm:$0xff]
      %v518 = vld [vmem:[%s2 + $0x70] sm:$0xff]
      %v519 = vld [vmem:[%s2 + $0x78] sm:$0xff]
      %v520 = vld [vmem:[%s2 + $0x80] sm:$0xff]
      %v521 = vld [vmem:[%s2 + $0x88] sm:$0xff]
      %v522 = vld [vmem:[%s2 + $0x90] sm:$0xff]
      %v523 = vld [vmem:[%s2 + $0x98] sm:$0xff]
      %v524 = vld [vmem:[%s2 + $0xa0] sm:$0xff]
      %v525 = vld [vmem:[%s2 + $0xa8] sm:$0xff]
      %v526 = vld [vmem:[%s2 + $0xb0] sm:$0xff]
      %v527 = vld [vmem:[%s2 + $0xb8] sm:$0xff]
      %v528 = vld [vmem:[%s2 + $0xc0] sm:$0xff]
      %v529 = vld [vmem:[%s2 + $0xc8] sm:$0xff]
      %v530 = vld [vmem:[%s2 + $0xd0] sm:$0xff]
      %v531 = vld [vmem:[%s2 + $0xd8] sm:$0xff]
      %v532 = vld [vmem:[%s2 + $0xe0] sm:$0xff]
      %v533 = vld [vmem:[%s2 + $0xe8] sm:$0xff]
      %v534 = vld [vmem:[%s2 + $0xf0] sm:$0xff]
      %v535 = vld [vmem:[%s2 + $0xf8] sm:$0xff]
      %v536 = vld [vmem:[%s3] sm:$0xff]
      %v537 = vld [vmem:[%s3 + $0x8] sm:$0xff]
      %v538 = vld [vmem:[%s3 + $0x10] sm:$0xff]
      %v539 = vld [vmem:[%s3 + $0x18] sm:$0xff]
      %v540 = vld [vmem:[%s3 + $0x20] sm:$0xff]
      %v541 = vld [vmem:[%s3 + $0x28] sm:$0xff]
      %v542 = vld [vmem:[%s3 + $0x30] sm:$0xff]
      %v543 = vld [vmem:[%s3 + $0x38] sm:$0xff]
      %v544 = vld [vmem:[%s3 + $0x40] sm:$0xff]
      %v545 = vld [vmem:[%s3 + $0x48] sm:$0xff]
      %v546 = vld [vmem:[%s3 + $0x50] sm:$0xff]
      %v547 = vld [vmem:[%s3 + $0x58] sm:$0xff]
      %v548 = vld [vmem:[%s3 + $0x60] sm:$0xff]
      %v549 = vld [vmem:[%s3 + $0x68] sm:$0xff]
      %v550 = vld [vmem:[%s3 + $0x70] sm:$0xff]
      %v551 = vld [vmem:[%s3 + $0x78] sm:$0xff]
      %v552 = vld [vmem:[%s3 + $0x80] sm:$0xff]
      %v553 = vld [vmem:[%s3 + $0x88] sm:$0xff]
      %v554 = vld [vmem:[%s3 + $0x90] sm:$0xff]
      %v555 = vld [vmem:[%s3 + $0x98] sm:$0xff]
      %v556 = vld [vmem:[%s3 + $0xa0] sm:$0xff]
      %v557 = vld [vmem:[%s3 + $0xa8] sm:$0xff]
      %v558 = vld [vmem:[%s3 + $0xb0] sm:$0xff]
      %v559 = vld [vmem:[%s3 + $0xb8] sm:$0xff]
      %v560 = vld [vmem:[%s3 + $0xc0] sm:$0xff]
      %v561 = vld [vmem:[%s3 + $0xc8] sm:$0xff]
      %v562 = vld [vmem:[%s3 + $0xd0] sm:$0xff]
      %v563 = vld [vmem:[%s3 + $0xd8] sm:$0xff]
      %v564 = vld [vmem:[%s3 + $0xe0] sm:$0xff]
      %v565 = vld [vmem:[%s3 + $0xe8] sm:$0xff]
      %v566 = vld [vmem:[%s3 + $0xf0] sm:$0xff]
      %v567 = vld [vmem:[%s3 + $0xf8] sm:$0xff]
      %v568 = vld [vmem:[%s470] sm:$0xff]
      %v569 = vld [vmem:[%s470 + $0x8] sm:$0xff]
      %v570 = vld [vmem:[%s470 + $0x10] sm:$0xff]
      %v571 = vld [vmem:[%s470 + $0x18] sm:$0xff]
      %v572 = vld [vmem:[%s470 + $0x20] sm:$0xff]
      %v573 = vld [vmem:[%s470 + $0x28] sm:$0xff]
      %v574 = vld [vmem:[%s470 + $0x30] sm:$0xff]
      %v575 = vld [vmem:[%s470 + $0x38] sm:$0xff]
      %v576 = vld [vmem:[%s470 + $0x40] sm:$0xff]
      %v577 = vld [vmem:[%s470 + $0x48] sm:$0xff]
      %v578 = vld [vmem:[%s470 + $0x50] sm:$0xff]
      %v579 = vld [vmem:[%s470 + $0x58] sm:$0xff]
      %v580 = vld [vmem:[%s470 + $0x60] sm:$0xff]
      %v581 = vld [vmem:[%s470 + $0x68] sm:$0xff]
      %v582 = vld [vmem:[%s470 + $0x70] sm:$0xff]
      %v583 = vld [vmem:[%s470 + $0x78] sm:$0xff]
      %v584 = vld [vmem:[%s470 + $0x80] sm:$0xff]
      %v585 = vld [vmem:[%s470 + $0x88] sm:$0xff]
      %v586 = vld [vmem:[%s470 + $0x90] sm:$0xff]
      %v587 = vld [vmem:[%s470 + $0x98] sm:$0xff]
      %v588 = vld [vmem:[%s470 + $0xa0] sm:$0xff]
      %v589 = vld [vmem:[%s470 + $0xa8] sm:$0xff]
      %v590 = vld [vmem:[%s470 + $0xb0] sm:$0xff]
      %v591 = vld [vmem:[%s470 + $0xb8] sm:$0xff]
      %v592 = vld [vmem:[%s470 + $0xc0] sm:$0xff]
      %v593 = vld [vmem:[%s470 + $0xc8] sm:$0xff]
      %v594 = vld [vmem:[%s470 + $0xd0] sm:$0xff]
      %v595 = vld [vmem:[%s470 + $0xd8] sm:$0xff]
      %v596 = vld [vmem:[%s470 + $0xe0] sm:$0xff]
      %v597 = vld [vmem:[%s470 + $0xe8] sm:$0xff]
      %v598 = vld [vmem:[%s470 + $0xf0] sm:$0xff]
      %v599 = vld [vmem:[%s470 + $0xf8] sm:$0xff]
      %v600 = vpack.c.bf16 %v569, %v568
      %v601 = vpack.c.bf16 %v571, %v570
      %v602 = vpack.c.bf16 %v573, %v572
      %v603 = vpack.c.bf16 %v575, %v574
      %v604 = vpack.c.bf16 %v577, %v576
      %v605 = vpack.c.bf16 %v579, %v578
      %v606 = vpack.c.bf16 %v581, %v580
      %v607 = vpack.c.bf16 %v583, %v582
      %v608 = vpack.c.bf16 %v585, %v584
      %v609 = vpack.c.bf16 %v587, %v586
      %v610 = vpack.c.bf16 %v589, %v588
      %v611 = vpack.c.bf16 %v591, %v590
      %v612 = vpack.c.bf16 %v593, %v592
      %v613 = vpack.c.bf16 %v595, %v594
      %v614 = vpack.c.bf16 %v597, %v596
      %v615 = vpack.c.bf16 %v599, %v598
      %v617 = vlaneseq
      %v618 = vshrl.u32 %v617, 7
      %v619 = vsub.s32 0, %v618
      %v620 = vrot.slane %v498, %v619
      %vm622 = vcmask 31744
      %v624 = vsel %vm622, %v600, 0
      %v627 = vsel %vm622, %v601, 0
      %v630 = vsel %vm622, %v602, 0
      %v633 = vsel %vm622, %v603, 0
      %v636 = vsel %vm622, %v604, 0
      %v639 = vsel %vm622, %v605, 0
      %v642 = vsel %vm622, %v606, 0
      %v645 = vsel %vm622, %v607, 0
      %v648 = vsel %vm622, %v608, 0
      %v651 = vsel %vm622, %v609, 0
      %v654 = vsel %vm622, %v610, 0
      %v657 = vsel %vm622, %v611, 0
      %v660 = vsel %vm622, %v612, 0
      %v663 = vsel %vm622, %v613, 0
      %v666 = vsel %vm622, %v614, 0
      %v669 = vsel %vm622, %v615, 0
      %vm671 = vcmask 1041408
      %v673 = vsel %vm671, %v493, 0
      %675 = vmatprep.subr.bf16.mxu0 0
      %676 = vmatpush1.bf16.msra.mxu0 %v673
      %677 = vmatprep.subr.bf16.mxu0 0
      %678 = vmatpush1.bf16.msra.mxu0 0
      %679 = vmatprep.subr.bf16.mxu0 0
      %680 = vmatpush1.bf16.msra.mxu0 0
      %681 = vmatprep.subr.bf16.mxu0 0
      %682 = vmatpush1.bf16.msra.mxu0 0
      %683 = vmatprep.subr.bf16.mxu0 0
      %684 = vmatpush1.bf16.msra.mxu0 0
      %685 = vmatprep.subr.bf16.mxu0 0
      %686 = vmatpush1.bf16.msra.mxu0 0
      %687 = vmatprep.subr.bf16.mxu0 0
      %688 = vmatpush1.bf16.msra.mxu0 0
      %689 = vmatprep.subr.bf16.mxu0 0
      %690 = vmatpush1.bf16.msra.mxu0 0
      %691 = vmatprep.subr.bf16.mxu0 0
      %692 = vmatpush1.bf16.msra.mxu0 0
      %693 = vmatprep.subr.bf16.mxu0 0
      %694 = vmatpush1.bf16.msra.mxu0 0
      %695 = vmatprep.subr.bf16.mxu0 0
      %696 = vmatpush1.bf16.msra.mxu0 0
      %697 = vmatprep.subr.bf16.mxu0 0
      %698 = vmatpush1.bf16.msra.mxu0 0
      %699 = vmatprep.subr.bf16.mxu0 0
      %700 = vmatpush1.bf16.msra.mxu0 0
      %701 = vmatprep.subr.bf16.mxu0 0
      %702 = vmatpush1.bf16.msra.mxu0 0
      %703 = vmatprep.subr.bf16.mxu0 0
      %704 = vmatpush1.bf16.msra.mxu0 0
      %705 = vmatprep.subr.bf16.mxu0 0
      %706 = vmatpush1.bf16.msra.mxu0 0
      %707 = vmatprep.mubr.bf16.mxu0 0
      %708 = vmatmul.mubr.bf16.gmra.mrb[0].mxu0 %v624
      %v709 = vpop.f32.mrb[0].mxu0
      %v710 = vadd.f32 %v620, %v709
      %v711 = vpop.f32.mrb[0].mxu0
      %v712 = vpop.f32.mrb[0].mxu0
      %v713 = vadd.f32 %v620, %v712
      %v714 = vpop.f32.mrb[0].mxu0
      %715 = vmatprep.mubr.bf16.mxu0 0
      %716 = vmatmul.mubr.bf16.gmra.mrb[0].mxu0 %v627
      %v717 = vpop.f32.mrb[0].mxu0
      %v718 = vadd.f32 %v620, %v717
      %v719 = vpop.f32.mrb[0].mxu0
      %v720 = vpop.f32.mrb[0].mxu0
      %v721 = vadd.f32 %v620, %v720
      %v722 = vpop.f32.mrb[0].mxu0
      %723 = vmatprep.mubr.bf16.mxu0 0
      %724 = vmatmul.mubr.bf16.gmra.mrb[0].mxu0 %v630
      %v725 = vpop.f32.mrb[0].mxu0
      %v726 = vadd.f32 %v620, %v725
      %v727 = vpop.f32.mrb[0].mxu0
      %v728 = vpop.f32.mrb[0].mxu0
      %v729 = vadd.f32 %v620, %v728
      %v730 = vpop.f32.mrb[0].mxu0
      %731 = vmatprep.mubr.bf16.mxu0 0
      %732 = vmatmul.mubr.bf16.gmra.mrb[0].mxu0 %v633
      %v733 = vpop.f32.mrb[0].mxu0
      %v734 = vadd.f32 %v620, %v733
      %v735 = vpop.f32.mrb[0].mxu0
      %v736 = vpop.f32.mrb[0].mxu0
      %v737 = vadd.f32 %v620, %v736
      %v738 = vpop.f32.mrb[0].mxu0
      %739 = vmatprep.mubr.bf16.mxu0 0
      %740 = vmatmul.mubr.bf16.gmra.mrb[0].mxu0 %v636
      %v741 = vpop.f32.mrb[0].mxu0
      %v742 = vadd.f32 %v620, %v741
      %v743 = vpop.f32.mrb[0].mxu0
      %v744 = vpop.f32.mrb[0].mxu0
      %v745 = vadd.f32 %v620, %v744
      %v746 = vpop.f32.mrb[0].mxu0
      %747 = vmatprep.mubr.bf16.mxu0 0
      %748 = vmatmul.mubr.bf16.gmra.mrb[0].mxu0 %v639
      %v749 = vpop.f32.mrb[0].mxu0
      %v750 = vadd.f32 %v620, %v749
      %v751 = vpop.f32.mrb[0].mxu0
      %v752 = vpop.f32.mrb[0].mxu0
      %v753 = vadd.f32 %v620, %v752
      %v754 = vpop.f32.mrb[0].mxu0
      %755 = vmatprep.mubr.bf16.mxu0 0
      %756 = vmatmul.mubr.bf16.gmra.mrb[0].mxu0 %v642
      %v757 = vpop.f32.mrb[0].mxu0
      %v758 = vadd.f32 %v620, %v757
      %v759 = vpop.f32.mrb[0].mxu0
      %v760 = vpop.f32.mrb[0].mxu0
      %v761 = vadd.f32 %v620, %v760
      %v762 = vpop.f32.mrb[0].mxu0
      %763 = vmatprep.mubr.bf16.mxu0 0
      %764 = vmatmul.mubr.bf16.gmra.mrb[0].mxu0 %v645
      %v765 = vpop.f32.mrb[0].mxu0
      %v766 = vadd.f32 %v620, %v765
      %v767 = vpop.f32.mrb[0].mxu0
      %v768 = vpop.f32.mrb[0].mxu0
      %v769 = vadd.f32 %v620, %v768
      %v770 = vpop.f32.mrb[0].mxu0
      %771 = vmatprep.mubr.bf16.mxu0 0
      %772 = vmatmul.mubr.bf16.gmra.mrb[0].mxu0 %v648
      %v773 = vpop.f32.mrb[0].mxu0
      %v774 = vadd.f32 %v620, %v773
      %v775 = vpop.f32.mrb[0].mxu0
      %v776 = vpop.f32.mrb[0].mxu0
      %v777 = vadd.f32 %v620, %v776
      %v778 = vpop.f32.mrb[0].mxu0
      %779 = vmatprep.mubr.bf16.mxu0 0
      %780 = vmatmul.mubr.bf16.gmra.mrb[0].mxu0 %v651
      %v781 = vpop.f32.mrb[0].mxu0
      %v782 = vadd.f32 %v620, %v781
      %v783 = vpop.f32.mrb[0].mxu0
      %v784 = vpop.f32.mrb[0].mxu0
      %v785 = vadd.f32 %v620, %v784
      %v786 = vpop.f32.mrb[0].mxu0
      %787 = vmatprep.mubr.bf16.mxu0 0
      %788 = vmatmul.mubr.bf16.gmra.mrb[0].mxu0 %v654
      %v789 = vpop.f32.mrb[0].mxu0
      %v790 = vadd.f32 %v620, %v789
      %v791 = vpop.f32.mrb[0].mxu0
      %v792 = vpop.f32.mrb[0].mxu0
      %v793 = vadd.f32 %v620, %v792
      %v794 = vpop.f32.mrb[0].mxu0
      %795 = vmatprep.mubr.bf16.mxu0 0
      %796 = vmatmul.mubr.bf16.gmra.mrb[0].mxu0 %v657
      %v797 = vpop.f32.mrb[0].mxu0
      %v798 = vadd.f32 %v620, %v797
      %v799 = vpop.f32.mrb[0].mxu0
      %v800 = vpop.f32.mrb[0].mxu0
      %v801 = vadd.f32 %v620, %v800
      %v802 = vpop.f32.mrb[0].mxu0
      %803 = vmatprep.mubr.bf16.mxu0 0
      %804 = vmatmul.mubr.bf16.gmra.mrb[0].mxu0 %v660
      %v805 = vpop.f32.mrb[0].mxu0
      %v806 = vadd.f32 %v620, %v805
      %v807 = vpop.f32.mrb[0].mxu0
      %v808 = vpop.f32.mrb[0].mxu0
      %v809 = vadd.f32 %v620, %v808
      %v810 = vpop.f32.mrb[0].mxu0
      %811 = vmatprep.mubr.bf16.mxu0 0
      %812 = vmatmul.mubr.bf16.gmra.mrb[0].mxu0 %v663
      %v813 = vpop.f32.mrb[0].mxu0
      %v814 = vadd.f32 %v620, %v813
      %v815 = vpop.f32.mrb[0].mxu0
      %v816 = vpop.f32.mrb[0].mxu0
      %v817 = vadd.f32 %v620, %v816
      %v818 = vpop.f32.mrb[0].mxu0
      %819 = vmatprep.mubr.bf16.mxu0 0
      %820 = vmatmul.mubr.bf16.gmra.mrb[0].mxu0 %v666
      %v821 = vpop.f32.mrb[0].mxu0
      %v822 = vadd.f32 %v620, %v821
      %v823 = vpop.f32.mrb[0].mxu0
      %v824 = vpop.f32.mrb[0].mxu0
      %v825 = vadd.f32 %v620, %v824
      %v826 = vpop.f32.mrb[0].mxu0
      %827 = vmatprep.mubr.bf16.mxu0 0
      %828 = vmatmul.mubr.bf16.gmra.mrb[0].mxu0 %v669
      %v829 = vpop.f32.mrb[0].mxu0
      %v830 = vadd.f32 %v620, %v829
      %v831 = vpop.f32.mrb[0].mxu0
      %v832 = vpop.f32.mrb[0].mxu0
      %v833 = vadd.f32 %v620, %v832
      %v834 = vpop.f32.mrb[0].mxu0
      %835 = vdwg.mxu0
      %v836 = vld [vmem:[%s480] sm:$0xff]
      %v837 = vld [vmem:[%s480 + $0x8] sm:$0xff]
      %v838 = vld [vmem:[%s480 + $0x10] sm:$0xff]
      %v839 = vld [vmem:[%s480 + $0x18] sm:$0xff]
      %v840 = vpack.c.bf16 %v837, %v836
      %v841 = vpack.c.bf16 %v839, %v838
      %v843 = vsel %vm622, %v840, 0
      %v846 = vsel %vm622, %v841, 0
      %848 = vmatprep.subr.bf16.mxu0 0
      %849 = vmatpush1.bf16.msra.mxu0 %v673
      %850 = vmatprep.subr.bf16.mxu0 0
      %851 = vmatpush1.bf16.msra.mxu0 0
      %852 = vmatprep.subr.bf16.mxu0 0
      %853 = vmatpush1.bf16.msra.mxu0 0
      %854 = vmatprep.subr.bf16.mxu0 0
      %855 = vmatpush1.bf16.msra.mxu0 0
      %856 = vmatprep.subr.bf16.mxu0 0
      %857 = vmatpush1.bf16.msra.mxu0 0
      %858 = vmatprep.subr.bf16.mxu0 0
      %859 = vmatpush1.bf16.msra.mxu0 0
      %860 = vmatprep.subr.bf16.mxu0 0
      %861 = vmatpush1.bf16.msra.mxu0 0
      %862 = vmatprep.subr.bf16.mxu0 0
      %863 = vmatpush1.bf16.msra.mxu0 0
      %864 = vmatprep.subr.bf16.mxu0 0
      %865 = vmatpush1.bf16.msra.mxu0 0
      %866 = vmatprep.subr.bf16.mxu0 0
      %867 = vmatpush1.bf16.msra.mxu0 0
      %868 = vmatprep.subr.bf16.mxu0 0
      %869 = vmatpush1.bf16.msra.mxu0 0
      %870 = vmatprep.subr.bf16.mxu0 0
      %871 = vmatpush1.bf16.msra.mxu0 0
      %872 = vmatprep.subr.bf16.mxu0 0
      %873 = vmatpush1.bf16.msra.mxu0 0
      %874 = vmatprep.subr.bf16.mxu0 0
      %875 = vmatpush1.bf16.msra.mxu0 0
      %876 = vmatprep.subr.bf16.mxu0 0
      %877 = vmatpush1.bf16.msra.mxu0 0
      %878 = vmatprep.subr.bf16.mxu0 0
      %879 = vmatpush1.bf16.msra.mxu0 0
      %880 = vmatprep.mubr.bf16.mxu0 0
      %881 = vmatmul.mubr.bf16.gmra.mrb[0].mxu0 %v843
      %v882 = vpop.f32.mrb[0].mxu0
      %v883 = vadd.f32 0.0, %v882
      %v884 = vpop.f32.mrb[0].mxu0
      %v885 = vpop.f32.mrb[0].mxu0
      %v886 = vadd.f32 0.0, %v885
      %v887 = vpop.f32.mrb[0].mxu0
      %888 = vmatprep.mubr.bf16.mxu0 0
      %889 = vmatmul.mubr.bf16.gmra.mrb[0].mxu0 %v846
      %v890 = vpop.f32.mrb[0].mxu0
      %v891 = vadd.f32 0.0, %v890
      %v892 = vpop.f32.mrb[0].mxu0
      %v893 = vpop.f32.mrb[0].mxu0
      %v894 = vadd.f32 0.0, %v893
      %v895 = vpop.f32.mrb[0].mxu0
      %896 = vdwg.mxu0
      %v897 = vadd.f32 %v883, %v620
      %v898 = vadd.f32 %v886, %v620
      %p899 = scmp.gt.s32.totalorder %s28, 0
      %s900 = scalar_select %p899, 1, 0
      %s901 = scvt.s32.f32 %s900
      %v902 = vstv %s901
      %v903 = vmul.f32 %v897, %v902
      %v904 = vmul.f32 %v898, %v902
      %v905 = vadd.f32 %v891, %v620
      %v906 = vadd.f32 %v894, %v620
      %s907 = sadd.s32 %s28, 1
      %p908 = scmp.lt.s32.totalorder %s907, 1
      %s909 = scalar_select %p908, 1, 0
      %s910 = scvt.s32.f32 %s909
      %v911 = vstv %s910
      %v912 = vmul.f32 %v905, %v911
      %v913 = vmul.f32 %v906, %v911
      %v914 = vrot.slane %v710, 7
      %v915 = vrot.slane %v713, 7
      %v916 = vrot.slane %v718, 7
      %v917 = vrot.slane %v721, 7
      %v918 = vrot.slane %v726, 7
      %v919 = vrot.slane %v729, 7
      %v920 = vrot.slane %v734, 7
      %v921 = vrot.slane %v737, 7
      %v922 = vrot.slane %v742, 7
      %v923 = vrot.slane %v745, 7
      %v924 = vrot.slane %v750, 7
      %v925 = vrot.slane %v753, 7
      %v926 = vrot.slane %v758, 7
      %v927 = vrot.slane %v761, 7
      %v928 = vrot.slane %v766, 7
      %v929 = vrot.slane %v769, 7
      %v930 = vrot.slane %v774, 7
      %v931 = vrot.slane %v777, 7
      %v932 = vrot.slane %v782, 7
      %v933 = vrot.slane %v785, 7
      %v934 = vrot.slane %v790, 7
      %v935 = vrot.slane %v793, 7
      %v936 = vrot.slane %v798, 7
      %v937 = vrot.slane %v801, 7
      %v938 = vrot.slane %v806, 7
      %v939 = vrot.slane %v809, 7
      %v940 = vrot.slane %v814, 7
      %v941 = vrot.slane %v817, 7
      %v942 = vrot.slane %v822, 7
      %v943 = vrot.slane %v825, 7
      %v944 = vrot.slane %v830, 7
      %v945 = vrot.slane %v833, 7
      %v946 = vlaneseq
      %v947 = vshrl.u32 %v946, 7
      %vm948 = vcmp.lt.s32.totalorder %v947, 1
      %v949 = vsel %vm948, %v944, %v945
      %v950 = vsel %vm948, %v943, %v944
      %v951 = vsel %vm948, %v942, %v943
      %v952 = vsel %vm948, %v941, %v942
      %v953 = vsel %vm948, %v940, %v941
      %v954 = vsel %vm948, %v939, %v940
      %v955 = vsel %vm948, %v938, %v939
      %v956 = vsel %vm948, %v937, %v938
      %v957 = vsel %vm948, %v936, %v937
      %v958 = vsel %vm948, %v935, %v936
      %v959 = vsel %vm948, %v934, %v935
      %v960 = vsel %vm948, %v933, %v934
      %v961 = vsel %vm948, %v932, %v933
      %v962 = vsel %vm948, %v931, %v932
      %v963 = vsel %vm948, %v930, %v931
      %v964 = vsel %vm948, %v929, %v930
      %v965 = vsel %vm948, %v928, %v929
      %v966 = vsel %vm948, %v927, %v928
      %v967 = vsel %vm948, %v926, %v927
      %v968 = vsel %vm948, %v925, %v926
      %v969 = vsel %vm948, %v924, %v925
      %v970 = vsel %vm948, %v923, %v924
      %v971 = vsel %vm948, %v922, %v923
      %v972 = vsel %vm948, %v921, %v922
      %v973 = vsel %vm948, %v920, %v921
      %v974 = vsel %vm948, %v919, %v920
      %v975 = vsel %vm948, %v918, %v919
      %v976 = vsel %vm948, %v917, %v918
      %v977 = vsel %vm948, %v916, %v917
      %v978 = vsel %vm948, %v915, %v916
      %v979 = vsel %vm948, %v914, %v915
      %v980 = vsel %vm948, %v945, %v914
      %982 = vset.pattern.permute.xlu0 0
      %983 = vperm.xlu0 %982, %v504
      %v984 = vpop.permute.xlu0 %983
      %987 = vset.pattern.permute.xlu0 0
      %988 = vperm.xlu0 %987, %v505
      %v989 = vpop.permute.xlu0 %988
      %992 = vset.pattern.permute.xlu0 0
      %993 = vperm.xlu0 %992, %v506
      %v994 = vpop.permute.xlu0 %993
      %997 = vset.pattern.permute.xlu0 0
      %998 = vperm.xlu0 %997, %v507
      %v999 = vpop.permute.xlu0 %998
      %1002 = vset.pattern.permute.xlu0 0
      %1003 = vperm.xlu0 %1002, %v508
      %v1004 = vpop.permute.xlu0 %1003
      %1007 = vset.pattern.permute.xlu0 0
      %1008 = vperm.xlu0 %1007, %v509
      %v1009 = vpop.permute.xlu0 %1008
      %1012 = vset.pattern.permute.xlu0 0
      %1013 = vperm.xlu0 %1012, %v510
      %v1014 = vpop.permute.xlu0 %1013
      %1017 = vset.pattern.permute.xlu0 0
      %1018 = vperm.xlu0 %1017, %v511
      %v1019 = vpop.permute.xlu0 %1018
      %1022 = vset.pattern.permute.xlu0 0
      %1023 = vperm.xlu0 %1022, %v512
      %v1024 = vpop.permute.xlu0 %1023
      %1027 = vset.pattern.permute.xlu0 0
      %1028 = vperm.xlu0 %1027, %v513
      %v1029 = vpop.permute.xlu0 %1028
      %1032 = vset.pattern.permute.xlu0 0
      %1033 = vperm.xlu0 %1032, %v514
      %v1034 = vpop.permute.xlu0 %1033
      %1037 = vset.pattern.permute.xlu0 0
      %1038 = vperm.xlu0 %1037, %v515
      %v1039 = vpop.permute.xlu0 %1038
      %1042 = vset.pattern.permute.xlu0 0
      %1043 = vperm.xlu0 %1042, %v516
      %v1044 = vpop.permute.xlu0 %1043
      %1047 = vset.pattern.permute.xlu0 0
      %1048 = vperm.xlu0 %1047, %v517
      %v1049 = vpop.permute.xlu0 %1048
      %1052 = vset.pattern.permute.xlu0 0
      %1053 = vperm.xlu0 %1052, %v518
      %v1054 = vpop.permute.xlu0 %1053
      %1057 = vset.pattern.permute.xlu0 0
      %1058 = vperm.xlu0 %1057, %v519
      %v1059 = vpop.permute.xlu0 %1058
      %1062 = vset.pattern.permute.xlu0 0
      %1063 = vperm.xlu0 %1062, %v520
      %v1064 = vpop.permute.xlu0 %1063
      %1067 = vset.pattern.permute.xlu0 0
      %1068 = vperm.xlu0 %1067, %v521
      %v1069 = vpop.permute.xlu0 %1068
      %1072 = vset.pattern.permute.xlu0 0
      %1073 = vperm.xlu0 %1072, %v522
      %v1074 = vpop.permute.xlu0 %1073
      %1077 = vset.pattern.permute.xlu0 0
      %1078 = vperm.xlu0 %1077, %v523
      %v1079 = vpop.permute.xlu0 %1078
      %1082 = vset.pattern.permute.xlu0 0
      %1083 = vperm.xlu0 %1082, %v524
      %v1084 = vpop.permute.xlu0 %1083
      %1087 = vset.pattern.permute.xlu0 0
      %1088 = vperm.xlu0 %1087, %v525
      %v1089 = vpop.permute.xlu0 %1088
      %1092 = vset.pattern.permute.xlu0 0
      %1093 = vperm.xlu0 %1092, %v526
      %v1094 = vpop.permute.xlu0 %1093
      %1097 = vset.pattern.permute.xlu0 0
      %1098 = vperm.xlu0 %1097, %v527
      %v1099 = vpop.permute.xlu0 %1098
      %1102 = vset.pattern.permute.xlu0 0
      %1103 = vperm.xlu0 %1102, %v528
      %v1104 = vpop.permute.xlu0 %1103
      %1107 = vset.pattern.permute.xlu0 0
      %1108 = vperm.xlu0 %1107, %v529
      %v1109 = vpop.permute.xlu0 %1108
      %1112 = vset.pattern.permute.xlu0 0
      %1113 = vperm.xlu0 %1112, %v530
      %v1114 = vpop.permute.xlu0 %1113
      %1117 = vset.pattern.permute.xlu0 0
      %1118 = vperm.xlu0 %1117, %v531
      %v1119 = vpop.permute.xlu0 %1118
      %1122 = vset.pattern.permute.xlu0 0
      %1123 = vperm.xlu0 %1122, %v532
      %v1124 = vpop.permute.xlu0 %1123
      %1127 = vset.pattern.permute.xlu0 0
      %1128 = vperm.xlu0 %1127, %v533
      %v1129 = vpop.permute.xlu0 %1128
      %1132 = vset.pattern.permute.xlu0 0
      %1133 = vperm.xlu0 %1132, %v534
      %v1134 = vpop.permute.xlu0 %1133
      %1137 = vset.pattern.permute.xlu0 0
      %1138 = vperm.xlu0 %1137, %v535
      %v1139 = vpop.permute.xlu0 %1138
      %v1141 = vmul.f32 %v980, %v984
      %v1142 = vmul.f32 %v979, %v989
      %v1143 = vmul.f32 %v978, %v994
      %v1144 = vmul.f32 %v977, %v999
      %v1145 = vmul.f32 %v976, %v1004
      %v1146 = vmul.f32 %v975, %v1009
      %v1147 = vmul.f32 %v974, %v1014
      %v1148 = vmul.f32 %v973, %v1019
      %v1149 = vmul.f32 %v972, %v1024
      %v1150 = vmul.f32 %v971, %v1029
      %v1151 = vmul.f32 %v970, %v1034
      %v1152 = vmul.f32 %v969, %v1039
      %v1153 = vmul.f32 %v968, %v1044
      %v1154 = vmul.f32 %v967, %v1049
      %v1155 = vmul.f32 %v966, %v1054
      %v1156 = vmul.f32 %v965, %v1059
      %v1157 = vmul.f32 %v964, %v1064
      %v1158 = vmul.f32 %v963, %v1069
      %v1159 = vmul.f32 %v962, %v1074
      %v1160 = vmul.f32 %v961, %v1079
      %v1161 = vmul.f32 %v960, %v1084
      %v1162 = vmul.f32 %v959, %v1089
      %v1163 = vmul.f32 %v958, %v1094
      %v1164 = vmul.f32 %v957, %v1099
      %v1165 = vmul.f32 %v956, %v1104
      %v1166 = vmul.f32 %v955, %v1109
      %v1167 = vmul.f32 %v954, %v1114
      %v1168 = vmul.f32 %v953, %v1119
      %v1169 = vmul.f32 %v952, %v1124
      %v1170 = vmul.f32 %v951, %v1129
      %v1171 = vmul.f32 %v950, %v1134
      %v1172 = vmul.f32 %v949, %v1139
      %v1173 = vrot.slane %v710, 1
      %v1174 = vrot.slane %v713, 1
      %v1175 = vrot.slane %v718, 1
      %v1176 = vrot.slane %v721, 1
      %v1177 = vrot.slane %v726, 1
      %v1178 = vrot.slane %v729, 1
      %v1179 = vrot.slane %v734, 1
      %v1180 = vrot.slane %v737, 1
      %v1181 = vrot.slane %v742, 1
      %v1182 = vrot.slane %v745, 1
      %v1183 = vrot.slane %v750, 1
      %v1184 = vrot.slane %v753, 1
      %v1185 = vrot.slane %v758, 1
      %v1186 = vrot.slane %v761, 1
      %v1187 = vrot.slane %v766, 1
      %v1188 = vrot.slane %v769, 1
      %v1189 = vrot.slane %v774, 1
      %v1190 = vrot.slane %v777, 1
      %v1191 = vrot.slane %v782, 1
      %v1192 = vrot.slane %v785, 1
      %v1193 = vrot.slane %v790, 1
      %v1194 = vrot.slane %v793, 1
      %v1195 = vrot.slane %v798, 1
      %v1196 = vrot.slane %v801, 1
      %v1197 = vrot.slane %v806, 1
      %v1198 = vrot.slane %v809, 1
      %v1199 = vrot.slane %v814, 1
      %v1200 = vrot.slane %v817, 1
      %v1201 = vrot.slane %v822, 1
      %v1202 = vrot.slane %v825, 1
      %v1203 = vrot.slane %v830, 1
      %v1204 = vrot.slane %v833, 1
      %vm1205 = vcmp.lt.s32.totalorder %v947, 7
      %v1206 = vsel %vm1205, %v1203, %v1204
      %v1207 = vsel %vm1205, %v1202, %v1203
      %v1208 = vsel %vm1205, %v1201, %v1202
      %v1209 = vsel %vm1205, %v1200, %v1201
      %v1210 = vsel %vm1205, %v1199, %v1200
      %v1211 = vsel %vm1205, %v1198, %v1199
      %v1212 = vsel %vm1205, %v1197, %v1198
      %v1213 = vsel %vm1205, %v1196, %v1197
      %v1214 = vsel %vm1205, %v1195, %v1196
      %v1215 = vsel %vm1205, %v1194, %v1195
      %v1216 = vsel %vm1205, %v1193, %v1194
      %v1217 = vsel %vm1205, %v1192, %v1193
      %v1218 = vsel %vm1205, %v1191, %v1192
      %v1219 = vsel %vm1205, %v1190, %v1191
      %v1220 = vsel %vm1205, %v1189, %v1190
      %v1221 = vsel %vm1205, %v1188, %v1189
      %v1222 = vsel %vm1205, %v1187, %v1188
      %v1223 = vsel %vm1205, %v1186, %v1187
      %v1224 = vsel %vm1205, %v1185, %v1186
      %v1225 = vsel %vm1205, %v1184, %v1185
      %v1226 = vsel %vm1205, %v1183, %v1184
      %v1227 = vsel %vm1205, %v1182, %v1183
      %v1228 = vsel %vm1205, %v1181, %v1182
      %v1229 = vsel %vm1205, %v1180, %v1181
      %v1230 = vsel %vm1205, %v1179, %v1180
      %v1231 = vsel %vm1205, %v1178, %v1179
      %v1232 = vsel %vm1205, %v1177, %v1178
      %v1233 = vsel %vm1205, %v1176, %v1177
      %v1234 = vsel %vm1205, %v1175, %v1176
      %v1235 = vsel %vm1205, %v1174, %v1175
      %v1236 = vsel %vm1205, %v1173, %v1174
      %v1237 = vsel %vm1205, %v1204, %v1173
      %1239 = vset.pattern.permute.xlu0 0
      %1240 = vperm.xlu0 %1239, %v536
      %v1241 = vpop.permute.xlu0 %1240
      %1244 = vset.pattern.permute.xlu0 0
      %1245 = vperm.xlu0 %1244, %v537
      %v1246 = vpop.permute.xlu0 %1245
      %1249 = vset.pattern.permute.xlu0 0
      %1250 = vperm.xlu0 %1249, %v538
      %v1251 = vpop.permute.xlu0 %1250
      %1254 = vset.pattern.permute.xlu0 0
      %1255 = vperm.xlu0 %1254, %v539
      %v1256 = vpop.permute.xlu0 %1255
      %1259 = vset.pattern.permute.xlu0 0
      %1260 = vperm.xlu0 %1259, %v540
      %v1261 = vpop.permute.xlu0 %1260
      %1264 = vset.pattern.permute.xlu0 0
      %1265 = vperm.xlu0 %1264, %v541
      %v1266 = vpop.permute.xlu0 %1265
      %1269 = vset.pattern.permute.xlu0 0
      %1270 = vperm.xlu0 %1269, %v542
      %v1271 = vpop.permute.xlu0 %1270
      %1274 = vset.pattern.permute.xlu0 0
      %1275 = vperm.xlu0 %1274, %v543
      %v1276 = vpop.permute.xlu0 %1275
      %1279 = vset.pattern.permute.xlu0 0
      %1280 = vperm.xlu0 %1279, %v544
      %v1281 = vpop.permute.xlu0 %1280
      %1284 = vset.pattern.permute.xlu0 0
      %1285 = vperm.xlu0 %1284, %v545
      %v1286 = vpop.permute.xlu0 %1285
      %1289 = vset.pattern.permute.xlu0 0
      %1290 = vperm.xlu0 %1289, %v546
      %v1291 = vpop.permute.xlu0 %1290
      %1294 = vset.pattern.permute.xlu0 0
      %1295 = vperm.xlu0 %1294, %v547
      %v1296 = vpop.permute.xlu0 %1295
      %1299 = vset.pattern.permute.xlu0 0
      %1300 = vperm.xlu0 %1299, %v548
      %v1301 = vpop.permute.xlu0 %1300
      %1304 = vset.pattern.permute.xlu0 0
      %1305 = vperm.xlu0 %1304, %v549
      %v1306 = vpop.permute.xlu0 %1305
      %1309 = vset.pattern.permute.xlu0 0
      %1310 = vperm.xlu0 %1309, %v550
      %v1311 = vpop.permute.xlu0 %1310
      %1314 = vset.pattern.permute.xlu0 0
      %1315 = vperm.xlu0 %1314, %v551
      %v1316 = vpop.permute.xlu0 %1315
      %1319 = vset.pattern.permute.xlu0 0
      %1320 = vperm.xlu0 %1319, %v552
      %v1321 = vpop.permute.xlu0 %1320
      %1324 = vset.pattern.permute.xlu0 0
      %1325 = vperm.xlu0 %1324, %v553
      %v1326 = vpop.permute.xlu0 %1325
      %1329 = vset.pattern.permute.xlu0 0
      %1330 = vperm.xlu0 %1329, %v554
      %v1331 = vpop.permute.xlu0 %1330
      %1334 = vset.pattern.permute.xlu0 0
      %1335 = vperm.xlu0 %1334, %v555
      %v1336 = vpop.permute.xlu0 %1335
      %1339 = vset.pattern.permute.xlu0 0
      %1340 = vperm.xlu0 %1339, %v556
      %v1341 = vpop.permute.xlu0 %1340
      %1344 = vset.pattern.permute.xlu0 0
      %1345 = vperm.xlu0 %1344, %v557
      %v1346 = vpop.permute.xlu0 %1345
      %1349 = vset.pattern.permute.xlu0 0
      %1350 = vperm.xlu0 %1349, %v558
      %v1351 = vpop.permute.xlu0 %1350
      %1354 = vset.pattern.permute.xlu0 0
      %1355 = vperm.xlu0 %1354, %v559
      %v1356 = vpop.permute.xlu0 %1355
      %1359 = vset.pattern.permute.xlu0 0
      %1360 = vperm.xlu0 %1359, %v560
      %v1361 = vpop.permute.xlu0 %1360
      %1364 = vset.pattern.permute.xlu0 0
      %1365 = vperm.xlu0 %1364, %v561
      %v1366 = vpop.permute.xlu0 %1365
      %1369 = vset.pattern.permute.xlu0 0
      %1370 = vperm.xlu0 %1369, %v562
      %v1371 = vpop.permute.xlu0 %1370
      %1374 = vset.pattern.permute.xlu0 0
      %1375 = vperm.xlu0 %1374, %v563
      %v1376 = vpop.permute.xlu0 %1375
      %1379 = vset.pattern.permute.xlu0 0
      %1380 = vperm.xlu0 %1379, %v564
      %v1381 = vpop.permute.xlu0 %1380
      %1384 = vset.pattern.permute.xlu0 0
      %1385 = vperm.xlu0 %1384, %v565
      %v1386 = vpop.permute.xlu0 %1385
      %1389 = vset.pattern.permute.xlu0 0
      %1390 = vperm.xlu0 %1389, %v566
      %v1391 = vpop.permute.xlu0 %1390
      %1394 = vset.pattern.permute.xlu0 0
      %1395 = vperm.xlu0 %1394, %v567
      %v1396 = vpop.permute.xlu0 %1395
      %v1398 = vmul.f32 %v1236, %v1241
      %v1399 = vmul.f32 %v1235, %v1246
      %v1400 = vmul.f32 %v1234, %v1251
      %v1401 = vmul.f32 %v1233, %v1256
      %v1402 = vmul.f32 %v1232, %v1261
      %v1403 = vmul.f32 %v1231, %v1266
      %v1404 = vmul.f32 %v1230, %v1271
      %v1405 = vmul.f32 %v1229, %v1276
      %v1406 = vmul.f32 %v1228, %v1281
      %v1407 = vmul.f32 %v1227, %v1286
      %v1408 = vmul.f32 %v1226, %v1291
      %v1409 = vmul.f32 %v1225, %v1296
      %v1410 = vmul.f32 %v1224, %v1301
      %v1411 = vmul.f32 %v1223, %v1306
      %v1412 = vmul.f32 %v1222, %v1311
      %v1413 = vmul.f32 %v1221, %v1316
      %v1414 = vmul.f32 %v1220, %v1321
      %v1415 = vmul.f32 %v1219, %v1326
      %v1416 = vmul.f32 %v1218, %v1331
      %v1417 = vmul.f32 %v1217, %v1336
      %v1418 = vmul.f32 %v1216, %v1341
      %v1419 = vmul.f32 %v1215, %v1346
      %v1420 = vmul.f32 %v1214, %v1351
      %v1421 = vmul.f32 %v1213, %v1356
      %v1422 = vmul.f32 %v1212, %v1361
      %v1423 = vmul.f32 %v1211, %v1366
      %v1424 = vmul.f32 %v1210, %v1371
      %v1425 = vmul.f32 %v1209, %v1376
      %v1426 = vmul.f32 %v1208, %v1381
      %v1427 = vmul.f32 %v1207, %v1386
      %v1428 = vmul.f32 %v1206, %v1391
      %v1429 = vmul.f32 %v1237, %v1396
      %v1430 = vrot.slane %v903, 7
      %v1431 = vrot.slane %v904, 7
      %v1432 = vsel %vm948, %v1430, %v1431
      %v1433 = vsel %vm948, %v1431, %v1430
      %v1434 = vmul.f32 %v1433, %v984
      %v1435 = vmul.f32 %v1432, %v989
      %v1436 = vrot.slane %v903, 1
      %v1437 = vrot.slane %v904, 1
      %v1438 = vsel %vm1205, %v1436, %v1437
      %v1439 = vsel %vm1205, %v1437, %v1436
      %v1440 = vmul.f32 %v1438, %v1241
      %v1441 = vmul.f32 %v1439, %v1246
      %v1442 = vrot.slane %v912, 7
      %v1443 = vrot.slane %v913, 7
      %v1444 = vsel %vm948, %v1442, %v1443
      %v1445 = vsel %vm948, %v1443, %v1442
      %v1446 = vmul.f32 %v1445, %v984
      %v1447 = vmul.f32 %v1444, %v989
      %v1448 = vrot.slane %v912, 1
      %v1449 = vrot.slane %v913, 1
      %v1450 = vsel %vm1205, %v1448, %v1449
      %v1451 = vsel %vm1205, %v1449, %v1448
      %v1452 = vmul.f32 %v1450, %v1241
      %v1453 = vmul.f32 %v1451, %v1246
      %v1454 = vlaneseq
      %v1455 = vshrl.u32 %v1454, 7
      %v1456 = vsub.s32 3, %v1455
      %v1457 = vrot.slane %v499, %v1456
      %v1458 = vmul.f32 %v1141, %v1457
      %v1459 = vmul.f32 %v1142, %v1457
      %v1460 = vmul.f32 %v1143, %v1457
      %v1461 = vmul.f32 %v1144, %v1457
      %v1462 = vmul.f32 %v1145, %v1457
      %v1463 = vmul.f32 %v1146, %v1457
      %v1464 = vmul.f32 %v1147, %v1457
      %v1465 = vmul.f32 %v1148, %v1457
      %v1466 = vmul.f32 %v1149, %v1457
      %v1467 = vmul.f32 %v1150, %v1457
      %v1468 = vmul.f32 %v1151, %v1457
      %v1469 = vmul.f32 %v1152, %v1457
      %v1470 = vmul.f32 %v1153, %v1457
      %v1471 = vmul.f32 %v1154, %v1457
      %v1472 = vmul.f32 %v1155, %v1457
      %v1473 = vmul.f32 %v1156, %v1457
      %v1474 = vmul.f32 %v1157, %v1457
      %v1475 = vmul.f32 %v1158, %v1457
      %v1476 = vmul.f32 %v1159, %v1457
      %v1477 = vmul.f32 %v1160, %v1457
      %v1478 = vmul.f32 %v1161, %v1457
      %v1479 = vmul.f32 %v1162, %v1457
      %v1480 = vmul.f32 %v1163, %v1457
      %v1481 = vmul.f32 %v1164, %v1457
      %v1482 = vmul.f32 %v1165, %v1457
      %v1483 = vmul.f32 %v1166, %v1457
      %v1484 = vmul.f32 %v1167, %v1457
      %v1485 = vmul.f32 %v1168, %v1457
      %v1486 = vmul.f32 %v1169, %v1457
      %v1487 = vmul.f32 %v1170, %v1457
      %v1488 = vmul.f32 %v1171, %v1457
      %v1489 = vmul.f32 %v1172, %v1457
      %v1490 = vlaneseq
      %v1491 = vshrl.u32 %v1490, 7
      %v1492 = vsub.s32 4, %v1491
      %v1493 = vrot.slane %v499, %v1492
      %v1494 = vmul.f32 %v710, %v1493
      %v1495 = vmul.f32 %v713, %v1493
      %v1496 = vmul.f32 %v718, %v1493
      %v1497 = vmul.f32 %v721, %v1493
      %v1498 = vmul.f32 %v726, %v1493
      %v1499 = vmul.f32 %v729, %v1493
      %v1500 = vmul.f32 %v734, %v1493
      %v1501 = vmul.f32 %v737, %v1493
      %v1502 = vmul.f32 %v742, %v1493
      %v1503 = vmul.f32 %v745, %v1493
      %v1504 = vmul.f32 %v750, %v1493
      %v1505 = vmul.f32 %v753, %v1493
      %v1506 = vmul.f32 %v758, %v1493
      %v1507 = vmul.f32 %v761, %v1493
      %v1508 = vmul.f32 %v766, %v1493
      %v1509 = vmul.f32 %v769, %v1493
      %v1510 = vmul.f32 %v774, %v1493
      %v1511 = vmul.f32 %v777, %v1493
      %v1512 = vmul.f32 %v782, %v1493
      %v1513 = vmul.f32 %v785, %v1493
      %v1514 = vmul.f32 %v790, %v1493
      %v1515 = vmul.f32 %v793, %v1493
      %v1516 = vmul.f32 %v798, %v1493
      %v1517 = vmul.f32 %v801, %v1493
      %v1518 = vmul.f32 %v806, %v1493
      %v1519 = vmul.f32 %v809, %v1493
      %v1520 = vmul.f32 %v814, %v1493
      %v1521 = vmul.f32 %v817, %v1493
      %v1522 = vmul.f32 %v822, %v1493
      %v1523 = vmul.f32 %v825, %v1493
      %v1524 = vmul.f32 %v830, %v1493
      %v1525 = vmul.f32 %v833, %v1493
      %v1526 = vadd.f32 %v1458, %v1494
      %v1527 = vadd.f32 %v1459, %v1495
      %v1528 = vadd.f32 %v1460, %v1496
      %v1529 = vadd.f32 %v1461, %v1497
      %v1530 = vadd.f32 %v1462, %v1498
      %v1531 = vadd.f32 %v1463, %v1499
      %v1532 = vadd.f32 %v1464, %v1500
      %v1533 = vadd.f32 %v1465, %v1501
      %v1534 = vadd.f32 %v1466, %v1502
      %v1535 = vadd.f32 %v1467, %v1503
      %v1536 = vadd.f32 %v1468, %v1504
      %v1537 = vadd.f32 %v1469, %v1505
      %v1538 = vadd.f32 %v1470, %v1506
      %v1539 = vadd.f32 %v1471, %v1507
      %v1540 = vadd.f32 %v1472, %v1508
      %v1541 = vadd.f32 %v1473, %v1509
      %v1542 = vadd.f32 %v1474, %v1510
      %v1543 = vadd.f32 %v1475, %v1511
      %v1544 = vadd.f32 %v1476, %v1512
      %v1545 = vadd.f32 %v1477, %v1513
      %v1546 = vadd.f32 %v1478, %v1514
      %v1547 = vadd.f32 %v1479, %v1515
      %v1548 = vadd.f32 %v1480, %v1516
      %v1549 = vadd.f32 %v1481, %v1517
      %v1550 = vadd.f32 %v1482, %v1518
      %v1551 = vadd.f32 %v1483, %v1519
      %v1552 = vadd.f32 %v1484, %v1520
      %v1553 = vadd.f32 %v1485, %v1521
      %v1554 = vadd.f32 %v1486, %v1522
      %v1555 = vadd.f32 %v1487, %v1523
      %v1556 = vadd.f32 %v1488, %v1524
      %v1557 = vadd.f32 %v1489, %v1525
      %v1558 = vlaneseq
      %v1559 = vshrl.u32 %v1558, 7
      %v1560 = vsub.s32 5, %v1559
      %v1561 = vrot.slane %v499, %v1560
      %v1562 = vmul.f32 %v1398, %v1561
      %v1563 = vmul.f32 %v1399, %v1561
      %v1564 = vmul.f32 %v1400, %v1561
      %v1565 = vmul.f32 %v1401, %v1561
      %v1566 = vmul.f32 %v1402, %v1561
      %v1567 = vmul.f32 %v1403, %v1561
      %v1568 = vmul.f32 %v1404, %v1561
      %v1569 = vmul.f32 %v1405, %v1561
      %v1570 = vmul.f32 %v1406, %v1561
      %v1571 = vmul.f32 %v1407, %v1561
      %v1572 = vmul.f32 %v1408, %v1561
      %v1573 = vmul.f32 %v1409, %v1561
      %v1574 = vmul.f32 %v1410, %v1561
      %v1575 = vmul.f32 %v1411, %v1561
      %v1576 = vmul.f32 %v1412, %v1561
      %v1577 = vmul.f32 %v1413, %v1561
      %v1578 = vmul.f32 %v1414, %v1561
      %v1579 = vmul.f32 %v1415, %v1561
      %v1580 = vmul.f32 %v1416, %v1561
      %v1581 = vmul.f32 %v1417, %v1561
      %v1582 = vmul.f32 %v1418, %v1561
      %v1583 = vmul.f32 %v1419, %v1561
      %v1584 = vmul.f32 %v1420, %v1561
      %v1585 = vmul.f32 %v1421, %v1561
      %v1586 = vmul.f32 %v1422, %v1561
      %v1587 = vmul.f32 %v1423, %v1561
      %v1588 = vmul.f32 %v1424, %v1561
      %v1589 = vmul.f32 %v1425, %v1561
      %v1590 = vmul.f32 %v1426, %v1561
      %v1591 = vmul.f32 %v1427, %v1561
      %v1592 = vmul.f32 %v1428, %v1561
      %v1593 = vmul.f32 %v1429, %v1561
      %v1594 = vadd.f32 %v1526, %v1562
      %v1595 = vadd.f32 %v1527, %v1563
      %v1596 = vadd.f32 %v1528, %v1564
      %v1597 = vadd.f32 %v1529, %v1565
      %v1598 = vadd.f32 %v1530, %v1566
      %v1599 = vadd.f32 %v1531, %v1567
      %v1600 = vadd.f32 %v1532, %v1568
      %v1601 = vadd.f32 %v1533, %v1569
      %v1602 = vadd.f32 %v1534, %v1570
      %v1603 = vadd.f32 %v1535, %v1571
      %v1604 = vadd.f32 %v1536, %v1572
      %v1605 = vadd.f32 %v1537, %v1573
      %v1606 = vadd.f32 %v1538, %v1574
      %v1607 = vadd.f32 %v1539, %v1575
      %v1608 = vadd.f32 %v1540, %v1576
      %v1609 = vadd.f32 %v1541, %v1577
      %v1610 = vadd.f32 %v1542, %v1578
      %v1611 = vadd.f32 %v1543, %v1579
      %v1612 = vadd.f32 %v1544, %v1580
      %v1613 = vadd.f32 %v1545, %v1581
      %v1614 = vadd.f32 %v1546, %v1582
      %v1615 = vadd.f32 %v1547, %v1583
      %v1616 = vadd.f32 %v1548, %v1584
      %v1617 = vadd.f32 %v1549, %v1585
      %v1618 = vadd.f32 %v1550, %v1586
      %v1619 = vadd.f32 %v1551, %v1587
      %v1620 = vadd.f32 %v1552, %v1588
      %v1621 = vadd.f32 %v1553, %v1589
      %v1622 = vadd.f32 %v1554, %v1590
      %v1623 = vadd.f32 %v1555, %v1591
      %v1624 = vadd.f32 %v1556, %v1592
      %v1625 = vadd.f32 %v1557, %v1593
      %vm1626 = vcmask 130048
      %1627 = vst.msk [vmem:[#allocation2] sm:$0xff] %vm1626, %v1594
      %1628 = vst.msk [vmem:[#allocation2 + $0x8] sm:$0xff] %vm1626, %v1595
      %1629 = vst.msk [vmem:[#allocation2 + $0x10] sm:$0xff] %vm1626, %v1596
      %1630 = vst.msk [vmem:[#allocation2 + $0x18] sm:$0xff] %vm1626, %v1597
      %1631 = vst.msk [vmem:[#allocation2 + $0x20] sm:$0xff] %vm1626, %v1598
      %1632 = vst.msk [vmem:[#allocation2 + $0x28] sm:$0xff] %vm1626, %v1599
      %1633 = vst.msk [vmem:[#allocation2 + $0x30] sm:$0xff] %vm1626, %v1600
      %1634 = vst.msk [vmem:[#allocation2 + $0x38] sm:$0xff] %vm1626, %v1601
      %1635 = vst.msk [vmem:[#allocation2 + $0x40] sm:$0xff] %vm1626, %v1602
      %1636 = vst.msk [vmem:[#allocation2 + $0x48] sm:$0xff] %vm1626, %v1603
      %1637 = vst.msk [vmem:[#allocation2 + $0x50] sm:$0xff] %vm1626, %v1604
      %1638 = vst.msk [vmem:[#allocation2 + $0x58] sm:$0xff] %vm1626, %v1605
      %1639 = vst.msk [vmem:[#allocation2 + $0x60] sm:$0xff] %vm1626, %v1606
      %1640 = vst.msk [vmem:[#allocation2 + $0x68] sm:$0xff] %vm1626, %v1607
      %1641 = vst.msk [vmem:[#allocation2 + $0x70] sm:$0xff] %vm1626, %v1608
      %1642 = vst.msk [vmem:[#allocation2 + $0x78] sm:$0xff] %vm1626, %v1609
      %1643 = vst.msk [vmem:[#allocation2 + $0x80] sm:$0xff] %vm1626, %v1610
      %1644 = vst.msk [vmem:[#allocation2 + $0x88] sm:$0xff] %vm1626, %v1611
      %1645 = vst.msk [vmem:[#allocation2 + $0x90] sm:$0xff] %vm1626, %v1612
      %1646 = vst.msk [vmem:[#allocation2 + $0x98] sm:$0xff] %vm1626, %v1613
      %1647 = vst.msk [vmem:[#allocation2 + $0xa0] sm:$0xff] %vm1626, %v1614
      %1648 = vst.msk [vmem:[#allocation2 + $0xa8] sm:$0xff] %vm1626, %v1615
      %1649 = vst.msk [vmem:[#allocation2 + $0xb0] sm:$0xff] %vm1626, %v1616
      %1650 = vst.msk [vmem:[#allocation2 + $0xb8] sm:$0xff] %vm1626, %v1617
      %1651 = vst.msk [vmem:[#allocation2 + $0xc0] sm:$0xff] %vm1626, %v1618
      %1652 = vst.msk [vmem:[#allocation2 + $0xc8] sm:$0xff] %vm1626, %v1619
      %1653 = vst.msk [vmem:[#allocation2 + $0xd0] sm:$0xff] %vm1626, %v1620
      %1654 = vst.msk [vmem:[#allocation2 + $0xd8] sm:$0xff] %vm1626, %v1621
      %1655 = vst.msk [vmem:[#allocation2 + $0xe0] sm:$0xff] %vm1626, %v1622
      %1656 = vst.msk [vmem:[#allocation2 + $0xe8] sm:$0xff] %vm1626, %v1623
      %1657 = vst.msk [vmem:[#allocation2 + $0xf0] sm:$0xff] %vm1626, %v1624
      %1658 = vst.msk [vmem:[#allocation2 + $0xf8] sm:$0xff] %vm1626, %v1625
      %v1659 = vld [vmem:[#allocation2 + $0x10] sm:$0xff]
      %v1660 = vld [vmem:[#allocation2 + $0x18] sm:$0xff]
      %v1661 = vld [vmem:[#allocation2 + $0x20] sm:$0xff]
      %v1662 = vld [vmem:[#allocation2 + $0x28] sm:$0xff]
      %v1663 = vld [vmem:[#allocation2 + $0x30] sm:$0xff]
      %v1664 = vld [vmem:[#allocation2 + $0x38] sm:$0xff]
      %v1665 = vld [vmem:[#allocation2 + $0x40] sm:$0xff]
      %v1666 = vld [vmem:[#allocation2 + $0x48] sm:$0xff]
      %v1667 = vld [vmem:[#allocation2 + $0x50] sm:$0xff]
      %v1668 = vld [vmem:[#allocation2 + $0x58] sm:$0xff]
      %v1669 = vld [vmem:[#allocation2 + $0x60] sm:$0xff]
      %v1670 = vld [vmem:[#allocation2 + $0x68] sm:$0xff]
      %v1671 = vld [vmem:[#allocation2 + $0x70] sm:$0xff]
      %v1672 = vld [vmem:[#allocation2 + $0x78] sm:$0xff]
      %v1673 = vld [vmem:[#allocation2 + $0x80] sm:$0xff]
      %v1674 = vld [vmem:[#allocation2 + $0x88] sm:$0xff]
      %v1675 = vld [vmem:[#allocation2 + $0x90] sm:$0xff]
      %v1676 = vld [vmem:[#allocation2 + $0x98] sm:$0xff]
      %v1677 = vld [vmem:[#allocation2 + $0xa0] sm:$0xff]
      %v1678 = vld [vmem:[#allocation2 + $0xa8] sm:$0xff]
      %v1679 = vld [vmem:[#allocation2 + $0xb0] sm:$0xff]
      %v1680 = vld [vmem:[#allocation2 + $0xb8] sm:$0xff]
      %v1681 = vld [vmem:[#allocation2 + $0xc0] sm:$0xff]
      %v1682 = vld [vmem:[#allocation2 + $0xc8] sm:$0xff]
      %v1683 = vld [vmem:[#allocation2 + $0xd0] sm:$0xff]
      %v1684 = vld [vmem:[#allocation2 + $0xd8] sm:$0xff]
      %v1685 = vld [vmem:[#allocation2 + $0xe0] sm:$0xff]
      %v1686 = vld [vmem:[#allocation2 + $0xe8] sm:$0xff]
      %v1687 = vld [vmem:[#allocation2 + $0xf0] sm:$0xff]
      %v1688 = vld [vmem:[#allocation2 + $0xf8] sm:$0xff]
      %v1689 = vlaneseq
      %v1690 = vshrl.u32 %v1689, 7
      %v1691 = vsub.s32 0, %v1690
      %v1692 = vrot.slane %v499, %v1691
      %v1693 = vmul.f32 %v1141, %v1692
      %v1694 = vmul.f32 %v1142, %v1692
      %v1695 = vmul.f32 %v1143, %v1692
      %v1696 = vmul.f32 %v1144, %v1692
      %v1697 = vmul.f32 %v1145, %v1692
      %v1698 = vmul.f32 %v1146, %v1692
      %v1699 = vmul.f32 %v1147, %v1692
      %v1700 = vmul.f32 %v1148, %v1692
      %v1701 = vmul.f32 %v1149, %v1692
      %v1702 = vmul.f32 %v1150, %v1692
      %v1703 = vmul.f32 %v1151, %v1692
      %v1704 = vmul.f32 %v1152, %v1692
      %v1705 = vmul.f32 %v1153, %v1692
      %v1706 = vmul.f32 %v1154, %v1692
      %v1707 = vmul.f32 %v1155, %v1692
      %v1708 = vmul.f32 %v1156, %v1692
      %v1709 = vmul.f32 %v1157, %v1692
      %v1710 = vmul.f32 %v1158, %v1692
      %v1711 = vmul.f32 %v1159, %v1692
      %v1712 = vmul.f32 %v1160, %v1692
      %v1713 = vmul.f32 %v1161, %v1692
      %v1714 = vmul.f32 %v1162, %v1692
      %v1715 = vmul.f32 %v1163, %v1692
      %v1716 = vmul.f32 %v1164, %v1692
      %v1717 = vmul.f32 %v1165, %v1692
      %v1718 = vmul.f32 %v1166, %v1692
      %v1719 = vmul.f32 %v1167, %v1692
      %v1720 = vmul.f32 %v1168, %v1692
      %v1721 = vmul.f32 %v1169, %v1692
      %v1722 = vmul.f32 %v1170, %v1692
      %v1723 = vadd.f32 %v1659, %v1693
      %v1724 = vadd.f32 %v1660, %v1694
      %v1725 = vadd.f32 %v1661, %v1695
      %v1726 = vadd.f32 %v1662, %v1696
      %v1727 = vadd.f32 %v1663, %v1697
      %v1728 = vadd.f32 %v1664, %v1698
      %v1729 = vadd.f32 %v1665, %v1699
      %v1730 = vadd.f32 %v1666, %v1700
      %v1731 = vadd.f32 %v1667, %v1701
      %v1732 = vadd.f32 %v1668, %v1702
      %v1733 = vadd.f32 %v1669, %v1703
      %v1734 = vadd.f32 %v1670, %v1704
      %v1735 = vadd.f32 %v1671, %v1705
      %v1736 = vadd.f32 %v1672, %v1706
      %v1737 = vadd.f32 %v1673, %v1707
      %v1738 = vadd.f32 %v1674, %v1708
      %v1739 = vadd.f32 %v1675, %v1709
      %v1740 = vadd.f32 %v1676, %v1710
      %v1741 = vadd.f32 %v1677, %v1711
      %v1742 = vadd.f32 %v1678, %v1712
      %v1743 = vadd.f32 %v1679, %v1713
      %v1744 = vadd.f32 %v1680, %v1714
      %v1745 = vadd.f32 %v1681, %v1715
      %v1746 = vadd.f32 %v1682, %v1716
      %v1747 = vadd.f32 %v1683, %v1717
      %v1748 = vadd.f32 %v1684, %v1718
      %v1749 = vadd.f32 %v1685, %v1719
      %v1750 = vadd.f32 %v1686, %v1720
      %v1751 = vadd.f32 %v1687, %v1721
      %v1752 = vadd.f32 %v1688, %v1722
      %v1753 = vlaneseq
      %v1754 = vshrl.u32 %v1753, 7
      %v1755 = vsub.s32 1, %v1754
      %v1756 = vrot.slane %v499, %v1755
      %v1757 = vmul.f32 %v710, %v1756
      %v1758 = vmul.f32 %v713, %v1756
      %v1759 = vmul.f32 %v718, %v1756
      %v1760 = vmul.f32 %v721, %v1756
      %v1761 = vmul.f32 %v726, %v1756
      %v1762 = vmul.f32 %v729, %v1756
      %v1763 = vmul.f32 %v734, %v1756
      %v1764 = vmul.f32 %v737, %v1756
      %v1765 = vmul.f32 %v742, %v1756
      %v1766 = vmul.f32 %v745, %v1756
      %v1767 = vmul.f32 %v750, %v1756
      %v1768 = vmul.f32 %v753, %v1756
      %v1769 = vmul.f32 %v758, %v1756
      %v1770 = vmul.f32 %v761, %v1756
      %v1771 = vmul.f32 %v766, %v1756
      %v1772 = vmul.f32 %v769, %v1756
      %v1773 = vmul.f32 %v774, %v1756
      %v1774 = vmul.f32 %v777, %v1756
      %v1775 = vmul.f32 %v782, %v1756
      %v1776 = vmul.f32 %v785, %v1756
      %v1777 = vmul.f32 %v790, %v1756
      %v1778 = vmul.f32 %v793, %v1756
      %v1779 = vmul.f32 %v798, %v1756
      %v1780 = vmul.f32 %v801, %v1756
      %v1781 = vmul.f32 %v806, %v1756
      %v1782 = vmul.f32 %v809, %v1756
      %v1783 = vmul.f32 %v814, %v1756
      %v1784 = vmul.f32 %v817, %v1756
      %v1785 = vmul.f32 %v822, %v1756
      %v1786 = vmul.f32 %v825, %v1756
      %v1787 = vadd.f32 %v1723, %v1757
      %v1788 = vadd.f32 %v1724, %v1758
      %v1789 = vadd.f32 %v1725, %v1759
      %v1790 = vadd.f32 %v1726, %v1760
      %v1791 = vadd.f32 %v1727, %v1761
      %v1792 = vadd.f32 %v1728, %v1762
      %v1793 = vadd.f32 %v1729, %v1763
      %v1794 = vadd.f32 %v1730, %v1764
      %v1795 = vadd.f32 %v1731, %v1765
      %v1796 = vadd.f32 %v1732, %v1766
      %v1797 = vadd.f32 %v1733, %v1767
      %v1798 = vadd.f32 %v1734, %v1768
      %v1799 = vadd.f32 %v1735, %v1769
      %v1800 = vadd.f32 %v1736, %v1770
      %v1801 = vadd.f32 %v1737, %v1771
      %v1802 = vadd.f32 %v1738, %v1772
      %v1803 = vadd.f32 %v1739, %v1773
      %v1804 = vadd.f32 %v1740, %v1774
      %v1805 = vadd.f32 %v1741, %v1775
      %v1806 = vadd.f32 %v1742, %v1776
      %v1807 = vadd.f32 %v1743, %v1777
      %v1808 = vadd.f32 %v1744, %v1778
      %v1809 = vadd.f32 %v1745, %v1779
      %v1810 = vadd.f32 %v1746, %v1780
      %v1811 = vadd.f32 %v1747, %v1781
      %v1812 = vadd.f32 %v1748, %v1782
      %v1813 = vadd.f32 %v1749, %v1783
      %v1814 = vadd.f32 %v1750, %v1784
      %v1815 = vadd.f32 %v1751, %v1785
      %v1816 = vadd.f32 %v1752, %v1786
      %v1817 = vlaneseq
      %v1818 = vshrl.u32 %v1817, 7
      %v1819 = vsub.s32 2, %v1818
      %v1820 = vrot.slane %v499, %v1819
      %v1821 = vmul.f32 %v1398, %v1820
      %v1822 = vmul.f32 %v1399, %v1820
      %v1823 = vmul.f32 %v1400, %v1820
      %v1824 = vmul.f32 %v1401, %v1820
      %v1825 = vmul.f32 %v1402, %v1820
      %v1826 = vmul.f32 %v1403, %v1820
      %v1827 = vmul.f32 %v1404, %v1820
      %v1828 = vmul.f32 %v1405, %v1820
      %v1829 = vmul.f32 %v1406, %v1820
      %v1830 = vmul.f32 %v1407, %v1820
      %v1831 = vmul.f32 %v1408, %v1820
      %v1832 = vmul.f32 %v1409, %v1820
      %v1833 = vmul.f32 %v1410, %v1820
      %v1834 = vmul.f32 %v1411, %v1820
      %v1835 = vmul.f32 %v1412, %v1820
      %v1836 = vmul.f32 %v1413, %v1820
      %v1837 = vmul.f32 %v1414, %v1820
      %v1838 = vmul.f32 %v1415, %v1820
      %v1839 = vmul.f32 %v1416, %v1820
      %v1840 = vmul.f32 %v1417, %v1820
      %v1841 = vmul.f32 %v1418, %v1820
      %v1842 = vmul.f32 %v1419, %v1820
      %v1843 = vmul.f32 %v1420, %v1820
      %v1844 = vmul.f32 %v1421, %v1820
      %v1845 = vmul.f32 %v1422, %v1820
      %v1846 = vmul.f32 %v1423, %v1820
      %v1847 = vmul.f32 %v1424, %v1820
      %v1848 = vmul.f32 %v1425, %v1820
      %v1849 = vmul.f32 %v1426, %v1820
      %v1850 = vmul.f32 %v1427, %v1820
      %v1851 = vadd.f32 %v1787, %v1821
      %v1852 = vadd.f32 %v1788, %v1822
      %v1853 = vadd.f32 %v1789, %v1823
      %v1854 = vadd.f32 %v1790, %v1824
      %v1855 = vadd.f32 %v1791, %v1825
      %v1856 = vadd.f32 %v1792, %v1826
      %v1857 = vadd.f32 %v1793, %v1827
      %v1858 = vadd.f32 %v1794, %v1828
      %v1859 = vadd.f32 %v1795, %v1829
      %v1860 = vadd.f32 %v1796, %v1830
      %v1861 = vadd.f32 %v1797, %v1831
      %v1862 = vadd.f32 %v1798, %v1832
      %v1863 = vadd.f32 %v1799, %v1833
      %v1864 = vadd.f32 %v1800, %v1834
      %v1865 = vadd.f32 %v1801, %v1835
      %v1866 = vadd.f32 %v1802, %v1836
      %v1867 = vadd.f32 %v1803, %v1837
      %v1868 = vadd.f32 %v1804, %v1838
      %v1869 = vadd.f32 %v1805, %v1839
      %v1870 = vadd.f32 %v1806, %v1840
      %v1871 = vadd.f32 %v1807, %v1841
      %v1872 = vadd.f32 %v1808, %v1842
      %v1873 = vadd.f32 %v1809, %v1843
      %v1874 = vadd.f32 %v1810, %v1844
      %v1875 = vadd.f32 %v1811, %v1845
      %v1876 = vadd.f32 %v1812, %v1846
      %v1877 = vadd.f32 %v1813, %v1847
      %v1878 = vadd.f32 %v1814, %v1848
      %v1879 = vadd.f32 %v1815, %v1849
      %v1880 = vadd.f32 %v1816, %v1850
      %1881 = vst.msk [vmem:[#allocation2 + $0x10] sm:$0xff] %vm1626, %v1851
      %1882 = vst.msk [vmem:[#allocation2 + $0x18] sm:$0xff] %vm1626, %v1852
      %1883 = vst.msk [vmem:[#allocation2 + $0x20] sm:$0xff] %vm1626, %v1853
      %1884 = vst.msk [vmem:[#allocation2 + $0x28] sm:$0xff] %vm1626, %v1854
      %1885 = vst.msk [vmem:[#allocation2 + $0x30] sm:$0xff] %vm1626, %v1855
      %1886 = vst.msk [vmem:[#allocation2 + $0x38] sm:$0xff] %vm1626, %v1856
      %1887 = vst.msk [vmem:[#allocation2 + $0x40] sm:$0xff] %vm1626, %v1857
      %1888 = vst.msk [vmem:[#allocation2 + $0x48] sm:$0xff] %vm1626, %v1858
      %1889 = vst.msk [vmem:[#allocation2 + $0x50] sm:$0xff] %vm1626, %v1859
      %1890 = vst.msk [vmem:[#allocation2 + $0x58] sm:$0xff] %vm1626, %v1860
      %1891 = vst.msk [vmem:[#allocation2 + $0x60] sm:$0xff] %vm1626, %v1861
      %1892 = vst.msk [vmem:[#allocation2 + $0x68] sm:$0xff] %vm1626, %v1862
      %1893 = vst.msk [vmem:[#allocation2 + $0x70] sm:$0xff] %vm1626, %v1863
      %1894 = vst.msk [vmem:[#allocation2 + $0x78] sm:$0xff] %vm1626, %v1864
      %1895 = vst.msk [vmem:[#allocation2 + $0x80] sm:$0xff] %vm1626, %v1865
      %1896 = vst.msk [vmem:[#allocation2 + $0x88] sm:$0xff] %vm1626, %v1866
      %1897 = vst.msk [vmem:[#allocation2 + $0x90] sm:$0xff] %vm1626, %v1867
      %1898 = vst.msk [vmem:[#allocation2 + $0x98] sm:$0xff] %vm1626, %v1868
      %1899 = vst.msk [vmem:[#allocation2 + $0xa0] sm:$0xff] %vm1626, %v1869
      %1900 = vst.msk [vmem:[#allocation2 + $0xa8] sm:$0xff] %vm1626, %v1870
      %1901 = vst.msk [vmem:[#allocation2 + $0xb0] sm:$0xff] %vm1626, %v1871
      %1902 = vst.msk [vmem:[#allocation2 + $0xb8] sm:$0xff] %vm1626, %v1872
      %1903 = vst.msk [vmem:[#allocation2 + $0xc0] sm:$0xff] %vm1626, %v1873
      %1904 = vst.msk [vmem:[#allocation2 + $0xc8] sm:$0xff] %vm1626, %v1874
      %1905 = vst.msk [vmem:[#allocation2 + $0xd0] sm:$0xff] %vm1626, %v1875
      %1906 = vst.msk [vmem:[#allocation2 + $0xd8] sm:$0xff] %vm1626, %v1876
      %1907 = vst.msk [vmem:[#allocation2 + $0xe0] sm:$0xff] %vm1626, %v1877
      %1908 = vst.msk [vmem:[#allocation2 + $0xe8] sm:$0xff] %vm1626, %v1878
      %1909 = vst.msk [vmem:[#allocation2 + $0xf0] sm:$0xff] %vm1626, %v1879
      %1910 = vst.msk [vmem:[#allocation2 + $0xf8] sm:$0xff] %vm1626, %v1880
      %v1911 = vld [vmem:[#allocation2] sm:$0xff]
      %v1912 = vld [vmem:[#allocation2 + $0x8] sm:$0xff]
      %v1913 = vld [vmem:[#allocation2 + $0x10] sm:$0xff]
      %v1914 = vld [vmem:[#allocation2 + $0x18] sm:$0xff]
      %v1915 = vld [vmem:[#allocation2 + $0x20] sm:$0xff]
      %v1916 = vld [vmem:[#allocation2 + $0x28] sm:$0xff]
      %v1917 = vld [vmem:[#allocation2 + $0x30] sm:$0xff]
      %v1918 = vld [vmem:[#allocation2 + $0x38] sm:$0xff]
      %v1919 = vld [vmem:[#allocation2 + $0x40] sm:$0xff]
      %v1920 = vld [vmem:[#allocation2 + $0x48] sm:$0xff]
      %v1921 = vld [vmem:[#allocation2 + $0x50] sm:$0xff]
      %v1922 = vld [vmem:[#allocation2 + $0x58] sm:$0xff]
      %v1923 = vld [vmem:[#allocation2 + $0x60] sm:$0xff]
      %v1924 = vld [vmem:[#allocation2 + $0x68] sm:$0xff]
      %v1925 = vld [vmem:[#allocation2 + $0x70] sm:$0xff]
      %v1926 = vld [vmem:[#allocation2 + $0x78] sm:$0xff]
      %v1927 = vld [vmem:[#allocation2 + $0x80] sm:$0xff]
      %v1928 = vld [vmem:[#allocation2 + $0x88] sm:$0xff]
      %v1929 = vld [vmem:[#allocation2 + $0x90] sm:$0xff]
      %v1930 = vld [vmem:[#allocation2 + $0x98] sm:$0xff]
      %v1931 = vld [vmem:[#allocation2 + $0xa0] sm:$0xff]
      %v1932 = vld [vmem:[#allocation2 + $0xa8] sm:$0xff]
      %v1933 = vld [vmem:[#allocation2 + $0xb0] sm:$0xff]
      %v1934 = vld [vmem:[#allocation2 + $0xb8] sm:$0xff]
      %v1935 = vld [vmem:[#allocation2 + $0xc0] sm:$0xff]
      %v1936 = vld [vmem:[#allocation2 + $0xc8] sm:$0xff]
      %v1937 = vld [vmem:[#allocation2 + $0xd0] sm:$0xff]
      %v1938 = vld [vmem:[#allocation2 + $0xd8] sm:$0xff]
      %v1939 = vld [vmem:[#allocation2 + $0xe0] sm:$0xff]
      %v1940 = vld [vmem:[#allocation2 + $0xe8] sm:$0xff]
      %v1941 = vlaneseq
      %v1942 = vshrl.u32 %v1941, 7
      %v1943 = vsub.s32 6, %v1942
      %v1944 = vrot.slane %v499, %v1943
      %v1945 = vmul.f32 %v1143, %v1944
      %v1946 = vmul.f32 %v1144, %v1944
      %v1947 = vmul.f32 %v1145, %v1944
      %v1948 = vmul.f32 %v1146, %v1944
      %v1949 = vmul.f32 %v1147, %v1944
      %v1950 = vmul.f32 %v1148, %v1944
      %v1951 = vmul.f32 %v1149, %v1944
      %v1952 = vmul.f32 %v1150, %v1944
      %v1953 = vmul.f32 %v1151, %v1944
      %v1954 = vmul.f32 %v1152, %v1944
      %v1955 = vmul.f32 %v1153, %v1944
      %v1956 = vmul.f32 %v1154, %v1944
      %v1957 = vmul.f32 %v1155, %v1944
      %v1958 = vmul.f32 %v1156, %v1944
      %v1959 = vmul.f32 %v1157, %v1944
      %v1960 = vmul.f32 %v1158, %v1944
      %v1961 = vmul.f32 %v1159, %v1944
      %v1962 = vmul.f32 %v1160, %v1944
      %v1963 = vmul.f32 %v1161, %v1944
      %v1964 = vmul.f32 %v1162, %v1944
      %v1965 = vmul.f32 %v1163, %v1944
      %v1966 = vmul.f32 %v1164, %v1944
      %v1967 = vmul.f32 %v1165, %v1944
      %v1968 = vmul.f32 %v1166, %v1944
      %v1969 = vmul.f32 %v1167, %v1944
      %v1970 = vmul.f32 %v1168, %v1944
      %v1971 = vmul.f32 %v1169, %v1944
      %v1972 = vmul.f32 %v1170, %v1944
      %v1973 = vmul.f32 %v1171, %v1944
      %v1974 = vmul.f32 %v1172, %v1944
      %v1975 = vadd.f32 %v1911, %v1945
      %v1976 = vadd.f32 %v1912, %v1946
      %v1977 = vadd.f32 %v1913, %v1947
      %v1978 = vadd.f32 %v1914, %v1948
      %v1979 = vadd.f32 %v1915, %v1949
      %v1980 = vadd.f32 %v1916, %v1950
      %v1981 = vadd.f32 %v1917, %v1951
      %v1982 = vadd.f32 %v1918, %v1952
      %v1983 = vadd.f32 %v1919, %v1953
      %v1984 = vadd.f32 %v1920, %v1954
      %v1985 = vadd.f32 %v1921, %v1955
      %v1986 = vadd.f32 %v1922, %v1956
      %v1987 = vadd.f32 %v1923, %v1957
      %v1988 = vadd.f32 %v1924, %v1958
      %v1989 = vadd.f32 %v1925, %v1959
      %v1990 = vadd.f32 %v1926, %v1960
      %v1991 = vadd.f32 %v1927, %v1961
      %v1992 = vadd.f32 %v1928, %v1962
      %v1993 = vadd.f32 %v1929, %v1963
      %v1994 = vadd.f32 %v1930, %v1964
      %v1995 = vadd.f32 %v1931, %v1965
      %v1996 = vadd.f32 %v1932, %v1966
      %v1997 = vadd.f32 %v1933, %v1967
      %v1998 = vadd.f32 %v1934, %v1968
      %v1999 = vadd.f32 %v1935, %v1969
      %v2000 = vadd.f32 %v1936, %v1970
      %v2001 = vadd.f32 %v1937, %v1971
      %v2002 = vadd.f32 %v1938, %v1972
      %v2003 = vadd.f32 %v1939, %v1973
      %v2004 = vadd.f32 %v1940, %v1974
      %v2005 = vlaneseq
      %v2006 = vshrl.u32 %v2005, 7
      %v2007 = vsub.s32 7, %v2006
      %v2008 = vrot.slane %v499, %v2007
      %v2009 = vmul.f32 %v718, %v2008
      %v2010 = vmul.f32 %v721, %v2008
      %v2011 = vmul.f32 %v726, %v2008
      %v2012 = vmul.f32 %v729, %v2008
      %v2013 = vmul.f32 %v734, %v2008
      %v2014 = vmul.f32 %v737, %v2008
      %v2015 = vmul.f32 %v742, %v2008
      %v2016 = vmul.f32 %v745, %v2008
      %v2017 = vmul.f32 %v750, %v2008
      %v2018 = vmul.f32 %v753, %v2008
      %v2019 = vmul.f32 %v758, %v2008
      %v2020 = vmul.f32 %v761, %v2008
      %v2021 = vmul.f32 %v766, %v2008
      %v2022 = vmul.f32 %v769, %v2008
      %v2023 = vmul.f32 %v774, %v2008
      %v2024 = vmul.f32 %v777, %v2008
      %v2025 = vmul.f32 %v782, %v2008
      %v2026 = vmul.f32 %v785, %v2008
      %v2027 = vmul.f32 %v790, %v2008
      %v2028 = vmul.f32 %v793, %v2008
      %v2029 = vmul.f32 %v798, %v2008
      %v2030 = vmul.f32 %v801, %v2008
      %v2031 = vmul.f32 %v806, %v2008
      %v2032 = vmul.f32 %v809, %v2008
      %v2033 = vmul.f32 %v814, %v2008
      %v2034 = vmul.f32 %v817, %v2008
      %v2035 = vmul.f32 %v822, %v2008
      %v2036 = vmul.f32 %v825, %v2008
      %v2037 = vmul.f32 %v830, %v2008
      %v2038 = vmul.f32 %v833, %v2008
      %v2039 = vadd.f32 %v1975, %v2009
      %v2040 = vadd.f32 %v1976, %v2010
      %v2041 = vadd.f32 %v1977, %v2011
      %v2042 = vadd.f32 %v1978, %v2012
      %v2043 = vadd.f32 %v1979, %v2013
      %v2044 = vadd.f32 %v1980, %v2014
      %v2045 = vadd.f32 %v1981, %v2015
      %v2046 = vadd.f32 %v1982, %v2016
      %v2047 = vadd.f32 %v1983, %v2017
      %v2048 = vadd.f32 %v1984, %v2018
      %v2049 = vadd.f32 %v1985, %v2019
      %v2050 = vadd.f32 %v1986, %v2020
      %v2051 = vadd.f32 %v1987, %v2021
      %v2052 = vadd.f32 %v1988, %v2022
      %v2053 = vadd.f32 %v1989, %v2023
      %v2054 = vadd.f32 %v1990, %v2024
      %v2055 = vadd.f32 %v1991, %v2025
      %v2056 = vadd.f32 %v1992, %v2026
      %v2057 = vadd.f32 %v1993, %v2027
      %v2058 = vadd.f32 %v1994, %v2028
      %v2059 = vadd.f32 %v1995, %v2029
      %v2060 = vadd.f32 %v1996, %v2030
      %v2061 = vadd.f32 %v1997, %v2031
      %v2062 = vadd.f32 %v1998, %v2032
      %v2063 = vadd.f32 %v1999, %v2033
      %v2064 = vadd.f32 %v2000, %v2034
      %v2065 = vadd.f32 %v2001, %v2035
      %v2066 = vadd.f32 %v2002, %v2036
      %v2067 = vadd.f32 %v2003, %v2037
      %v2068 = vadd.f32 %v2004, %v2038
      %v2069 = vlaneseq
      %v2070 = vshrl.u32 %v2069, 7
      %v2071 = vsub.s32 0, %v2070
      %v2072 = vrot.slane %v500, %v2071
      %v2073 = vmul.f32 %v1400, %v2072
      %v2074 = vmul.f32 %v1401, %v2072
      %v2075 = vmul.f32 %v1402, %v2072
      %v2076 = vmul.f32 %v1403, %v2072
      %v2077 = vmul.f32 %v1404, %v2072
      %v2078 = vmul.f32 %v1405, %v2072
      %v2079 = vmul.f32 %v1406, %v2072
      %v2080 = vmul.f32 %v1407, %v2072
      %v2081 = vmul.f32 %v1408, %v2072
      %v2082 = vmul.f32 %v1409, %v2072
      %v2083 = vmul.f32 %v1410, %v2072
      %v2084 = vmul.f32 %v1411, %v2072
      %v2085 = vmul.f32 %v1412, %v2072
      %v2086 = vmul.f32 %v1413, %v2072
      %v2087 = vmul.f32 %v1414, %v2072
      %v2088 = vmul.f32 %v1415, %v2072
      %v2089 = vmul.f32 %v1416, %v2072
      %v2090 = vmul.f32 %v1417, %v2072
      %v2091 = vmul.f32 %v1418, %v2072
      %v2092 = vmul.f32 %v1419, %v2072
      %v2093 = vmul.f32 %v1420, %v2072
      %v2094 = vmul.f32 %v1421, %v2072
      %v2095 = vmul.f32 %v1422, %v2072
      %v2096 = vmul.f32 %v1423, %v2072
      %v2097 = vmul.f32 %v1424, %v2072
      %v2098 = vmul.f32 %v1425, %v2072
      %v2099 = vmul.f32 %v1426, %v2072
      %v2100 = vmul.f32 %v1427, %v2072
      %v2101 = vmul.f32 %v1428, %v2072
      %v2102 = vmul.f32 %v1429, %v2072
      %v2103 = vadd.f32 %v2039, %v2073
      %v2104 = vadd.f32 %v2040, %v2074
      %v2105 = vadd.f32 %v2041, %v2075
      %v2106 = vadd.f32 %v2042, %v2076
      %v2107 = vadd.f32 %v2043, %v2077
      %v2108 = vadd.f32 %v2044, %v2078
      %v2109 = vadd.f32 %v2045, %v2079
      %v2110 = vadd.f32 %v2046, %v2080
      %v2111 = vadd.f32 %v2047, %v2081
      %v2112 = vadd.f32 %v2048, %v2082
      %v2113 = vadd.f32 %v2049, %v2083
      %v2114 = vadd.f32 %v2050, %v2084
      %v2115 = vadd.f32 %v2051, %v2085
      %v2116 = vadd.f32 %v2052, %v2086
      %v2117 = vadd.f32 %v2053, %v2087
      %v2118 = vadd.f32 %v2054, %v2088
      %v2119 = vadd.f32 %v2055, %v2089
      %v2120 = vadd.f32 %v2056, %v2090
      %v2121 = vadd.f32 %v2057, %v2091
      %v2122 = vadd.f32 %v2058, %v2092
      %v2123 = vadd.f32 %v2059, %v2093
      %v2124 = vadd.f32 %v2060, %v2094
      %v2125 = vadd.f32 %v2061, %v2095
      %v2126 = vadd.f32 %v2062, %v2096
      %v2127 = vadd.f32 %v2063, %v2097
      %v2128 = vadd.f32 %v2064, %v2098
      %v2129 = vadd.f32 %v2065, %v2099
      %v2130 = vadd.f32 %v2066, %v2100
      %v2131 = vadd.f32 %v2067, %v2101
      %v2132 = vadd.f32 %v2068, %v2102
      %2133 = vst.msk [vmem:[#allocation2] sm:$0xff] %vm1626, %v2103
      %2134 = vst.msk [vmem:[#allocation2 + $0x8] sm:$0xff] %vm1626, %v2104
      %2135 = vst.msk [vmem:[#allocation2 + $0x10] sm:$0xff] %vm1626, %v2105
      %2136 = vst.msk [vmem:[#allocation2 + $0x18] sm:$0xff] %vm1626, %v2106
      %2137 = vst.msk [vmem:[#allocation2 + $0x20] sm:$0xff] %vm1626, %v2107
      %2138 = vst.msk [vmem:[#allocation2 + $0x28] sm:$0xff] %vm1626, %v2108
      %2139 = vst.msk [vmem:[#allocation2 + $0x30] sm:$0xff] %vm1626, %v2109
      %2140 = vst.msk [vmem:[#allocation2 + $0x38] sm:$0xff] %vm1626, %v2110
      %2141 = vst.msk [vmem:[#allocation2 + $0x40] sm:$0xff] %vm1626, %v2111
      %2142 = vst.msk [vmem:[#allocation2 + $0x48] sm:$0xff] %vm1626, %v2112
      %2143 = vst.msk [vmem:[#allocation2 + $0x50] sm:$0xff] %vm1626, %v2113
      %2144 = vst.msk [vmem:[#allocation2 + $0x58] sm:$0xff] %vm1626, %v2114
      %2145 = vst.msk [vmem:[#allocation2 + $0x60] sm:$0xff] %vm1626, %v2115
      %2146 = vst.msk [vmem:[#allocation2 + $0x68] sm:$0xff] %vm1626, %v2116
      %2147 = vst.msk [vmem:[#allocation2 + $0x70] sm:$0xff] %vm1626, %v2117
      %2148 = vst.msk [vmem:[#allocation2 + $0x78] sm:$0xff] %vm1626, %v2118
      %2149 = vst.msk [vmem:[#allocation2 + $0x80] sm:$0xff] %vm1626, %v2119
      %2150 = vst.msk [vmem:[#allocation2 + $0x88] sm:$0xff] %vm1626, %v2120
      %2151 = vst.msk [vmem:[#allocation2 + $0x90] sm:$0xff] %vm1626, %v2121
      %2152 = vst.msk [vmem:[#allocation2 + $0x98] sm:$0xff] %vm1626, %v2122
      %2153 = vst.msk [vmem:[#allocation2 + $0xa0] sm:$0xff] %vm1626, %v2123
      %2154 = vst.msk [vmem:[#allocation2 + $0xa8] sm:$0xff] %vm1626, %v2124
      %2155 = vst.msk [vmem:[#allocation2 + $0xb0] sm:$0xff] %vm1626, %v2125
      %2156 = vst.msk [vmem:[#allocation2 + $0xb8] sm:$0xff] %vm1626, %v2126
      %2157 = vst.msk [vmem:[#allocation2 + $0xc0] sm:$0xff] %vm1626, %v2127
      %2158 = vst.msk [vmem:[#allocation2 + $0xc8] sm:$0xff] %vm1626, %v2128
      %2159 = vst.msk [vmem:[#allocation2 + $0xd0] sm:$0xff] %vm1626, %v2129
      %2160 = vst.msk [vmem:[#allocation2 + $0xd8] sm:$0xff] %vm1626, %v2130
      %2161 = vst.msk [vmem:[#allocation2 + $0xe0] sm:$0xff] %vm1626, %v2131
      %2162 = vst.msk [vmem:[#allocation2 + $0xe8] sm:$0xff] %vm1626, %v2132
      %v2163 = vld [vmem:[#allocation2] sm:$0xff]
      %v2164 = vld [vmem:[#allocation2 + $0x8] sm:$0xff]
      %v2165 = vmul.f32 %v1434, %v1692
      %v2166 = vmul.f32 %v1435, %v1692
      %v2167 = vadd.f32 %v2163, %v2165
      %v2168 = vadd.f32 %v2164, %v2166
      %v2169 = vmul.f32 %v903, %v1756
      %v2170 = vmul.f32 %v904, %v1756
      %v2171 = vadd.f32 %v2167, %v2169
      %v2172 = vadd.f32 %v2168, %v2170
      %v2173 = vmul.f32 %v1440, %v1820
      %v2174 = vmul.f32 %v1441, %v1820
      %v2175 = vadd.f32 %v2171, %v2173
      %v2176 = vadd.f32 %v2172, %v2174
      %2177 = vst.msk [vmem:[#allocation2] sm:$0xff] %vm1626, %v2175
      %2178 = vst.msk [vmem:[#allocation2 + $0x8] sm:$0xff] %vm1626, %v2176
      %v2179 = vld [vmem:[#allocation2 + $0xf0] sm:$0xff]
      %v2180 = vld [vmem:[#allocation2 + $0xf8] sm:$0xff]
      %v2181 = vmul.f32 %v1446, %v1944
      %v2182 = vmul.f32 %v1447, %v1944
      %v2183 = vadd.f32 %v2179, %v2181
      %v2184 = vadd.f32 %v2180, %v2182
      %v2185 = vmul.f32 %v912, %v2008
      %v2186 = vmul.f32 %v913, %v2008
      %v2187 = vadd.f32 %v2183, %v2185
      %v2188 = vadd.f32 %v2184, %v2186
      %v2189 = vmul.f32 %v1452, %v2072
      %v2190 = vmul.f32 %v1453, %v2072
      %v2191 = vadd.f32 %v2187, %v2189
      %v2192 = vadd.f32 %v2188, %v2190
      %2193 = vst.msk [vmem:[#allocation2 + $0xf0] sm:$0xff] %vm1626, %v2191
      %2194 = vst.msk [vmem:[#allocation2 + $0xf8] sm:$0xff] %vm1626, %v2192
      %v2195 = vld [vmem:[#allocation2] sm:$0xff]
      %v2196 = vld [vmem:[#allocation2 + $0x8] sm:$0xff]
      %v2197 = vld [vmem:[#allocation2 + $0x10] sm:$0xff]
      %v2198 = vld [vmem:[#allocation2 + $0x18] sm:$0xff]
      %v2199 = vld [vmem:[#allocation2 + $0x20] sm:$0xff]
      %v2200 = vld [vmem:[#allocation2 + $0x28] sm:$0xff]
      %v2201 = vld [vmem:[#allocation2 + $0x30] sm:$0xff]
      %v2202 = vld [vmem:[#allocation2 + $0x38] sm:$0xff]
      %v2203 = vld [vmem:[#allocation2 + $0x40] sm:$0xff]
      %v2204 = vld [vmem:[#allocation2 + $0x48] sm:$0xff]
      %v2205 = vld [vmem:[#allocation2 + $0x50] sm:$0xff]
      %v2206 = vld [vmem:[#allocation2 + $0x58] sm:$0xff]
      %v2207 = vld [vmem:[#allocation2 + $0x60] sm:$0xff]
      %v2208 = vld [vmem:[#allocation2 + $0x68] sm:$0xff]
      %v2209 = vld [vmem:[#allocation2 + $0x70] sm:$0xff]
      %v2210 = vld [vmem:[#allocation2 + $0x78] sm:$0xff]
      %v2211 = vld [vmem:[#allocation2 + $0x80] sm:$0xff]
      %v2212 = vld [vmem:[#allocation2 + $0x88] sm:$0xff]
      %v2213 = vld [vmem:[#allocation2 + $0x90] sm:$0xff]
      %v2214 = vld [vmem:[#allocation2 + $0x98] sm:$0xff]
      %v2215 = vld [vmem:[#allocation2 + $0xa0] sm:$0xff]
      %v2216 = vld [vmem:[#allocation2 + $0xa8] sm:$0xff]
      %v2217 = vld [vmem:[#allocation2 + $0xb0] sm:$0xff]
      %v2218 = vld [vmem:[#allocation2 + $0xb8] sm:$0xff]
      %v2219 = vld [vmem:[#allocation2 + $0xc0] sm:$0xff]
      %v2220 = vld [vmem:[#allocation2 + $0xc8] sm:$0xff]
      %v2221 = vld [vmem:[#allocation2 + $0xd0] sm:$0xff]
      %v2222 = vld [vmem:[#allocation2 + $0xd8] sm:$0xff]
      %v2223 = vld [vmem:[#allocation2 + $0xe0] sm:$0xff]
      %v2224 = vld [vmem:[#allocation2 + $0xe8] sm:$0xff]
      %v2225 = vld [vmem:[#allocation2 + $0xf0] sm:$0xff]
      %v2226 = vld [vmem:[#allocation2 + $0xf8] sm:$0xff]
      %v2228 = vlaneseq
      %v2229 = vshrl.u32 %v2228, 7
      %v2230 = vsub.s32 0, %v2229
      %v2231 = vrot.slane %v501, %v2230
      %v2233 = vadd.f32 %v2195, %v2231
      %v2234 = vadd.f32 %v2196, %v2231
      %v2235 = vadd.f32 %v2197, %v2231
      %v2236 = vadd.f32 %v2198, %v2231
      %v2237 = vadd.f32 %v2199, %v2231
      %v2238 = vadd.f32 %v2200, %v2231
      %v2239 = vadd.f32 %v2201, %v2231
      %v2240 = vadd.f32 %v2202, %v2231
      %v2241 = vadd.f32 %v2203, %v2231
      %v2242 = vadd.f32 %v2204, %v2231
      %v2243 = vadd.f32 %v2205, %v2231
      %v2244 = vadd.f32 %v2206, %v2231
      %v2245 = vadd.f32 %v2207, %v2231
      %v2246 = vadd.f32 %v2208, %v2231
      %v2247 = vadd.f32 %v2209, %v2231
      %v2248 = vadd.f32 %v2210, %v2231
      %v2249 = vadd.f32 %v2211, %v2231
      %v2250 = vadd.f32 %v2212, %v2231
      %v2251 = vadd.f32 %v2213, %v2231
      %v2252 = vadd.f32 %v2214, %v2231
      %v2253 = vadd.f32 %v2215, %v2231
      %v2254 = vadd.f32 %v2216, %v2231
      %v2255 = vadd.f32 %v2217, %v2231
      %v2256 = vadd.f32 %v2218, %v2231
      %v2257 = vadd.f32 %v2219, %v2231
      %v2258 = vadd.f32 %v2220, %v2231
      %v2259 = vadd.f32 %v2221, %v2231
      %v2260 = vadd.f32 %v2222, %v2231
      %v2261 = vadd.f32 %v2223, %v2231
      %v2262 = vadd.f32 %v2224, %v2231
      %v2263 = vadd.f32 %v2225, %v2231
      %v2264 = vadd.f32 %v2226, %v2231
      %v2265 = vpack.c.bf16 %v2234, %v2233
      %v2266 = vpack.c.bf16 %v2236, %v2235
      %v2267 = vpack.c.bf16 %v2238, %v2237
      %v2268 = vpack.c.bf16 %v2240, %v2239
      %v2269 = vpack.c.bf16 %v2242, %v2241
      %v2270 = vpack.c.bf16 %v2244, %v2243
      %v2271 = vpack.c.bf16 %v2246, %v2245
      %v2272 = vpack.c.bf16 %v2248, %v2247
      %v2273 = vpack.c.bf16 %v2250, %v2249
      %v2274 = vpack.c.bf16 %v2252, %v2251
      %v2275 = vpack.c.bf16 %v2254, %v2253
      %v2276 = vpack.c.bf16 %v2256, %v2255
      %v2277 = vpack.c.bf16 %v2258, %v2257
      %v2278 = vpack.c.bf16 %v2260, %v2259
      %v2279 = vpack.c.bf16 %v2262, %v2261
      %v2280 = vpack.c.bf16 %v2264, %v2263
      %v2282 = vlaneseq
      %v2283 = vshrl.u32 %v2282, 7
      %v2284 = vsub.s32 0, %v2283
      %v2285 = vrot.slane %v502, %v2284
      %v2289 = vunpack.c.l.b16 %v494
      %v2290 = vunpack.c.l.b16 %v495
      %v2291 = vpack.c.b16 %v2290, %v2289
      %v2294 = vsel %vm1626, %v2265, 0
      %v2297 = vsel %vm1626, %v2266, 0
      %v2300 = vsel %vm1626, %v2267, 0
      %v2303 = vsel %vm1626, %v2268, 0
      %v2306 = vsel %vm1626, %v2269, 0
      %v2309 = vsel %vm1626, %v2270, 0
      %v2312 = vsel %vm1626, %v2271, 0
      %v2315 = vsel %vm1626, %v2272, 0
      %v2318 = vsel %vm1626, %v2273, 0
      %v2321 = vsel %vm1626, %v2274, 0
      %v2324 = vsel %vm1626, %v2275, 0
      %v2327 = vsel %vm1626, %v2276, 0
      %v2330 = vsel %vm1626, %v2277, 0
      %v2333 = vsel %vm1626, %v2278, 0
      %v2336 = vsel %vm1626, %v2279, 0
      %v2339 = vsel %vm1626, %v2280, 0
      %2341 = vmatprep.subr.bf16.mxu0 0
      %2342 = vmatpush1.bf16.msra.mxu0 %v2291
      %2343 = vmatprep.subr.bf16.mxu0 0
      %2344 = vmatpush1.bf16.msra.mxu0 0
      %2345 = vmatprep.subr.bf16.mxu0 0
      %2346 = vmatpush1.bf16.msra.mxu0 0
      %2347 = vmatprep.subr.bf16.mxu0 0
      %2348 = vmatpush1.bf16.msra.mxu0 0
      %2349 = vmatprep.subr.bf16.mxu0 0
      %2350 = vmatpush1.bf16.msra.mxu0 0
      %2351 = vmatprep.subr.bf16.mxu0 0
      %2352 = vmatpush1.bf16.msra.mxu0 0
      %2353 = vmatprep.subr.bf16.mxu0 0
      %2354 = vmatpush1.bf16.msra.mxu0 0
      %2355 = vmatprep.subr.bf16.mxu0 0
      %2356 = vmatpush1.bf16.msra.mxu0 0
      %2357 = vmatprep.subr.bf16.mxu0 0
      %2358 = vmatpush1.bf16.msra.mxu0 0
      %2359 = vmatprep.subr.bf16.mxu0 0
      %2360 = vmatpush1.bf16.msra.mxu0 0
      %2361 = vmatprep.subr.bf16.mxu0 0
      %2362 = vmatpush1.bf16.msra.mxu0 0
      %2363 = vmatprep.subr.bf16.mxu0 0
      %2364 = vmatpush1.bf16.msra.mxu0 0
      %2365 = vmatprep.subr.bf16.mxu0 0
      %2366 = vmatpush1.bf16.msra.mxu0 0
      %2367 = vmatprep.subr.bf16.mxu0 0
      %2368 = vmatpush1.bf16.msra.mxu0 0
      %2369 = vmatprep.subr.bf16.mxu0 0
      %2370 = vmatpush1.bf16.msra.mxu0 0
      %2371 = vmatprep.subr.bf16.mxu0 0
      %2372 = vmatpush1.bf16.msra.mxu0 0
      %2373 = vmatprep.mubr.bf16.mxu0 0
      %2374 = vmatmul.mubr.bf16.gmra.mrb[0].mxu0 %v2294
      %v2375 = vpop.f32.mrb[0].mxu0
      %v2376 = vadd.f32 %v2285, %v2375
      %v2377 = vpop.f32.mrb[0].mxu0
      %v2378 = vpop.f32.mrb[0].mxu0
      %v2379 = vadd.f32 %v2285, %v2378
      %v2380 = vpop.f32.mrb[0].mxu0
      %2381 = vmatprep.mubr.bf16.mxu0 0
      %2382 = vmatmul.mubr.bf16.gmra.mrb[0].mxu0 %v2297
      %v2383 = vpop.f32.mrb[0].mxu0
      %v2384 = vadd.f32 %v2285, %v2383
      %v2385 = vpop.f32.mrb[0].mxu0
      %v2386 = vpop.f32.mrb[0].mxu0
      %v2387 = vadd.f32 %v2285, %v2386
      %v2388 = vpop.f32.mrb[0].mxu0
      %2389 = vmatprep.mubr.bf16.mxu0 0
      %2390 = vmatmul.mubr.bf16.gmra.mrb[0].mxu0 %v2300
      %v2391 = vpop.f32.mrb[0].mxu0
      %v2392 = vadd.f32 %v2285, %v2391
      %v2393 = vpop.f32.mrb[0].mxu0
      %v2394 = vpop.f32.mrb[0].mxu0
      %v2395 = vadd.f32 %v2285, %v2394
      %v2396 = vpop.f32.mrb[0].mxu0
      %2397 = vmatprep.mubr.bf16.mxu0 0
      %2398 = vmatmul.mubr.bf16.gmra.mrb[0].mxu0 %v2303
      %v2399 = vpop.f32.mrb[0].mxu0
      %v2400 = vadd.f32 %v2285, %v2399
      %v2401 = vpop.f32.mrb[0].mxu0
      %v2402 = vpop.f32.mrb[0].mxu0
      %v2403 = vadd.f32 %v2285, %v2402
      %v2404 = vpop.f32.mrb[0].mxu0
      %2405 = vmatprep.mubr.bf16.mxu0 0
      %2406 = vmatmul.mubr.bf16.gmra.mrb[0].mxu0 %v2306
      %v2407 = vpop.f32.mrb[0].mxu0
      %v2408 = vadd.f32 %v2285, %v2407
      %v2409 = vpop.f32.mrb[0].mxu0
      %v2410 = vpop.f32.mrb[0].mxu0
      %v2411 = vadd.f32 %v2285, %v2410
      %v2412 = vpop.f32.mrb[0].mxu0
      %2413 = vmatprep.mubr.bf16.mxu0 0
      %2414 = vmatmul.mubr.bf16.gmra.mrb[0].mxu0 %v2309
      %v2415 = vpop.f32.mrb[0].mxu0
      %v2416 = vadd.f32 %v2285, %v2415
      %v2417 = vpop.f32.mrb[0].mxu0
      %v2418 = vpop.f32.mrb[0].mxu0
      %v2419 = vadd.f32 %v2285, %v2418
      %v2420 = vpop.f32.mrb[0].mxu0
      %2421 = vmatprep.mubr.bf16.mxu0 0
      %2422 = vmatmul.mubr.bf16.gmra.mrb[0].mxu0 %v2312
      %v2423 = vpop.f32.mrb[0].mxu0
      %v2424 = vadd.f32 %v2285, %v2423
      %v2425 = vpop.f32.mrb[0].mxu0
      %v2426 = vpop.f32.mrb[0].mxu0
      %v2427 = vadd.f32 %v2285, %v2426
      %v2428 = vpop.f32.mrb[0].mxu0
      %2429 = vmatprep.mubr.bf16.mxu0 0
      %2430 = vmatmul.mubr.bf16.gmra.mrb[0].mxu0 %v2315
      %v2431 = vpop.f32.mrb[0].mxu0
      %v2432 = vadd.f32 %v2285, %v2431
      %v2433 = vpop.f32.mrb[0].mxu0
      %v2434 = vpop.f32.mrb[0].mxu0
      %v2435 = vadd.f32 %v2285, %v2434
      %v2436 = vpop.f32.mrb[0].mxu0
      %2437 = vmatprep.mubr.bf16.mxu0 0
      %2438 = vmatmul.mubr.bf16.gmra.mrb[0].mxu0 %v2318
      %v2439 = vpop.f32.mrb[0].mxu0
      %v2440 = vadd.f32 %v2285, %v2439
      %v2441 = vpop.f32.mrb[0].mxu0
      %v2442 = vpop.f32.mrb[0].mxu0
      %v2443 = vadd.f32 %v2285, %v2442
      %v2444 = vpop.f32.mrb[0].mxu0
      %2445 = vmatprep.mubr.bf16.mxu0 0
      %2446 = vmatmul.mubr.bf16.gmra.mrb[0].mxu0 %v2321
      %v2447 = vpop.f32.mrb[0].mxu0
      %v2448 = vadd.f32 %v2285, %v2447
      %v2449 = vpop.f32.mrb[0].mxu0
      %v2450 = vpop.f32.mrb[0].mxu0
      %v2451 = vadd.f32 %v2285, %v2450
      %v2452 = vpop.f32.mrb[0].mxu0
      %2453 = vmatprep.mubr.bf16.mxu0 0
      %2454 = vmatmul.mubr.bf16.gmra.mrb[0].mxu0 %v2324
      %v2455 = vpop.f32.mrb[0].mxu0
      %v2456 = vadd.f32 %v2285, %v2455
      %v2457 = vpop.f32.mrb[0].mxu0
      %v2458 = vpop.f32.mrb[0].mxu0
      %v2459 = vadd.f32 %v2285, %v2458
      %v2460 = vpop.f32.mrb[0].mxu0
      %2461 = vmatprep.mubr.bf16.mxu0 0
      %2462 = vmatmul.mubr.bf16.gmra.mrb[0].mxu0 %v2327
      %v2463 = vpop.f32.mrb[0].mxu0
      %v2464 = vadd.f32 %v2285, %v2463
      %v2465 = vpop.f32.mrb[0].mxu0
      %v2466 = vpop.f32.mrb[0].mxu0
      %v2467 = vadd.f32 %v2285, %v2466
      %v2468 = vpop.f32.mrb[0].mxu0
      %2469 = vmatprep.mubr.bf16.mxu0 0
      %2470 = vmatmul.mubr.bf16.gmra.mrb[0].mxu0 %v2330
      %v2471 = vpop.f32.mrb[0].mxu0
      %v2472 = vadd.f32 %v2285, %v2471
      %v2473 = vpop.f32.mrb[0].mxu0
      %v2474 = vpop.f32.mrb[0].mxu0
      %v2475 = vadd.f32 %v2285, %v2474
      %v2476 = vpop.f32.mrb[0].mxu0
      %2477 = vmatprep.mubr.bf16.mxu0 0
      %2478 = vmatmul.mubr.bf16.gmra.mrb[0].mxu0 %v2333
      %v2479 = vpop.f32.mrb[0].mxu0
      %v2480 = vadd.f32 %v2285, %v2479
      %v2481 = vpop.f32.mrb[0].mxu0
      %v2482 = vpop.f32.mrb[0].mxu0
      %v2483 = vadd.f32 %v2285, %v2482
      %v2484 = vpop.f32.mrb[0].mxu0
      %2485 = vmatprep.mubr.bf16.mxu0 0
      %2486 = vmatmul.mubr.bf16.gmra.mrb[0].mxu0 %v2336
      %v2487 = vpop.f32.mrb[0].mxu0
      %v2488 = vadd.f32 %v2285, %v2487
      %v2489 = vpop.f32.mrb[0].mxu0
      %v2490 = vpop.f32.mrb[0].mxu0
      %v2491 = vadd.f32 %v2285, %v2490
      %v2492 = vpop.f32.mrb[0].mxu0
      %2493 = vmatprep.mubr.bf16.mxu0 0
      %2494 = vmatmul.mubr.bf16.gmra.mrb[0].mxu0 %v2339
      %v2495 = vpop.f32.mrb[0].mxu0
      %v2496 = vadd.f32 %v2285, %v2495
      %v2497 = vpop.f32.mrb[0].mxu0
      %v2498 = vpop.f32.mrb[0].mxu0
      %v2499 = vadd.f32 %v2285, %v2498
      %v2500 = vpop.f32.mrb[0].mxu0
      %2501 = vdwg.mxu0
      %v2502 = vmul.f32 %v2376, 0.5
      %v2503 = vmul.f32 %v2379, 0.5
      %v2504 = vmul.f32 %v2384, 0.5
      %v2505 = vmul.f32 %v2387, 0.5
      %v2506 = vmul.f32 %v2392, 0.5
      %v2507 = vmul.f32 %v2395, 0.5
      %v2508 = vmul.f32 %v2400, 0.5
      %v2509 = vmul.f32 %v2403, 0.5
      %v2510 = vmul.f32 %v2408, 0.5
      %v2511 = vmul.f32 %v2411, 0.5
      %v2512 = vmul.f32 %v2416, 0.5
      %v2513 = vmul.f32 %v2419, 0.5
      %v2514 = vmul.f32 %v2424, 0.5
      %v2515 = vmul.f32 %v2427, 0.5
      %v2516 = vmul.f32 %v2432, 0.5
      %v2517 = vmul.f32 %v2435, 0.5
      %v2518 = vmul.f32 %v2440, 0.5
      %v2519 = vmul.f32 %v2443, 0.5
      %v2520 = vmul.f32 %v2448, 0.5
      %v2521 = vmul.f32 %v2451, 0.5
      %v2522 = vmul.f32 %v2456, 0.5
      %v2523 = vmul.f32 %v2459, 0.5
      %v2524 = vmul.f32 %v2464, 0.5
      %v2525 = vmul.f32 %v2467, 0.5
      %v2526 = vmul.f32 %v2472, 0.5
      %v2527 = vmul.f32 %v2475, 0.5
      %v2528 = vmul.f32 %v2480, 0.5
      %v2529 = vmul.f32 %v2483, 0.5
      %v2530 = vmul.f32 %v2488, 0.5
      %v2531 = vmul.f32 %v2491, 0.5
      %v2532 = vmul.f32 %v2496, 0.5
      %v2533 = vmul.f32 %v2499, 0.5
      %v2534 = vmul.f32 %v2376, 0.70710677
      %v2535 = vmul.f32 %v2379, 0.70710677
      %v2536 = vmul.f32 %v2384, 0.70710677
      %v2537 = vmul.f32 %v2387, 0.70710677
      %v2538 = vmul.f32 %v2392, 0.70710677
      %v2539 = vmul.f32 %v2395, 0.70710677
      %v2540 = vmul.f32 %v2400, 0.70710677
      %v2541 = vmul.f32 %v2403, 0.70710677
      %v2542 = vmul.f32 %v2408, 0.70710677
      %v2543 = vmul.f32 %v2411, 0.70710677
      %v2544 = vmul.f32 %v2416, 0.70710677
      %v2545 = vmul.f32 %v2419, 0.70710677
      %v2546 = vmul.f32 %v2424, 0.70710677
      %v2547 = vmul.f32 %v2427, 0.70710677
      %v2548 = vmul.f32 %v2432, 0.70710677
      %v2549 = vmul.f32 %v2435, 0.70710677
      %v2550 = vmul.f32 %v2440, 0.70710677
      %v2551 = vmul.f32 %v2443, 0.70710677
      %v2552 = vmul.f32 %v2448, 0.70710677
      %v2553 = vmul.f32 %v2451, 0.70710677
      %v2554 = vmul.f32 %v2456, 0.70710677
      %v2555 = vmul.f32 %v2459, 0.70710677
      %v2556 = vmul.f32 %v2464, 0.70710677
      %v2557 = vmul.f32 %v2467, 0.70710677
      %v2558 = vmul.f32 %v2472, 0.70710677
      %v2559 = vmul.f32 %v2475, 0.70710677
      %v2560 = vmul.f32 %v2480, 0.70710677
      %v2561 = vmul.f32 %v2483, 0.70710677
      %v2562 = vmul.f32 %v2488, 0.70710677
      %v2563 = vmul.f32 %v2491, 0.70710677
      %v2564 = vmul.f32 %v2496, 0.70710677
      %v2565 = vmul.f32 %v2499, 0.70710677
      %v2566 = verf.f32.pop %v2534
      %v2567 = verf.f32.pop %v2535
      %v2568 = verf.f32.pop %v2536
      %v2569 = verf.f32.pop %v2537
      %v2570 = verf.f32.pop %v2538
      %v2571 = verf.f32.pop %v2539
      %v2572 = verf.f32.pop %v2540
      %v2573 = verf.f32.pop %v2541
      %v2574 = verf.f32.pop %v2542
      %v2575 = verf.f32.pop %v2543
      %v2576 = verf.f32.pop %v2544
      %v2577 = verf.f32.pop %v2545
      %v2578 = verf.f32.pop %v2546
      %v2579 = verf.f32.pop %v2547
      %v2580 = verf.f32.pop %v2548
      %v2581 = verf.f32.pop %v2549
      %v2582 = verf.f32.pop %v2550
      %v2583 = verf.f32.pop %v2551
      %v2584 = verf.f32.pop %v2552
      %v2585 = verf.f32.pop %v2553
      %v2586 = verf.f32.pop %v2554
      %v2587 = verf.f32.pop %v2555
      %v2588 = verf.f32.pop %v2556
      %v2589 = verf.f32.pop %v2557
      %v2590 = verf.f32.pop %v2558
      %v2591 = verf.f32.pop %v2559
      %v2592 = verf.f32.pop %v2560
      %v2593 = verf.f32.pop %v2561
      %v2594 = verf.f32.pop %v2562
      %v2595 = verf.f32.pop %v2563
      %v2596 = verf.f32.pop %v2564
      %v2597 = verf.f32.pop %v2565
      %v2598 = vadd.f32 %v2566, 1.0
      %v2599 = vadd.f32 %v2567, 1.0
      %v2600 = vadd.f32 %v2568, 1.0
      %v2601 = vadd.f32 %v2569, 1.0
      %v2602 = vadd.f32 %v2570, 1.0
      %v2603 = vadd.f32 %v2571, 1.0
      %v2604 = vadd.f32 %v2572, 1.0
      %v2605 = vadd.f32 %v2573, 1.0
      %v2606 = vadd.f32 %v2574, 1.0
      %v2607 = vadd.f32 %v2575, 1.0
      %v2608 = vadd.f32 %v2576, 1.0
      %v2609 = vadd.f32 %v2577, 1.0
      %v2610 = vadd.f32 %v2578, 1.0
      %v2611 = vadd.f32 %v2579, 1.0
      %v2612 = vadd.f32 %v2580, 1.0
      %v2613 = vadd.f32 %v2581, 1.0
      %v2614 = vadd.f32 %v2582, 1.0
      %v2615 = vadd.f32 %v2583, 1.0
      %v2616 = vadd.f32 %v2584, 1.0
      %v2617 = vadd.f32 %v2585, 1.0
      %v2618 = vadd.f32 %v2586, 1.0
      %v2619 = vadd.f32 %v2587, 1.0
      %v2620 = vadd.f32 %v2588, 1.0
      %v2621 = vadd.f32 %v2589, 1.0
      %v2622 = vadd.f32 %v2590, 1.0
      %v2623 = vadd.f32 %v2591, 1.0
      %v2624 = vadd.f32 %v2592, 1.0
      %v2625 = vadd.f32 %v2593, 1.0
      %v2626 = vadd.f32 %v2594, 1.0
      %v2627 = vadd.f32 %v2595, 1.0
      %v2628 = vadd.f32 %v2596, 1.0
      %v2629 = vadd.f32 %v2597, 1.0
      %v2630 = vmul.f32 %v2502, %v2598
      %v2631 = vmul.f32 %v2503, %v2599
      %v2632 = vmul.f32 %v2504, %v2600
      %v2633 = vmul.f32 %v2505, %v2601
      %v2634 = vmul.f32 %v2506, %v2602
      %v2635 = vmul.f32 %v2507, %v2603
      %v2636 = vmul.f32 %v2508, %v2604
      %v2637 = vmul.f32 %v2509, %v2605
      %v2638 = vmul.f32 %v2510, %v2606
      %v2639 = vmul.f32 %v2511, %v2607
      %v2640 = vmul.f32 %v2512, %v2608
      %v2641 = vmul.f32 %v2513, %v2609
      %v2642 = vmul.f32 %v2514, %v2610
      %v2643 = vmul.f32 %v2515, %v2611
      %v2644 = vmul.f32 %v2516, %v2612
      %v2645 = vmul.f32 %v2517, %v2613
      %v2646 = vmul.f32 %v2518, %v2614
      %v2647 = vmul.f32 %v2519, %v2615
      %v2648 = vmul.f32 %v2520, %v2616
      %v2649 = vmul.f32 %v2521, %v2617
      %v2650 = vmul.f32 %v2522, %v2618
      %v2651 = vmul.f32 %v2523, %v2619
      %v2652 = vmul.f32 %v2524, %v2620
      %v2653 = vmul.f32 %v2525, %v2621
      %v2654 = vmul.f32 %v2526, %v2622
      %v2655 = vmul.f32 %v2527, %v2623
      %v2656 = vmul.f32 %v2528, %v2624
      %v2657 = vmul.f32 %v2529, %v2625
      %v2658 = vmul.f32 %v2530, %v2626
      %v2659 = vmul.f32 %v2531, %v2627
      %v2660 = vmul.f32 %v2532, %v2628
      %v2661 = vmul.f32 %v2533, %v2629
      %v2662 = vpack.c.bf16 %v2631, %v2630
      %v2663 = vpack.c.bf16 %v2633, %v2632
      %v2664 = vpack.c.bf16 %v2635, %v2634
      %v2665 = vpack.c.bf16 %v2637, %v2636
      %v2666 = vpack.c.bf16 %v2639, %v2638
      %v2667 = vpack.c.bf16 %v2641, %v2640
      %v2668 = vpack.c.bf16 %v2643, %v2642
      %v2669 = vpack.c.bf16 %v2645, %v2644
      %v2670 = vpack.c.bf16 %v2647, %v2646
      %v2671 = vpack.c.bf16 %v2649, %v2648
      %v2672 = vpack.c.bf16 %v2651, %v2650
      %v2673 = vpack.c.bf16 %v2653, %v2652
      %v2674 = vpack.c.bf16 %v2655, %v2654
      %v2675 = vpack.c.bf16 %v2657, %v2656
      %v2676 = vpack.c.bf16 %v2659, %v2658
      %v2677 = vpack.c.bf16 %v2661, %v2660
      %v2679 = vlaneseq
      %v2680 = vshrl.u32 %v2679, 7
      %v2681 = vsub.s32 0, %v2680
      %v2682 = vrot.slane %v503, %v2681
      %v2686 = vunpack.c.l.b16 %v496
      %v2687 = vunpack.c.l.b16 %v497
      %v2688 = vpack.c.b16 %v2687, %v2686
      %v2691 = vsel %vm1626, %v2662, 0
      %v2694 = vsel %vm1626, %v2663, 0
      %v2697 = vsel %vm1626, %v2664, 0
      %v2700 = vsel %vm1626, %v2665, 0
      %v2703 = vsel %vm1626, %v2666, 0
      %v2706 = vsel %vm1626, %v2667, 0
      %v2709 = vsel %vm1626, %v2668, 0
      %v2712 = vsel %vm1626, %v2669, 0
      %v2715 = vsel %vm1626, %v2670, 0
      %v2718 = vsel %vm1626, %v2671, 0
      %v2721 = vsel %vm1626, %v2672, 0
      %v2724 = vsel %vm1626, %v2673, 0
      %v2727 = vsel %vm1626, %v2674, 0
      %v2730 = vsel %vm1626, %v2675, 0
      %v2733 = vsel %vm1626, %v2676, 0
      %v2736 = vsel %vm1626, %v2677, 0
      %2738 = vmatprep.subr.bf16.mxu0 0
      %2739 = vmatpush1.bf16.msra.mxu0 %v2688
      %2740 = vmatprep.subr.bf16.mxu0 0
      %2741 = vmatpush1.bf16.msra.mxu0 0
      %2742 = vmatprep.subr.bf16.mxu0 0
      %2743 = vmatpush1.bf16.msra.mxu0 0
      %2744 = vmatprep.subr.bf16.mxu0 0
      %2745 = vmatpush1.bf16.msra.mxu0 0
      %2746 = vmatprep.subr.bf16.mxu0 0
      %2747 = vmatpush1.bf16.msra.mxu0 0
      %2748 = vmatprep.subr.bf16.mxu0 0
      %2749 = vmatpush1.bf16.msra.mxu0 0
      %2750 = vmatprep.subr.bf16.mxu0 0
      %2751 = vmatpush1.bf16.msra.mxu0 0
      %2752 = vmatprep.subr.bf16.mxu0 0
      %2753 = vmatpush1.bf16.msra.mxu0 0
      %2754 = vmatprep.subr.bf16.mxu0 0
      %2755 = vmatpush1.bf16.msra.mxu0 0
      %2756 = vmatprep.subr.bf16.mxu0 0
      %2757 = vmatpush1.bf16.msra.mxu0 0
      %2758 = vmatprep.subr.bf16.mxu0 0
      %2759 = vmatpush1.bf16.msra.mxu0 0
      %2760 = vmatprep.subr.bf16.mxu0 0
      %2761 = vmatpush1.bf16.msra.mxu0 0
      %2762 = vmatprep.subr.bf16.mxu0 0
      %2763 = vmatpush1.bf16.msra.mxu0 0
      %2764 = vmatprep.subr.bf16.mxu0 0
      %2765 = vmatpush1.bf16.msra.mxu0 0
      %2766 = vmatprep.subr.bf16.mxu0 0
      %2767 = vmatpush1.bf16.msra.mxu0 0
      %2768 = vmatprep.subr.bf16.mxu0 0
      %2769 = vmatpush1.bf16.msra.mxu0 0
      %2770 = vmatprep.mubr.bf16.mxu0 0
      %2771 = vmatmul.mubr.bf16.gmra.mrb[0].mxu0 %v2691
      %v2772 = vpop.f32.mrb[0].mxu0
      %v2773 = vadd.f32 %v2682, %v2772
      %v2774 = vpop.f32.mrb[0].mxu0
      %v2775 = vpop.f32.mrb[0].mxu0
      %v2776 = vadd.f32 %v2682, %v2775
      %v2777 = vpop.f32.mrb[0].mxu0
      %2778 = vmatprep.mubr.bf16.mxu0 0
      %2779 = vmatmul.mubr.bf16.gmra.mrb[0].mxu0 %v2694
      %v2780 = vpop.f32.mrb[0].mxu0
      %v2781 = vadd.f32 %v2682, %v2780
      %v2782 = vpop.f32.mrb[0].mxu0
      %v2783 = vpop.f32.mrb[0].mxu0
      %v2784 = vadd.f32 %v2682, %v2783
      %v2785 = vpop.f32.mrb[0].mxu0
      %2786 = vmatprep.mubr.bf16.mxu0 0
      %2787 = vmatmul.mubr.bf16.gmra.mrb[0].mxu0 %v2697
      %v2788 = vpop.f32.mrb[0].mxu0
      %v2789 = vadd.f32 %v2682, %v2788
      %v2790 = vpop.f32.mrb[0].mxu0
      %v2791 = vpop.f32.mrb[0].mxu0
      %v2792 = vadd.f32 %v2682, %v2791
      %v2793 = vpop.f32.mrb[0].mxu0
      %2794 = vmatprep.mubr.bf16.mxu0 0
      %2795 = vmatmul.mubr.bf16.gmra.mrb[0].mxu0 %v2700
      %v2796 = vpop.f32.mrb[0].mxu0
      %v2797 = vadd.f32 %v2682, %v2796
      %v2798 = vpop.f32.mrb[0].mxu0
      %v2799 = vpop.f32.mrb[0].mxu0
      %v2800 = vadd.f32 %v2682, %v2799
      %v2801 = vpop.f32.mrb[0].mxu0
      %2802 = vmatprep.mubr.bf16.mxu0 0
      %2803 = vmatmul.mubr.bf16.gmra.mrb[0].mxu0 %v2703
      %v2804 = vpop.f32.mrb[0].mxu0
      %v2805 = vadd.f32 %v2682, %v2804
      %v2806 = vpop.f32.mrb[0].mxu0
      %v2807 = vpop.f32.mrb[0].mxu0
      %v2808 = vadd.f32 %v2682, %v2807
      %v2809 = vpop.f32.mrb[0].mxu0
      %2810 = vmatprep.mubr.bf16.mxu0 0
      %2811 = vmatmul.mubr.bf16.gmra.mrb[0].mxu0 %v2706
      %v2812 = vpop.f32.mrb[0].mxu0
      %v2813 = vadd.f32 %v2682, %v2812
      %v2814 = vpop.f32.mrb[0].mxu0
      %v2815 = vpop.f32.mrb[0].mxu0
      %v2816 = vadd.f32 %v2682, %v2815
      %v2817 = vpop.f32.mrb[0].mxu0
      %2818 = vmatprep.mubr.bf16.mxu0 0
      %2819 = vmatmul.mubr.bf16.gmra.mrb[0].mxu0 %v2709
      %v2820 = vpop.f32.mrb[0].mxu0
      %v2821 = vadd.f32 %v2682, %v2820
      %v2822 = vpop.f32.mrb[0].mxu0
      %v2823 = vpop.f32.mrb[0].mxu0
      %v2824 = vadd.f32 %v2682, %v2823
      %v2825 = vpop.f32.mrb[0].mxu0
      %2826 = vmatprep.mubr.bf16.mxu0 0
      %2827 = vmatmul.mubr.bf16.gmra.mrb[0].mxu0 %v2712
      %v2828 = vpop.f32.mrb[0].mxu0
      %v2829 = vadd.f32 %v2682, %v2828
      %v2830 = vpop.f32.mrb[0].mxu0
      %v2831 = vpop.f32.mrb[0].mxu0
      %v2832 = vadd.f32 %v2682, %v2831
      %v2833 = vpop.f32.mrb[0].mxu0
      %2834 = vmatprep.mubr.bf16.mxu0 0
      %2835 = vmatmul.mubr.bf16.gmra.mrb[0].mxu0 %v2715
      %v2836 = vpop.f32.mrb[0].mxu0
      %v2837 = vadd.f32 %v2682, %v2836
      %v2838 = vpop.f32.mrb[0].mxu0
      %v2839 = vpop.f32.mrb[0].mxu0
      %v2840 = vadd.f32 %v2682, %v2839
      %v2841 = vpop.f32.mrb[0].mxu0
      %2842 = vmatprep.mubr.bf16.mxu0 0
      %2843 = vmatmul.mubr.bf16.gmra.mrb[0].mxu0 %v2718
      %v2844 = vpop.f32.mrb[0].mxu0
      %v2845 = vadd.f32 %v2682, %v2844
      %v2846 = vpop.f32.mrb[0].mxu0
      %v2847 = vpop.f32.mrb[0].mxu0
      %v2848 = vadd.f32 %v2682, %v2847
      %v2849 = vpop.f32.mrb[0].mxu0
      %2850 = vmatprep.mubr.bf16.mxu0 0
      %2851 = vmatmul.mubr.bf16.gmra.mrb[0].mxu0 %v2721
      %v2852 = vpop.f32.mrb[0].mxu0
      %v2853 = vadd.f32 %v2682, %v2852
      %v2854 = vpop.f32.mrb[0].mxu0
      %v2855 = vpop.f32.mrb[0].mxu0
      %v2856 = vadd.f32 %v2682, %v2855
      %v2857 = vpop.f32.mrb[0].mxu0
      %2858 = vmatprep.mubr.bf16.mxu0 0
      %2859 = vmatmul.mubr.bf16.gmra.mrb[0].mxu0 %v2724
      %v2860 = vpop.f32.mrb[0].mxu0
      %v2861 = vadd.f32 %v2682, %v2860
      %v2862 = vpop.f32.mrb[0].mxu0
      %v2863 = vpop.f32.mrb[0].mxu0
      %v2864 = vadd.f32 %v2682, %v2863
      %v2865 = vpop.f32.mrb[0].mxu0
      %2866 = vmatprep.mubr.bf16.mxu0 0
      %2867 = vmatmul.mubr.bf16.gmra.mrb[0].mxu0 %v2727
      %v2868 = vpop.f32.mrb[0].mxu0
      %v2869 = vadd.f32 %v2682, %v2868
      %v2870 = vpop.f32.mrb[0].mxu0
      %v2871 = vpop.f32.mrb[0].mxu0
      %v2872 = vadd.f32 %v2682, %v2871
      %v2873 = vpop.f32.mrb[0].mxu0
      %2874 = vmatprep.mubr.bf16.mxu0 0
      %2875 = vmatmul.mubr.bf16.gmra.mrb[0].mxu0 %v2730
      %v2876 = vpop.f32.mrb[0].mxu0
      %v2877 = vadd.f32 %v2682, %v2876
      %v2878 = vpop.f32.mrb[0].mxu0
      %v2879 = vpop.f32.mrb[0].mxu0
      %v2880 = vadd.f32 %v2682, %v2879
      %v2881 = vpop.f32.mrb[0].mxu0
      %2882 = vmatprep.mubr.bf16.mxu0 0
      %2883 = vmatmul.mubr.bf16.gmra.mrb[0].mxu0 %v2733
      %v2884 = vpop.f32.mrb[0].mxu0
      %v2885 = vadd.f32 %v2682, %v2884
      %v2886 = vpop.f32.mrb[0].mxu0
      %v2887 = vpop.f32.mrb[0].mxu0
      %v2888 = vadd.f32 %v2682, %v2887
      %v2889 = vpop.f32.mrb[0].mxu0
      %2890 = vmatprep.mubr.bf16.mxu0 0
      %2891 = vmatmul.mubr.bf16.gmra.mrb[0].mxu0 %v2736
      %v2892 = vpop.f32.mrb[0].mxu0
      %v2893 = vadd.f32 %v2682, %v2892
      %v2894 = vpop.f32.mrb[0].mxu0
      %v2895 = vpop.f32.mrb[0].mxu0
      %v2896 = vadd.f32 %v2682, %v2895
      %v2897 = vpop.f32.mrb[0].mxu0
      %2898 = vdwg.mxu0
      %2899 = vst.msk [vmem:[%s490] sm:$0xff] %vm622, %v2773
      %2900 = vst.msk [vmem:[%s490 + $0x8] sm:$0xff] %vm622, %v2776
      %2901 = vst.msk [vmem:[%s490 + $0x10] sm:$0xff] %vm622, %v2781
      %2902 = vst.msk [vmem:[%s490 + $0x18] sm:$0xff] %vm622, %v2784
      %2903 = vst.msk [vmem:[%s490 + $0x20] sm:$0xff] %vm622, %v2789
      %2904 = vst.msk [vmem:[%s490 + $0x28] sm:$0xff] %vm622, %v2792
      %2905 = vst.msk [vmem:[%s490 + $0x30] sm:$0xff] %vm622, %v2797
      %2906 = vst.msk [vmem:[%s490 + $0x38] sm:$0xff] %vm622, %v2800
      %2907 = vst.msk [vmem:[%s490 + $0x40] sm:$0xff] %vm622, %v2805
      %2908 = vst.msk [vmem:[%s490 + $0x48] sm:$0xff] %vm622, %v2808
      %2909 = vst.msk [vmem:[%s490 + $0x50] sm:$0xff] %vm622, %v2813
      %2910 = vst.msk [vmem:[%s490 + $0x58] sm:$0xff] %vm622, %v2816
      %2911 = vst.msk [vmem:[%s490 + $0x60] sm:$0xff] %vm622, %v2821
      %2912 = vst.msk [vmem:[%s490 + $0x68] sm:$0xff] %vm622, %v2824
      %2913 = vst.msk [vmem:[%s490 + $0x70] sm:$0xff] %vm622, %v2829
      %2914 = vst.msk [vmem:[%s490 + $0x78] sm:$0xff] %vm622, %v2832
      %2915 = vst.msk [vmem:[%s490 + $0x80] sm:$0xff] %vm622, %v2837
      %2916 = vst.msk [vmem:[%s490 + $0x88] sm:$0xff] %vm622, %v2840
      %2917 = vst.msk [vmem:[%s490 + $0x90] sm:$0xff] %vm622, %v2845
      %2918 = vst.msk [vmem:[%s490 + $0x98] sm:$0xff] %vm622, %v2848
      %2919 = vst.msk [vmem:[%s490 + $0xa0] sm:$0xff] %vm622, %v2853
      %2920 = vst.msk [vmem:[%s490 + $0xa8] sm:$0xff] %vm622, %v2856
      %2921 = vst.msk [vmem:[%s490 + $0xb0] sm:$0xff] %vm622, %v2861
      %2922 = vst.msk [vmem:[%s490 + $0xb8] sm:$0xff] %vm622, %v2864
      %2923 = vst.msk [vmem:[%s490 + $0xc0] sm:$0xff] %vm622, %v2869
      %2924 = vst.msk [vmem:[%s490 + $0xc8] sm:$0xff] %vm622, %v2872
      %2925 = vst.msk [vmem:[%s490 + $0xd0] sm:$0xff] %vm622, %v2877
      %2926 = vst.msk [vmem:[%s490 + $0xd8] sm:$0xff] %vm622, %v2880
      %2927 = vst.msk [vmem:[%s490 + $0xe0] sm:$0xff] %vm622, %v2885
      %2928 = vst.msk [vmem:[%s490 + $0xe8] sm:$0xff] %vm622, %v2888
      %2929 = vst.msk [vmem:[%s490 + $0xf0] sm:$0xff] %vm622, %v2893
      %2930 = vst.msk [vmem:[%s490 + $0xf8] sm:$0xff] %vm622, %v2896
      %s2931 = smul.u32 16, %s28
      %p2932 = scmp.lt.s32.totalorder %s27, 1
      %s2933 = scalar_select %p2932, %s27, 1
      %p2934 = scmp.lt.s32.totalorder %s2931, 15
      %s2935 = scalar_select %p2934, %s2931, 15
      %s2936 = smul.addr %s2935, 2
      %s2937 = smul.addr %s2933, 32
      %s2938 = sadd.s32 %s2936, %s2937
      %s2939 = smul.addr %s2938, 8
      %s2940 = scalar_lea.vmem %s12, %s2939
      // Predicated region
      $region69: #{mix_feed_forward.1} parent=67 // pred_check
        %p2941 = pneg %p321
      $region70: #{mix_feed_forward.1} parent=67 // pred_check_branch
        %2943 = sbr.rel (%p2941) target = $region72
      $region71: #{mix_feed_forward.1} parent=67 // pred_region
        %s2944 = smul.u32 16, %s28
      $region72: #{mix_feed_forward.1} parent=67 // pred_fallthru
        _
    $region68: #{mix_feed_forward.1} parent=5 // pred_fallthru
      _
    %p2945 = scmp.le.s32.totalorder 2, %s18
    // Predicated region
    $region73: #{mix_feed_forward.1} parent=5 // pred_check
      %p2946 = pneg %p2945
    $region74: #{mix_feed_forward.1} parent=5 // pred_check_branch
      %2948 = sbr.rel (%p2946) target = $region76
    $region75: #{mix_feed_forward.1} parent=5 // pred_region
      %s2949 = ssub.s32 %s18, 2
      // Predicated region
      $region77: #{mix_feed_forward.1} parent=75 // pred_check
        %p2950 = pneg %p327
      $region78: #{mix_feed_forward.1} parent=75 // pred_check_branch
        %2952 = sbr.rel (%p2950) target = $region80
      $region79: #{mix_feed_forward.1} parent=75 // pred_region
        %s2953 = smul.u32 16, %s30
        %p2954 = scmp.lt.s32.totalorder %s29, 1
        %s2955 = scalar_select %p2954, %s29, 1
        %p2956 = scmp.lt.s32.totalorder %s2953, 15
        %s2957 = scalar_select %p2956, %s2953, 15
        %s2958 = smul.addr %s2957, 2
        %s2959 = smul.addr %s2955, 32
        %s2960 = sadd.s32 %s2958, %s2959
        %s2961 = smul.addr %s2960, 8
        %s2962 = scalar_lea.vmem %s12, %s2961
      $region80: #{mix_feed_forward.1} parent=75 // pred_fallthru
        _
    $region76: #{mix_feed_forward.1} parent=5 // pred_fallthru
      _
  $region6: #{mix_feed_forward.1} parent=0 // loop_footer
    %s22 = sadd.s32 1, %s18
  $region7: #{mix_feed_forward.1} parent=0 // loop_footer_branch
    %17 = sbr.rel target = $region3
  $region8: #{mix_feed_forward.1} parent=0 // loop_exit
    _

</llo_original>
